<compile_context>
chip_gen: v5e
topology: v5e:2x2
jax: 0.10.0
libtpu: 0.0.40
codegen_flags: <defaults>
</compile_context>

<pallas_src>
import jax
import jax.numpy as jnp
from jax.experimental import pallas as pl
from jax.experimental.pallas import tpu as pltpu

# ----------------------------- small test config ------------------------------------
BATCH = 2
SEQ_LEN = 8            # seg_len
INPUT_DIM = 32         # input_dim
HIDDEN = 32            # hidden_dim == mamba d_input == d_model
D_STATE = 8            # mamba_d_state
KER = 3                # mamba_ker_size
D_DISCR = HIDDEN // 16 # d_discr default (None -> d_model // 16)
N_LAYERS = 2           # mamba_layer_number
OUT_FEATURES = 32      # out_features
NUM_CLASSES = 7
CLS_PAD = 128          # lane-dense padded class dimension
LN_EPS = 1e-5

# colpack lane layout (per layer): [w_in (2H) | w_out (H) | w_d1@w_d2 (H)] -> 128 lanes
_C_WIN = 0
_C_WOUT = 2 * HIDDEN
_C_WD = 3 * HIDDEN
COLPACK_COLS = 4 * HIDDEN                     # = 128 exactly (lane-dense)

# rowpack sublane layout (per layer, all rows width HIDDEN)
_R_CONVW = 0
_R_CONVB = _R_CONVW + KER
_R_DVEC = _R_CONVB + 1
_R_APOS = _R_DVEC + 1
_R_WBC = _R_APOS + D_STATE                    # w_b_T rows then w_c_T rows (contiguous)
ROWPACK_ROWS = _R_WBC + 2 * D_STATE           # = KER + 2 + 3*D_STATE = 29


# ----------------------------- shared math (used by kernel AND reference) ------------
def _silu(x):
    return x / (1.0 + jnp.exp(-x))


def _softplus(x):
    return jnp.maximum(x, 0.0) + jnp.log(1.0 + jnp.exp(-jnp.abs(x)))


def _gelu_tanh(x):
    c = 0.7978845608028654  # sqrt(2/pi)
    return 0.5 * x * (1.0 + jnp.tanh(c * (x + 0.044715 * x * x * x)))


def _layer_norm(x, gamma, beta):
    mu = jnp.mean(x, axis=-1, keepdims=True)
    xc = x - mu
    var = jnp.mean(xc * xc, axis=-1, keepdims=True)
    return xc * jax.lax.rsqrt(var + LN_EPS) * gamma + beta


def _mamba_block_math(x, colpack, rowpack):
    """One MambaBlock on the full (B*L, HIDDEN) batch; returns pre-residual output."""
    w_in = colpack[:, _C_WIN:_C_WIN + 2 * HIDDEN]        # (H, 2H)
    w_out = colpack[:, _C_WOUT:_C_WOUT + HIDDEN]         # (H, H)
    w_d = colpack[:, _C_WD:_C_WD + HIDDEN]               # (H, H)  == w_d1 @ w_d2
    conv_w = rowpack[_R_CONVW:_R_CONVW + KER, :]         # (K, H)
    conv_b = rowpack[_R_CONVB:_R_CONVB + 1, :]           # (1, H)
    d_vec = rowpack[_R_DVEC:_R_DVEC + 1, :]              # (1, H)
    a_posT = rowpack[_R_APOS:_R_APOS + D_STATE, :]       # (S, H)
    w_bc_T = rowpack[_R_WBC:_R_WBC + 2 * D_STATE, :]     # (2S, H) stacked [w_b_T; w_c_T]

    # in_proj (no bias): SSM branch `a`, gate branch `z`, full batch at once
    xz = jnp.dot(x, w_in, preferred_element_type=jnp.float32)        # (B*L, 2H)
    a, z = xz[:, :HIDDEN], xz[:, HIDDEN:]
    z_g = _silu(z)

    # causal depthwise conv1d over time (left zero padding, no cross-sequence leakage)
    conv_rows = []
    for b in range(BATCH):                                 # static unroll, B = 2
        a_b = a[b * SEQ_LEN:(b + 1) * SEQ_LEN, :]
        a_pad = jnp.concatenate(
            [jnp.zeros((KER - 1, HIDDEN), jnp.float32), a_b], axis=0)
        acc = jnp.zeros((SEQ_LEN, HIDDEN), jnp.float32) + conv_b
        for k in range(KER):                               # static unroll, K = 3
            acc = acc + a_pad[k:k + SEQ_LEN, :] * conv_w[k:k + 1, :]
        conv_rows.append(acc)
    a_c = _silu(jnp.concatenate(conv_rows, axis=0))        # (B*L, H)

    # data-dependent delta via the pre-multiplied low-rank projection (one MXU push)
    delta = _softplus(
        jnp.dot(a_c, w_d, preferred_element_type=jnp.float32) + d_vec)  # (B*L, H)

    # B_t and C_t for all batches / timesteps with ONE stacked contraction -> (2S, B*L)
    nt = (((1,), (1,)), ((), ()))
    bc = jax.lax.dot_general(w_bc_T, a_c, nt, preferred_element_type=jnp.float32)
    b_T = bc[:D_STATE, :]                                  # (S, B*L)
    c_T = bc[D_STATE:, :]                                  # (S, B*L)

    # exp hoisted out of the recurrence: all discretized A factors at once
    a_bar_all = jnp.exp(-(delta[:, None, :] * a_posT[None, :, :]))   # (B*L, S, H)
    du = delta * a_c                                                  # (B*L, H)

    # selective scan, statically unrolled (independent chain per batch element)
    y_rows = []
    for b in range(BATCH):
        h = jnp.zeros((D_STATE, HIDDEN), jnp.float32)
        for t in range(SEQ_LEN):
            i = b * SEQ_LEN + t
            h = a_bar_all[i] * h + b_T[:, i:i + 1] * du[i:i + 1, :]
            y_rows.append(jnp.sum(h * c_T[:, i:i + 1], axis=0, keepdims=True))
    y = jnp.concatenate(y_rows, axis=0) + d_vec * a_c      # SSM output + D skip
    y = y * z_g                                            # SiLU gate
    return jnp.dot(y, w_out, preferred_element_type=jnp.float32)     # (B*L, H)


def _forward_math(x2d, w_ip, ip_pack, colpack, rowpack, w1, cls_pack, w2pack):
    """Full VideoMamba forward on values; x2d is (B*L, INPUT_DIM)."""
    # image_proj: Linear + LayerNorm (dropout = identity in eval)
    h = jnp.dot(x2d, w_ip, preferred_element_type=jnp.float32) + ip_pack[0:1, :]
    seq = _layer_norm(h, ip_pack[1:2, :], ip_pack[2:3, :])            # (B*L, H)

    # mamba layers with residual adds; seq stays resident
    for layer in range(N_LAYERS):
        seq = seq + _mamba_block_math(seq, colpack[layer], rowpack[layer])

    # temporal mean pool + classifier (Linear + LayerNorm + GELU + Linear)
    pooled = jnp.mean(seq.reshape(BATCH, SEQ_LEN, HIDDEN), axis=1)    # (B, H)
    h1 = jnp.dot(pooled, w1, preferred_element_type=jnp.float32) + cls_pack[0:1, :]
    h1 = _gelu_tanh(_layer_norm(h1, cls_pack[1:2, :], cls_pack[2:3, :]))
    return (jnp.dot(h1, w2pack[:OUT_FEATURES, :], preferred_element_type=jnp.float32)
            + w2pack[OUT_FEATURES:OUT_FEATURES + 1, :])               # (B, CLS_PAD)


# ----------------------------- fused Pallas kernel ------------------------------------
def video_mamba_kernel(x_ref, w_ip_ref, ip_pack_ref, colpack_ref, rowpack_ref,
                       w1_ref, cls_pack_ref, w2pack_ref, o_ref):
    o_ref[...] = _forward_math(
        x_ref[...], w_ip_ref[...], ip_pack_ref[...],
        colpack_ref[...], rowpack_ref[...],
        w1_ref[...], cls_pack_ref[...], w2pack_ref[...])


# ----------------------------- wrapper ------------------------------------------------
def video_mamba_forward(x, params):
    """x: (B, L, INPUT_DIM) float32 -> logits (B, NUM_CLASSES)."""
    w_ip, ip_pack, colpack, rowpack, w1, cls_pack, w2pack = params
    B, L, d_in = x.shape
    logits_padded = pl.pallas_call(
        video_mamba_kernel,
        out_shape=jax.ShapeDtypeStruct((B, CLS_PAD), jnp.float32),
        compiler_params=pltpu.CompilerParams(vmem_limit_bytes=32 * 1024 * 1024),
    )(x.reshape(B * L, d_in).astype(jnp.float32), w_ip, ip_pack,
      colpack, rowpack, w1, cls_pack, w2pack)
    return logits_padded[:, :NUM_CLASSES]


# ----------------------------- pure-JAX reference -------------------------------------
def _reference(x, params):
    w_ip, ip_pack, colpack, rowpack, w1, cls_pack, w2pack = params
    B, L, d_in = x.shape
    logits = _forward_math(x.reshape(B * L, d_in), w_ip, ip_pack,
                           colpack, rowpack, w1, cls_pack, w2pack)
    return logits[:, :NUM_CLASSES]


# ----------------------------- demo / self-check --------------------------------------
if __name__ == "__main__":
    keys = iter(jax.random.split(jax.random.PRNGKey(0), 24))

    def nk():
        return next(keys)

    def xavier(k, shape):
        scale = jnp.sqrt(2.0 / (shape[0] + shape[1]))
        return (scale * jax.random.normal(k, shape, jnp.float32)).astype(jnp.float32)

    # image_proj params (Linear bias=0, LayerNorm gamma=1 / beta=0 per _init_weights)
    w_ip = xavier(nk(), (INPUT_DIM, HIDDEN))
    ip_pack = jnp.concatenate(
        [jnp.zeros((1, HIDDEN), jnp.float32),
         jnp.ones((1, HIDDEN), jnp.float32),
         jnp.zeros((1, HIDDEN), jnp.float32)], axis=0)

    # mamba layer params, packed and stacked over layers
    colpacks, rowpacks = [], []
    for _ in range(N_LAYERS):
        w_in = xavier(nk(), (HIDDEN, 2 * HIDDEN))
        w_out = xavier(nk(), (HIDDEN, HIDDEN))
        w_d1_T = xavier(nk(), (D_DISCR, HIDDEN))           # low-rank delta factors
        w_d2 = xavier(nk(), (D_DISCR, HIDDEN))
        w_d = jnp.dot(w_d1_T.T, w_d2)                      # pre-multiplied (H, H)
        colpack = jnp.concatenate([w_in, w_out, w_d], axis=1)          # (H, 128)
        assert colpack.shape == (HIDDEN, COLPACK_COLS)

        conv_w = 0.3 * jax.random.normal(nk(), (KER, HIDDEN), jnp.float32)
        conv_b = 0.1 * jax.random.normal(nk(), (1, HIDDEN), jnp.float32)
        d_vec = jnp.ones((1, HIDDEN), jnp.float32)                     # D parameter
        a_posT = jnp.broadcast_to(
            jnp.arange(1, D_STATE + 1, dtype=jnp.float32)[:, None], (D_STATE, HIDDEN))
        w_b_T = xavier(nk(), (D_STATE, HIDDEN))
        w_c_T = xavier(nk(), (D_STATE, HIDDEN))
        rowpack = jnp.concatenate(
            [conv_w, conv_b, d_vec, a_posT, w_b_T, w_c_T], axis=0)     # (29, H)
        assert rowpack.shape == (ROWPACK_ROWS, HIDDEN)
        colpacks.append(colpack)
        rowpacks.append(rowpack)
    colpack_stack = jnp.stack(colpacks, axis=0)            # (N_LAYERS, H, 128)
    rowpack_stack = jnp.stack(rowpacks, axis=0)            # (N_LAYERS, 29, H)

    # classifier params (class dim zero-padded to 128 lanes for a lane-dense store)
    w1 = xavier(nk(), (HIDDEN, OUT_FEATURES))
    cls_pack = jnp.concatenate(
        [jnp.zeros((1, OUT_FEATURES), jnp.float32),
         jnp.ones((1, OUT_FEATURES), jnp.float32),
         jnp.zeros((1, OUT_FEATURES), jnp.float32)], axis=0)
    w2 = xavier(nk(), (OUT_FEATURES, NUM_CLASSES))
    w2_pad = jnp.zeros((OUT_FEATURES, CLS_PAD), jnp.float32).at[:, :NUM_CLASSES].set(w2)
    b2_pad = jnp.zeros((1, CLS_PAD), jnp.float32)
    w2pack = jnp.concatenate([w2_pad, b2_pad], axis=0)     # (F+1, 128)

    params = (w_ip, ip_pack, colpack_stack, rowpack_stack, w1, cls_pack, w2pack)

    x = jax.random.normal(nk(), (BATCH, SEQ_LEN, INPUT_DIM), jnp.float32)

    fwd = jax.jit(video_mamba_forward)
    out = fwd(x, params)
    jax.block_until_ready(out)
    assert out.shape == (BATCH, NUM_CLASSES)

    with jax.default_matmul_precision("highest"):
        ref = _reference(x, params)
    jax.block_until_ready(ref)

    assert bool(jnp.allclose(out, ref, atol=1e-4, rtol=1e-4)), (
        f"mismatch: max abs diff = {float(jnp.max(jnp.abs(out - ref)))}")

    print("KERNEL_OK")
</pallas_src>

<mosaic_0001>
module attributes {stable_mosaic.version = 11 : i64} {
  func.func @video_mamba_kernel(%arg0: memref<16x32xf32, #tpu.memory_space<vmem>>, %arg1: memref<32x32xf32, #tpu.memory_space<vmem>>, %arg2: memref<3x32xf32, #tpu.memory_space<vmem>>, %arg3: memref<2x32x128xf32, #tpu.memory_space<vmem>>, %arg4: memref<2x29x32xf32, #tpu.memory_space<vmem>>, %arg5: memref<32x32xf32, #tpu.memory_space<vmem>>, %arg6: memref<3x32xf32, #tpu.memory_space<vmem>>, %arg7: memref<33x128xf32, #tpu.memory_space<vmem>>, %arg8: memref<2x128xf32, #tpu.memory_space<vmem>>) attributes {dimension_semantics = [], scalar_prefetch = 0 : i64, scratch_operands = 0 : i64, tpu.core_type = #tpu.core_type<tc>} {
    %c0 = arith.constant 0 : index
    %c0_0 = arith.constant 0 : index
    %0 = vector.load %arg0[%c0, %c0_0] : memref<16x32xf32, #tpu.memory_space<vmem>>, vector<16x32xf32>
    %c0_1 = arith.constant 0 : index
    %c0_2 = arith.constant 0 : index
    %1 = vector.load %arg1[%c0_1, %c0_2] : memref<32x32xf32, #tpu.memory_space<vmem>>, vector<32x32xf32>
    %c0_3 = arith.constant 0 : index
    %c0_4 = arith.constant 0 : index
    %2 = vector.load %arg2[%c0_3, %c0_4] : memref<3x32xf32, #tpu.memory_space<vmem>>, vector<3x32xf32>
    %c0_5 = arith.constant 0 : index
    %c0_6 = arith.constant 0 : index
    %c0_7 = arith.constant 0 : index
    %3 = vector.load %arg3[%c0_5, %c0_6, %c0_7] : memref<2x32x128xf32, #tpu.memory_space<vmem>>, vector<2x32x128xf32>
    %c0_8 = arith.constant 0 : index
    %c0_9 = arith.constant 0 : index
    %c0_10 = arith.constant 0 : index
    %4 = vector.load %arg4[%c0_8, %c0_9, %c0_10] : memref<2x29x32xf32, #tpu.memory_space<vmem>>, vector<2x29x32xf32>
    %c0_11 = arith.constant 0 : index
    %c0_12 = arith.constant 0 : index
    %5 = vector.load %arg5[%c0_11, %c0_12] : memref<32x32xf32, #tpu.memory_space<vmem>>, vector<32x32xf32>
    %c0_13 = arith.constant 0 : index
    %c0_14 = arith.constant 0 : index
    %6 = vector.load %arg6[%c0_13, %c0_14] : memref<3x32xf32, #tpu.memory_space<vmem>>, vector<3x32xf32>
    %c0_15 = arith.constant 0 : index
    %c0_16 = arith.constant 0 : index
    %7 = vector.load %arg7[%c0_15, %c0_16] : memref<33x128xf32, #tpu.memory_space<vmem>>, vector<33x128xf32>
    %cst = arith.constant dense<0.000000e+00> : vector<16x32xf32>
    %8 = tpu.matmul %0, %1, %cst {dimension_numbers = #tpu.dot_dimension_numbers<[1], [0], [0], [1], [0, 0, 1, 1], [], []>} : vector<16x32xf32>, vector<32x32xf32>, vector<16x32xf32> -> vector<16x32xf32>
    %9 = vector.extract_strided_slice %2 {offsets = [0, 0], sizes = [1, 32], strides = [1, 1]} : vector<3x32xf32> to vector<1x32xf32>
    %10 = vector.broadcast %9 : vector<1x32xf32> to vector<16x32xf32>
    %11 = arith.addf %8, %10 : vector<16x32xf32>
    %12 = vector.extract_strided_slice %2 {offsets = [1, 0], sizes = [1, 32], strides = [1, 1]} : vector<3x32xf32> to vector<1x32xf32>
    %13 = vector.extract_strided_slice %2 {offsets = [2, 0], sizes = [1, 32], strides = [1, 1]} : vector<3x32xf32> to vector<1x32xf32>
    %cst_17 = arith.constant dense<0.000000e+00> : vector<16xf32>
    %14 = vector.multi_reduction <add>, %11, %cst_17 [1] : vector<16x32xf32> to vector<16xf32>
    %15 = vector.shape_cast %14 : vector<16xf32> to vector<16x1xf32>
    %cst_18 = arith.constant 3.200000e+01 : f32
    %16 = vector.broadcast %cst_18 : f32 to vector<16x1xf32>
    %17 = arith.divf %15, %16 : vector<16x1xf32>
    %18 = vector.broadcast %17 : vector<16x1xf32> to vector<16x32xf32>
    %19 = arith.subf %11, %18 : vector<16x32xf32>
    %20 = arith.mulf %19, %19 : vector<16x32xf32>
    %cst_19 = arith.constant dense<0.000000e+00> : vector<16xf32>
    %21 = vector.multi_reduction <add>, %20, %cst_19 [1] : vector<16x32xf32> to vector<16xf32>
    %22 = vector.shape_cast %21 : vector<16xf32> to vector<16x1xf32>
    %cst_20 = arith.constant 3.200000e+01 : f32
    %23 = vector.broadcast %cst_20 : f32 to vector<16x1xf32>
    %24 = arith.divf %22, %23 : vector<16x1xf32>
    %cst_21 = arith.constant 9.99999974E-6 : f32
    %25 = vector.broadcast %cst_21 : f32 to vector<16x1xf32>
    %26 = arith.addf %24, %25 : vector<16x1xf32>
    %27 = math.rsqrt %26 : vector<16x1xf32>
    %28 = vector.broadcast %27 : vector<16x1xf32> to vector<16x32xf32>
    %29 = arith.mulf %19, %28 : vector<16x32xf32>
    %30 = vector.broadcast %12 : vector<1x32xf32> to vector<16x32xf32>
    %31 = arith.mulf %29, %30 : vector<16x32xf32>
    %32 = vector.broadcast %13 : vector<1x32xf32> to vector<16x32xf32>
    %33 = arith.addf %31, %32 : vector<16x32xf32>
    %34 = vector.extract_strided_slice %3 {offsets = [0, 0, 0], sizes = [1, 32, 128], strides = [1, 1, 1]} : vector<2x32x128xf32> to vector<1x32x128xf32>
    %35 = vector.shape_cast %34 : vector<1x32x128xf32> to vector<32x128xf32>
    %36 = vector.extract_strided_slice %4 {offsets = [0, 0, 0], sizes = [1, 29, 32], strides = [1, 1, 1]} : vector<2x29x32xf32> to vector<1x29x32xf32>
    %37 = vector.shape_cast %36 : vector<1x29x32xf32> to vector<29x32xf32>
    %38 = vector.extract_strided_slice %35 {offsets = [0, 0], sizes = [32, 64], strides = [1, 1]} : vector<32x128xf32> to vector<32x64xf32>
    %39 = vector.extract_strided_slice %35 {offsets = [0, 64], sizes = [32, 32], strides = [1, 1]} : vector<32x128xf32> to vector<32x32xf32>
    %40 = vector.extract_strided_slice %35 {offsets = [0, 96], sizes = [32, 32], strides = [1, 1]} : vector<32x128xf32> to vector<32x32xf32>
    %41 = vector.extract_strided_slice %37 {offsets = [0, 0], sizes = [3, 32], strides = [1, 1]} : vector<29x32xf32> to vector<3x32xf32>
    %42 = vector.extract_strided_slice %37 {offsets = [3, 0], sizes = [1, 32], strides = [1, 1]} : vector<29x32xf32> to vector<1x32xf32>
    %43 = vector.extract_strided_slice %37 {offsets = [4, 0], sizes = [1, 32], strides = [1, 1]} : vector<29x32xf32> to vector<1x32xf32>
    %44 = vector.extract_strided_slice %37 {offsets = [5, 0], sizes = [8, 32], strides = [1, 1]} : vector<29x32xf32> to vector<8x32xf32>
    %45 = vector.extract_strided_slice %37 {offsets = [13, 0], sizes = [16, 32], strides = [1, 1]} : vector<29x32xf32> to vector<16x32xf32>
    %cst_22 = arith.constant dense<0.000000e+00> : vector<16x64xf32>
    %46 = tpu.matmul %33, %38, %cst_22 {dimension_numbers = #tpu.dot_dimension_numbers<[1], [0], [0], [1], [0, 0, 1, 1], [], []>} : vector<16x32xf32>, vector<32x64xf32>, vector<16x64xf32> -> vector<16x64xf32>
    %47 = vector.extract_strided_slice %46 {offsets = [0, 0], sizes = [16, 32], strides = [1, 1]} : vector<16x64xf32> to vector<16x32xf32>
    %48 = vector.extract_strided_slice %46 {offsets = [0, 32], sizes = [16, 32], strides = [1, 1]} : vector<16x64xf32> to vector<16x32xf32>
    %cst_23 = arith.constant 0.000000e+00 : f32
    %49 = vector.broadcast %cst_23 : f32 to vector<16x32xf32>
    %50 = arith.subf %49, %48 : vector<16x32xf32>
    %51 = math.exp %50 : vector<16x32xf32>
    %cst_24 = arith.constant 1.000000e+00 : f32
    %52 = vector.broadcast %cst_24 : f32 to vector<16x32xf32>
    %53 = arith.addf %52, %51 : vector<16x32xf32>
    %54 = arith.divf %48, %53 : vector<16x32xf32>
    %55 = vector.extract_strided_slice %47 {offsets = [0, 0], sizes = [8, 32], strides = [1, 1]} : vector<16x32xf32> to vector<8x32xf32>
    %cst_25 = arith.constant 0.000000e+00 : f32
    %56 = vector.broadcast %cst_25 : f32 to vector<2x32xf32>
    %57 = tpu.concatenate %56, %55 in 0 : vector<2x32xf32>, vector<8x32xf32> -> vector<10x32xf32>
    %cst_26 = arith.constant 0.000000e+00 : f32
    %58 = vector.broadcast %cst_26 : f32 to vector<8x32xf32>
    %59 = vector.broadcast %42 : vector<1x32xf32> to vector<8x32xf32>
    %60 = arith.addf %58, %59 : vector<8x32xf32>
    %61 = vector.extract_strided_slice %57 {offsets = [0, 0], sizes = [8, 32], strides = [1, 1]} : vector<10x32xf32> to vector<8x32xf32>
    %62 = vector.extract_strided_slice %41 {offsets = [0, 0], sizes = [1, 32], strides = [1, 1]} : vector<3x32xf32> to vector<1x32xf32>
    %63 = vector.broadcast %62 : vector<1x32xf32> to vector<8x32xf32>
    %64 = arith.mulf %61, %63 : vector<8x32xf32>
    %65 = arith.addf %60, %64 : vector<8x32xf32>
    %66 = vector.extract_strided_slice %57 {offsets = [1, 0], sizes = [8, 32], strides = [1, 1]} : vector<10x32xf32> to vector<8x32xf32>
    %67 = vector.extract_strided_slice %41 {offsets = [1, 0], sizes = [1, 32], strides = [1, 1]} : vector<3x32xf32> to vector<1x32xf32>
    %68 = vector.broadcast %67 : vector<1x32xf32> to vector<8x32xf32>
    %69 = arith.mulf %66, %68 : vector<8x32xf32>
    %70 = arith.addf %65, %69 : vector<8x32xf32>
    %71 = vector.extract_strided_slice %57 {offsets = [2, 0], sizes = [8, 32], strides = [1, 1]} : vector<10x32xf32> to vector<8x32xf32>
    %72 = vector.extract_strided_slice %41 {offsets = [2, 0], sizes = [1, 32], strides = [1, 1]} : vector<3x32xf32> to vector<1x32xf32>
    %73 = vector.broadcast %72 : vector<1x32xf32> to vector<8x32xf32>
    %74 = arith.mulf %71, %73 : vector<8x32xf32>
    %75 = arith.addf %70, %74 : vector<8x32xf32>
    %76 = vector.extract_strided_slice %47 {offsets = [8, 0], sizes = [8, 32], strides = [1, 1]} : vector<16x32xf32> to vector<8x32xf32>
    %cst_27 = arith.constant 0.000000e+00 : f32
    %77 = vector.broadcast %cst_27 : f32 to vector<2x32xf32>
    %78 = tpu.concatenate %77, %76 in 0 : vector<2x32xf32>, vector<8x32xf32> -> vector<10x32xf32>
    %cst_28 = arith.constant 0.000000e+00 : f32
    %79 = vector.broadcast %cst_28 : f32 to vector<8x32xf32>
    %80 = vector.broadcast %42 : vector<1x32xf32> to vector<8x32xf32>
    %81 = arith.addf %79, %80 : vector<8x32xf32>
    %82 = vector.extract_strided_slice %78 {offsets = [0, 0], sizes = [8, 32], strides = [1, 1]} : vector<10x32xf32> to vector<8x32xf32>
    %83 = vector.extract_strided_slice %41 {offsets = [0, 0], sizes = [1, 32], strides = [1, 1]} : vector<3x32xf32> to vector<1x32xf32>
    %84 = vector.broadcast %83 : vector<1x32xf32> to vector<8x32xf32>
    %85 = arith.mulf %82, %84 : vector<8x32xf32>
    %86 = arith.addf %81, %85 : vector<8x32xf32>
    %87 = vector.extract_strided_slice %78 {offsets = [1, 0], sizes = [8, 32], strides = [1, 1]} : vector<10x32xf32> to vector<8x32xf32>
    %88 = vector.extract_strided_slice %41 {offsets = [1, 0], sizes = [1, 32], strides = [1, 1]} : vector<3x32xf32> to vector<1x32xf32>
    %89 = vector.broadcast %88 : vector<1x32xf32> to vector<8x32xf32>
    %90 = arith.mulf %87, %89 : vector<8x32xf32>
    %91 = arith.addf %86, %90 : vector<8x32xf32>
    %92 = vector.extract_strided_slice %78 {offsets = [2, 0], sizes = [8, 32], strides = [1, 1]} : vector<10x32xf32> to vector<8x32xf32>
    %93 = vector.extract_strided_slice %41 {offsets = [2, 0], sizes = [1, 32], strides = [1, 1]} : vector<3x32xf32> to vector<1x32xf32>
    %94 = vector.broadcast %93 : vector<1x32xf32> to vector<8x32xf32>
    %95 = arith.mulf %92, %94 : vector<8x32xf32>
    %96 = arith.addf %91, %95 : vector<8x32xf32>
    %97 = tpu.concatenate %75, %96 in 0 : vector<8x32xf32>, vector<8x32xf32> -> vector<16x32xf32>
    %cst_29 = arith.constant 0.000000e+00 : f32
    %98 = vector.broadcast %cst_29 : f32 to vector<16x32xf32>
    %99 = arith.subf %98, %97 : vector<16x32xf32>
    %100 = math.exp %99 : vector<16x32xf32>
    %cst_30 = arith.constant 1.000000e+00 : f32
    %101 = vector.broadcast %cst_30 : f32 to vector<16x32xf32>
    %102 = arith.addf %101, %100 : vector<16x32xf32>
    %103 = arith.divf %97, %102 : vector<16x32xf32>
    %cst_31 = arith.constant dense<0.000000e+00> : vector<16x32xf32>
    %104 = tpu.matmul %103, %40, %cst_31 {dimension_numbers = #tpu.dot_dimension_numbers<[1], [0], [0], [1], [0, 0, 1, 1], [], []>} : vector<16x32xf32>, vector<32x32xf32>, vector<16x32xf32> -> vector<16x32xf32>
    %105 = vector.broadcast %43 : vector<1x32xf32> to vector<16x32xf32>
    %106 = arith.addf %104, %105 : vector<16x32xf32>
    %cst_32 = arith.constant 0.000000e+00 : f32
    %107 = vector.broadcast %cst_32 : f32 to vector<16x32xf32>
    %108 = arith.maximumf %106, %107 : vector<16x32xf32>
    %109 = math.absf %106 : vector<16x32xf32>
    %cst_33 = arith.constant 0.000000e+00 : f32
    %110 = vector.broadcast %cst_33 : f32 to vector<16x32xf32>
    %111 = arith.subf %110, %109 : vector<16x32xf32>
    %112 = math.exp %111 : vector<16x32xf32>
    %cst_34 = arith.constant 1.000000e+00 : f32
    %113 = vector.broadcast %cst_34 : f32 to vector<16x32xf32>
    %114 = arith.addf %113, %112 : vector<16x32xf32>
    %115 = math.log %114 : vector<16x32xf32>
    %116 = arith.addf %108, %115 : vector<16x32xf32>
    %cst_35 = arith.constant dense<0.000000e+00> : vector<16x16xf32>
    %117 = tpu.matmul %45, %103, %cst_35 {dimension_numbers = #tpu.dot_dimension_numbers<[1], [1], [0], [0], [0, 0, 1, 0], [], []>} : vector<16x32xf32>, vector<16x32xf32>, vector<16x16xf32> -> vector<16x16xf32>
    %118 = vector.extract_strided_slice %117 {offsets = [0, 0], sizes = [8, 16], strides = [1, 1]} : vector<16x16xf32> to vector<8x16xf32>
    %119 = vector.extract_strided_slice %117 {offsets = [8, 0], sizes = [8, 16], strides = [1, 1]} : vector<16x16xf32> to vector<8x16xf32>
    %120 = vector.shape_cast %116 : vector<16x32xf32> to vector<16x1x32xf32>
    %121 = vector.shape_cast %44 : vector<8x32xf32> to vector<1x8x32xf32>
    %122 = vector.broadcast %120 : vector<16x1x32xf32> to vector<16x8x32xf32>
    %123 = vector.broadcast %121 : vector<1x8x32xf32> to vector<16x8x32xf32>
    %124 = arith.mulf %122, %123 : vector<16x8x32xf32>
    %cst_36 = arith.constant 0.000000e+00 : f32
    %125 = vector.broadcast %cst_36 : f32 to vector<16x8x32xf32>
    %126 = arith.subf %125, %124 : vector<16x8x32xf32>
    %127 = math.exp %126 : vector<16x8x32xf32>
    %128 = arith.mulf %116, %103 : vector<16x32xf32>
    %cst_37 = arith.constant 0.000000e+00 : f32
    %129 = vector.broadcast %cst_37 : f32 to vector<8x32xf32>
    %130 = vector.extract_strided_slice %127 {offsets = [0, 0, 0], sizes = [1, 8, 32], strides = [1, 1, 1]} : vector<16x8x32xf32> to vector<1x8x32xf32>
    %131 = vector.shape_cast %130 : vector<1x8x32xf32> to vector<8x32xf32>
    %132 = arith.mulf %131, %129 : vector<8x32xf32>
    %133 = vector.extract_strided_slice %118 {offsets = [0, 0], sizes = [8, 1], strides = [1, 1]} : vector<8x16xf32> to vector<8x1xf32>
    %134 = vector.extract_strided_slice %128 {offsets = [0, 0], sizes = [1, 32], strides = [1, 1]} : vector<16x32xf32> to vector<1x32xf32>
    %135 = vector.broadcast %133 : vector<8x1xf32> to vector<8x32xf32>
    %136 = vector.broadcast %134 : vector<1x32xf32> to vector<8x32xf32>
    %137 = arith.mulf %135, %136 : vector<8x32xf32>
    %138 = arith.addf %132, %137 : vector<8x32xf32>
    %139 = vector.extract_strided_slice %119 {offsets = [0, 0], sizes = [8, 1], strides = [1, 1]} : vector<8x16xf32> to vector<8x1xf32>
    %140 = vector.broadcast %139 : vector<8x1xf32> to vector<8x32xf32>
    %141 = arith.mulf %138, %140 : vector<8x32xf32>
    %cst_38 = arith.constant dense<0.000000e+00> : vector<32xf32>
    %142 = vector.multi_reduction <add>, %141, %cst_38 [0] : vector<8x32xf32> to vector<32xf32>
    %143 = vector.shape_cast %142 : vector<32xf32> to vector<1x32xf32>
    %144 = vector.extract_strided_slice %127 {offsets = [1, 0, 0], sizes = [1, 8, 32], strides = [1, 1, 1]} : vector<16x8x32xf32> to vector<1x8x32xf32>
    %145 = vector.shape_cast %144 : vector<1x8x32xf32> to vector<8x32xf32>
    %146 = arith.mulf %145, %138 : vector<8x32xf32>
    %147 = vector.extract_strided_slice %118 {offsets = [0, 1], sizes = [8, 1], strides = [1, 1]} : vector<8x16xf32> to vector<8x1xf32>
    %148 = vector.extract_strided_slice %128 {offsets = [1, 0], sizes = [1, 32], strides = [1, 1]} : vector<16x32xf32> to vector<1x32xf32>
    %149 = vector.broadcast %147 : vector<8x1xf32> to vector<8x32xf32>
    %150 = vector.broadcast %148 : vector<1x32xf32> to vector<8x32xf32>
    %151 = arith.mulf %149, %150 : vector<8x32xf32>
    %152 = arith.addf %146, %151 : vector<8x32xf32>
    %153 = vector.extract_strided_slice %119 {offsets = [0, 1], sizes = [8, 1], strides = [1, 1]} : vector<8x16xf32> to vector<8x1xf32>
    %154 = vector.broadcast %153 : vector<8x1xf32> to vector<8x32xf32>
    %155 = arith.mulf %152, %154 : vector<8x32xf32>
    %cst_39 = arith.constant dense<0.000000e+00> : vector<32xf32>
    %156 = vector.multi_reduction <add>, %155, %cst_39 [0] : vector<8x32xf32> to vector<32xf32>
    %157 = vector.shape_cast %156 : vector<32xf32> to vector<1x32xf32>
    %158 = vector.extract_strided_slice %127 {offsets = [2, 0, 0], sizes = [1, 8, 32], strides = [1, 1, 1]} : vector<16x8x32xf32> to vector<1x8x32xf32>
    %159 = vector.shape_cast %158 : vector<1x8x32xf32> to vector<8x32xf32>
    %160 = arith.mulf %159, %152 : vector<8x32xf32>
    %161 = vector.extract_strided_slice %118 {offsets = [0, 2], sizes = [8, 1], strides = [1, 1]} : vector<8x16xf32> to vector<8x1xf32>
    %162 = vector.extract_strided_slice %128 {offsets = [2, 0], sizes = [1, 32], strides = [1, 1]} : vector<16x32xf32> to vector<1x32xf32>
    %163 = vector.broadcast %161 : vector<8x1xf32> to vector<8x32xf32>
    %164 = vector.broadcast %162 : vector<1x32xf32> to vector<8x32xf32>
    %165 = arith.mulf %163, %164 : vector<8x32xf32>
    %166 = arith.addf %160, %165 : vector<8x32xf32>
    %167 = vector.extract_strided_slice %119 {offsets = [0, 2], sizes = [8, 1], strides = [1, 1]} : vector<8x16xf32> to vector<8x1xf32>
    %168 = vector.broadcast %167 : vector<8x1xf32> to vector<8x32xf32>
    %169 = arith.mulf %166, %168 : vector<8x32xf32>
    %cst_40 = arith.constant dense<0.000000e+00> : vector<32xf32>
    %170 = vector.multi_reduction <add>, %169, %cst_40 [0] : vector<8x32xf32> to vector<32xf32>
    %171 = vector.shape_cast %170 : vector<32xf32> to vector<1x32xf32>
    %172 = vector.extract_strided_slice %127 {offsets = [3, 0, 0], sizes = [1, 8, 32], strides = [1, 1, 1]} : vector<16x8x32xf32> to vector<1x8x32xf32>
    %173 = vector.shape_cast %172 : vector<1x8x32xf32> to vector<8x32xf32>
    %174 = arith.mulf %173, %166 : vector<8x32xf32>
    %175 = vector.extract_strided_slice %118 {offsets = [0, 3], sizes = [8, 1], strides = [1, 1]} : vector<8x16xf32> to vector<8x1xf32>
    %176 = vector.extract_strided_slice %128 {offsets = [3, 0], sizes = [1, 32], strides = [1, 1]} : vector<16x32xf32> to vector<1x32xf32>
    %177 = vector.broadcast %175 : vector<8x1xf32> to vector<8x32xf32>
    %178 = vector.broadcast %176 : vector<1x32xf32> to vector<8x32xf32>
    %179 = arith.mulf %177, %178 : vector<8x32xf32>
    %180 = arith.addf %174, %179 : vector<8x32xf32>
    %181 = vector.extract_strided_slice %119 {offsets = [0, 3], sizes = [8, 1], strides = [1, 1]} : vector<8x16xf32> to vector<8x1xf32>
    %182 = vector.broadcast %181 : vector<8x1xf32> to vector<8x32xf32>
    %183 = arith.mulf %180, %182 : vector<8x32xf32>
    %cst_41 = arith.constant dense<0.000000e+00> : vector<32xf32>
    %184 = vector.multi_reduction <add>, %183, %cst_41 [0] : vector<8x32xf32> to vector<32xf32>
    %185 = vector.shape_cast %184 : vector<32xf32> to vector<1x32xf32>
    %186 = vector.extract_strided_slice %127 {offsets = [4, 0, 0], sizes = [1, 8, 32], strides = [1, 1, 1]} : vector<16x8x32xf32> to vector<1x8x32xf32>
    %187 = vector.shape_cast %186 : vector<1x8x32xf32> to vector<8x32xf32>
    %188 = arith.mulf %187, %180 : vector<8x32xf32>
    %189 = vector.extract_strided_slice %118 {offsets = [0, 4], sizes = [8, 1], strides = [1, 1]} : vector<8x16xf32> to vector<8x1xf32>
    %190 = vector.extract_strided_slice %128 {offsets = [4, 0], sizes = [1, 32], strides = [1, 1]} : vector<16x32xf32> to vector<1x32xf32>
    %191 = vector.broadcast %189 : vector<8x1xf32> to vector<8x32xf32>
    %192 = vector.broadcast %190 : vector<1x32xf32> to vector<8x32xf32>
    %193 = arith.mulf %191, %192 : vector<8x32xf32>
    %194 = arith.addf %188, %193 : vector<8x32xf32>
    %195 = vector.extract_strided_slice %119 {offsets = [0, 4], sizes = [8, 1], strides = [1, 1]} : vector<8x16xf32> to vector<8x1xf32>
    %196 = vector.broadcast %195 : vector<8x1xf32> to vector<8x32xf32>
    %197 = arith.mulf %194, %196 : vector<8x32xf32>
    %cst_42 = arith.constant dense<0.000000e+00> : vector<32xf32>
    %198 = vector.multi_reduction <add>, %197, %cst_42 [0] : vector<8x32xf32> to vector<32xf32>
    %199 = vector.shape_cast %198 : vector<32xf32> to vector<1x32xf32>
    %200 = vector.extract_strided_slice %127 {offsets = [5, 0, 0], sizes = [1, 8, 32], strides = [1, 1, 1]} : vector<16x8x32xf32> to vector<1x8x32xf32>
    %201 = vector.shape_cast %200 : vector<1x8x32xf32> to vector<8x32xf32>
    %202 = arith.mulf %201, %194 : vector<8x32xf32>
    %203 = vector.extract_strided_slice %118 {offsets = [0, 5], sizes = [8, 1], strides = [1, 1]} : vector<8x16xf32> to vector<8x1xf32>
    %204 = vector.extract_strided_slice %128 {offsets = [5, 0], sizes = [1, 32], strides = [1, 1]} : vector<16x32xf32> to vector<1x32xf32>
    %205 = vector.broadcast %203 : vector<8x1xf32> to vector<8x32xf32>
    %206 = vector.broadcast %204 : vector<1x32xf32> to vector<8x32xf32>
    %207 = arith.mulf %205, %206 : vector<8x32xf32>
    %208 = arith.addf %202, %207 : vector<8x32xf32>
    %209 = vector.extract_strided_slice %119 {offsets = [0, 5], sizes = [8, 1], strides = [1, 1]} : vector<8x16xf32> to vector<8x1xf32>
    %210 = vector.broadcast %209 : vector<8x1xf32> to vector<8x32xf32>
    %211 = arith.mulf %208, %210 : vector<8x32xf32>
    %cst_43 = arith.constant dense<0.000000e+00> : vector<32xf32>
    %212 = vector.multi_reduction <add>, %211, %cst_43 [0] : vector<8x32xf32> to vector<32xf32>
    %213 = vector.shape_cast %212 : vector<32xf32> to vector<1x32xf32>
    %214 = vector.extract_strided_slice %127 {offsets = [6, 0, 0], sizes = [1, 8, 32], strides = [1, 1, 1]} : vector<16x8x32xf32> to vector<1x8x32xf32>
    %215 = vector.shape_cast %214 : vector<1x8x32xf32> to vector<8x32xf32>
    %216 = arith.mulf %215, %208 : vector<8x32xf32>
    %217 = vector.extract_strided_slice %118 {offsets = [0, 6], sizes = [8, 1], strides = [1, 1]} : vector<8x16xf32> to vector<8x1xf32>
    %218 = vector.extract_strided_slice %128 {offsets = [6, 0], sizes = [1, 32], strides = [1, 1]} : vector<16x32xf32> to vector<1x32xf32>
    %219 = vector.broadcast %217 : vector<8x1xf32> to vector<8x32xf32>
    %220 = vector.broadcast %218 : vector<1x32xf32> to vector<8x32xf32>
    %221 = arith.mulf %219, %220 : vector<8x32xf32>
    %222 = arith.addf %216, %221 : vector<8x32xf32>
    %223 = vector.extract_strided_slice %119 {offsets = [0, 6], sizes = [8, 1], strides = [1, 1]} : vector<8x16xf32> to vector<8x1xf32>
    %224 = vector.broadcast %223 : vector<8x1xf32> to vector<8x32xf32>
    %225 = arith.mulf %222, %224 : vector<8x32xf32>
    %cst_44 = arith.constant dense<0.000000e+00> : vector<32xf32>
    %226 = vector.multi_reduction <add>, %225, %cst_44 [0] : vector<8x32xf32> to vector<32xf32>
    %227 = vector.shape_cast %226 : vector<32xf32> to vector<1x32xf32>
    %228 = vector.extract_strided_slice %127 {offsets = [7, 0, 0], sizes = [1, 8, 32], strides = [1, 1, 1]} : vector<16x8x32xf32> to vector<1x8x32xf32>
    %229 = vector.shape_cast %228 : vector<1x8x32xf32> to vector<8x32xf32>
    %230 = arith.mulf %229, %222 : vector<8x32xf32>
    %231 = vector.extract_strided_slice %118 {offsets = [0, 7], sizes = [8, 1], strides = [1, 1]} : vector<8x16xf32> to vector<8x1xf32>
    %232 = vector.extract_strided_slice %128 {offsets = [7, 0], sizes = [1, 32], strides = [1, 1]} : vector<16x32xf32> to vector<1x32xf32>
    %233 = vector.broadcast %231 : vector<8x1xf32> to vector<8x32xf32>
    %234 = vector.broadcast %232 : vector<1x32xf32> to vector<8x32xf32>
    %235 = arith.mulf %233, %234 : vector<8x32xf32>
    %236 = arith.addf %230, %235 : vector<8x32xf32>
    %237 = vector.extract_strided_slice %119 {offsets = [0, 7], sizes = [8, 1], strides = [1, 1]} : vector<8x16xf32> to vector<8x1xf32>
    %238 = vector.broadcast %237 : vector<8x1xf32> to vector<8x32xf32>
    %239 = arith.mulf %236, %238 : vector<8x32xf32>
    %cst_45 = arith.constant dense<0.000000e+00> : vector<32xf32>
    %240 = vector.multi_reduction <add>, %239, %cst_45 [0] : vector<8x32xf32> to vector<32xf32>
    %241 = vector.shape_cast %240 : vector<32xf32> to vector<1x32xf32>
    %cst_46 = arith.constant 0.000000e+00 : f32
    %242 = vector.broadcast %cst_46 : f32 to vector<8x32xf32>
    %243 = vector.extract_strided_slice %127 {offsets = [8, 0, 0], sizes = [1, 8, 32], strides = [1, 1, 1]} : vector<16x8x32xf32> to vector<1x8x32xf32>
    %244 = vector.shape_cast %243 : vector<1x8x32xf32> to vector<8x32xf32>
    %245 = arith.mulf %244, %242 : vector<8x32xf32>
    %246 = vector.extract_strided_slice %118 {offsets = [0, 8], sizes = [8, 1], strides = [1, 1]} : vector<8x16xf32> to vector<8x1xf32>
    %247 = vector.extract_strided_slice %128 {offsets = [8, 0], sizes = [1, 32], strides = [1, 1]} : vector<16x32xf32> to vector<1x32xf32>
    %248 = vector.broadcast %246 : vector<8x1xf32> to vector<8x32xf32>
    %249 = vector.broadcast %247 : vector<1x32xf32> to vector<8x32xf32>
    %250 = arith.mulf %248, %249 : vector<8x32xf32>
    %251 = arith.addf %245, %250 : vector<8x32xf32>
    %252 = vector.extract_strided_slice %119 {offsets = [0, 8], sizes = [8, 1], strides = [1, 1]} : vector<8x16xf32> to vector<8x1xf32>
    %253 = vector.broadcast %252 : vector<8x1xf32> to vector<8x32xf32>
    %254 = arith.mulf %251, %253 : vector<8x32xf32>
    %cst_47 = arith.constant dense<0.000000e+00> : vector<32xf32>
    %255 = vector.multi_reduction <add>, %254, %cst_47 [0] : vector<8x32xf32> to vector<32xf32>
    %256 = vector.shape_cast %255 : vector<32xf32> to vector<1x32xf32>
    %257 = vector.extract_strided_slice %127 {offsets = [9, 0, 0], sizes = [1, 8, 32], strides = [1, 1, 1]} : vector<16x8x32xf32> to vector<1x8x32xf32>
    %258 = vector.shape_cast %257 : vector<1x8x32xf32> to vector<8x32xf32>
    %259 = arith.mulf %258, %251 : vector<8x32xf32>
    %260 = vector.extract_strided_slice %118 {offsets = [0, 9], sizes = [8, 1], strides = [1, 1]} : vector<8x16xf32> to vector<8x1xf32>
    %261 = vector.extract_strided_slice %128 {offsets = [9, 0], sizes = [1, 32], strides = [1, 1]} : vector<16x32xf32> to vector<1x32xf32>
    %262 = vector.broadcast %260 : vector<8x1xf32> to vector<8x32xf32>
    %263 = vector.broadcast %261 : vector<1x32xf32> to vector<8x32xf32>
    %264 = arith.mulf %262, %263 : vector<8x32xf32>
    %265 = arith.addf %259, %264 : vector<8x32xf32>
    %266 = vector.extract_strided_slice %119 {offsets = [0, 9], sizes = [8, 1], strides = [1, 1]} : vector<8x16xf32> to vector<8x1xf32>
    %267 = vector.broadcast %266 : vector<8x1xf32> to vector<8x32xf32>
    %268 = arith.mulf %265, %267 : vector<8x32xf32>
    %cst_48 = arith.constant dense<0.000000e+00> : vector<32xf32>
    %269 = vector.multi_reduction <add>, %268, %cst_48 [0] : vector<8x32xf32> to vector<32xf32>
    %270 = vector.shape_cast %269 : vector<32xf32> to vector<1x32xf32>
    %271 = vector.extract_strided_slice %127 {offsets = [10, 0, 0], sizes = [1, 8, 32], strides = [1, 1, 1]} : vector<16x8x32xf32> to vector<1x8x32xf32>
    %272 = vector.shape_cast %271 : vector<1x8x32xf32> to vector<8x32xf32>
    %273 = arith.mulf %272, %265 : vector<8x32xf32>
    %274 = vector.extract_strided_slice %118 {offsets = [0, 10], sizes = [8, 1], strides = [1, 1]} : vector<8x16xf32> to vector<8x1xf32>
    %275 = vector.extract_strided_slice %128 {offsets = [10, 0], sizes = [1, 32], strides = [1, 1]} : vector<16x32xf32> to vector<1x32xf32>
    %276 = vector.broadcast %274 : vector<8x1xf32> to vector<8x32xf32>
    %277 = vector.broadcast %275 : vector<1x32xf32> to vector<8x32xf32>
    %278 = arith.mulf %276, %277 : vector<8x32xf32>
    %279 = arith.addf %273, %278 : vector<8x32xf32>
    %280 = vector.extract_strided_slice %119 {offsets = [0, 10], sizes = [8, 1], strides = [1, 1]} : vector<8x16xf32> to vector<8x1xf32>
    %281 = vector.broadcast %280 : vector<8x1xf32> to vector<8x32xf32>
    %282 = arith.mulf %279, %281 : vector<8x32xf32>
    %cst_49 = arith.constant dense<0.000000e+00> : vector<32xf32>
    %283 = vector.multi_reduction <add>, %282, %cst_49 [0] : vector<8x32xf32> to vector<32xf32>
    %284 = vector.shape_cast %283 : vector<32xf32> to vector<1x32xf32>
    %285 = vector.extract_strided_slice %127 {offsets = [11, 0, 0], sizes = [1, 8, 32], strides = [1, 1, 1]} : vector<16x8x32xf32> to vector<1x8x32xf32>
    %286 = vector.shape_cast %285 : vector<1x8x32xf32> to vector<8x32xf32>
    %287 = arith.mulf %286, %279 : vector<8x32xf32>
    %288 = vector.extract_strided_slice %118 {offsets = [0, 11], sizes = [8, 1], strides = [1, 1]} : vector<8x16xf32> to vector<8x1xf32>
    %289 = vector.extract_strided_slice %128 {offsets = [11, 0], sizes = [1, 32], strides = [1, 1]} : vector<16x32xf32> to vector<1x32xf32>
    %290 = vector.broadcast %288 : vector<8x1xf32> to vector<8x32xf32>
    %291 = vector.broadcast %289 : vector<1x32xf32> to vector<8x32xf32>
    %292 = arith.mulf %290, %291 : vector<8x32xf32>
    %293 = arith.addf %287, %292 : vector<8x32xf32>
    %294 = vector.extract_strided_slice %119 {offsets = [0, 11], sizes = [8, 1], strides = [1, 1]} : vector<8x16xf32> to vector<8x1xf32>
    %295 = vector.broadcast %294 : vector<8x1xf32> to vector<8x32xf32>
    %296 = arith.mulf %293, %295 : vector<8x32xf32>
    %cst_50 = arith.constant dense<0.000000e+00> : vector<32xf32>
    %297 = vector.multi_reduction <add>, %296, %cst_50 [0] : vector<8x32xf32> to vector<32xf32>
    %298 = vector.shape_cast %297 : vector<32xf32> to vector<1x32xf32>
    %299 = vector.extract_strided_slice %127 {offsets = [12, 0, 0], sizes = [1, 8, 32], strides = [1, 1, 1]} : vector<16x8x32xf32> to vector<1x8x32xf32>
    %300 = vector.shape_cast %299 : vector<1x8x32xf32> to vector<8x32xf32>
    %301 = arith.mulf %300, %293 : vector<8x32xf32>
    %302 = vector.extract_strided_slice %118 {offsets = [0, 12], sizes = [8, 1], strides = [1, 1]} : vector<8x16xf32> to vector<8x1xf32>
    %303 = vector.extract_strided_slice %128 {offsets = [12, 0], sizes = [1, 32], strides = [1, 1]} : vector<16x32xf32> to vector<1x32xf32>
    %304 = vector.broadcast %302 : vector<8x1xf32> to vector<8x32xf32>
    %305 = vector.broadcast %303 : vector<1x32xf32> to vector<8x32xf32>
    %306 = arith.mulf %304, %305 : vector<8x32xf32>
    %307 = arith.addf %301, %306 : vector<8x32xf32>
    %308 = vector.extract_strided_slice %119 {offsets = [0, 12], sizes = [8, 1], strides = [1, 1]} : vector<8x16xf32> to vector<8x1xf32>
    %309 = vector.broadcast %308 : vector<8x1xf32> to vector<8x32xf32>
    %310 = arith.mulf %307, %309 : vector<8x32xf32>
    %cst_51 = arith.constant dense<0.000000e+00> : vector<32xf32>
    %311 = vector.multi_reduction <add>, %310, %cst_51 [0] : vector<8x32xf32> to vector<32xf32>
    %312 = vector.shape_cast %311 : vector<32xf32> to vector<1x32xf32>
    %313 = vector.extract_strided_slice %127 {offsets = [13, 0, 0], sizes = [1, 8, 32], strides = [1, 1, 1]} : vector<16x8x32xf32> to vector<1x8x32xf32>
    %314 = vector.shape_cast %313 : vector<1x8x32xf32> to vector<8x32xf32>
    %315 = arith.mulf %314, %307 : vector<8x32xf32>
    %316 = vector.extract_strided_slice %118 {offsets = [0, 13], sizes = [8, 1], strides = [1, 1]} : vector<8x16xf32> to vector<8x1xf32>
    %317 = vector.extract_strided_slice %128 {offsets = [13, 0], sizes = [1, 32], strides = [1, 1]} : vector<16x32xf32> to vector<1x32xf32>
    %318 = vector.broadcast %316 : vector<8x1xf32> to vector<8x32xf32>
    %319 = vector.broadcast %317 : vector<1x32xf32> to vector<8x32xf32>
    %320 = arith.mulf %318, %319 : vector<8x32xf32>
    %321 = arith.addf %315, %320 : vector<8x32xf32>
    %322 = vector.extract_strided_slice %119 {offsets = [0, 13], sizes = [8, 1], strides = [1, 1]} : vector<8x16xf32> to vector<8x1xf32>
    %323 = vector.broadcast %322 : vector<8x1xf32> to vector<8x32xf32>
    %324 = arith.mulf %321, %323 : vector<8x32xf32>
    %cst_52 = arith.constant dense<0.000000e+00> : vector<32xf32>
    %325 = vector.multi_reduction <add>, %324, %cst_52 [0] : vector<8x32xf32> to vector<32xf32>
    %326 = vector.shape_cast %325 : vector<32xf32> to vector<1x32xf32>
    %327 = vector.extract_strided_slice %127 {offsets = [14, 0, 0], sizes = [1, 8, 32], strides = [1, 1, 1]} : vector<16x8x32xf32> to vector<1x8x32xf32>
    %328 = vector.shape_cast %327 : vector<1x8x32xf32> to vector<8x32xf32>
    %329 = arith.mulf %328, %321 : vector<8x32xf32>
    %330 = vector.extract_strided_slice %118 {offsets = [0, 14], sizes = [8, 1], strides = [1, 1]} : vector<8x16xf32> to vector<8x1xf32>
    %331 = vector.extract_strided_slice %128 {offsets = [14, 0], sizes = [1, 32], strides = [1, 1]} : vector<16x32xf32> to vector<1x32xf32>
    %332 = vector.broadcast %330 : vector<8x1xf32> to vector<8x32xf32>
    %333 = vector.broadcast %331 : vector<1x32xf32> to vector<8x32xf32>
    %334 = arith.mulf %332, %333 : vector<8x32xf32>
    %335 = arith.addf %329, %334 : vector<8x32xf32>
    %336 = vector.extract_strided_slice %119 {offsets = [0, 14], sizes = [8, 1], strides = [1, 1]} : vector<8x16xf32> to vector<8x1xf32>
    %337 = vector.broadcast %336 : vector<8x1xf32> to vector<8x32xf32>
    %338 = arith.mulf %335, %337 : vector<8x32xf32>
    %cst_53 = arith.constant dense<0.000000e+00> : vector<32xf32>
    %339 = vector.multi_reduction <add>, %338, %cst_53 [0] : vector<8x32xf32> to vector<32xf32>
    %340 = vector.shape_cast %339 : vector<32xf32> to vector<1x32xf32>
    %341 = vector.extract_strided_slice %127 {offsets = [15, 0, 0], sizes = [1, 8, 32], strides = [1, 1, 1]} : vector<16x8x32xf32> to vector<1x8x32xf32>
    %342 = vector.shape_cast %341 : vector<1x8x32xf32> to vector<8x32xf32>
    %343 = arith.mulf %342, %335 : vector<8x32xf32>
    %344 = vector.extract_strided_slice %118 {offsets = [0, 15], sizes = [8, 1], strides = [1, 1]} : vector<8x16xf32> to vector<8x1xf32>
    %345 = vector.extract_strided_slice %128 {offsets = [15, 0], sizes = [1, 32], strides = [1, 1]} : vector<16x32xf32> to vector<1x32xf32>
    %346 = vector.broadcast %344 : vector<8x1xf32> to vector<8x32xf32>
    %347 = vector.broadcast %345 : vector<1x32xf32> to vector<8x32xf32>
    %348 = arith.mulf %346, %347 : vector<8x32xf32>
    %349 = arith.addf %343, %348 : vector<8x32xf32>
    %350 = vector.extract_strided_slice %119 {offsets = [0, 15], sizes = [8, 1], strides = [1, 1]} : vector<8x16xf32> to vector<8x1xf32>
    %351 = vector.broadcast %350 : vector<8x1xf32> to vector<8x32xf32>
    %352 = arith.mulf %349, %351 : vector<8x32xf32>
    %cst_54 = arith.constant dense<0.000000e+00> : vector<32xf32>
    %353 = vector.multi_reduction <add>, %352, %cst_54 [0] : vector<8x32xf32> to vector<32xf32>
    %354 = vector.shape_cast %353 : vector<32xf32> to vector<1x32xf32>
    %355 = tpu.concatenate %143, %157, %171, %185, %199, %213, %227, %241, %256, %270, %284, %298, %312, %326, %340, %354 in 0 : vector<1x32xf32>, vector<1x32xf32>, vector<1x32xf32>, vector<1x32xf32>, vector<1x32xf32>, vector<1x32xf32>, vector<1x32xf32>, vector<1x32xf32>, vector<1x32xf32>, vector<1x32xf32>, vector<1x32xf32>, vector<1x32xf32>, vector<1x32xf32>, vector<1x32xf32>, vector<1x32xf32>, vector<1x32xf32> -> vector<16x32xf32>
    %356 = vector.broadcast %43 : vector<1x32xf32> to vector<16x32xf32>
    %357 = arith.mulf %356, %103 : vector<16x32xf32>
    %358 = arith.addf %355, %357 : vector<16x32xf32>
    %359 = arith.mulf %358, %54 : vector<16x32xf32>
    %cst_55 = arith.constant dense<0.000000e+00> : vector<16x32xf32>
    %360 = tpu.matmul %359, %39, %cst_55 {dimension_numbers = #tpu.dot_dimension_numbers<[1], [0], [0], [1], [0, 0, 1, 1], [], []>} : vector<16x32xf32>, vector<32x32xf32>, vector<16x32xf32> -> vector<16x32xf32>
    %361 = arith.addf %33, %360 : vector<16x32xf32>
    %362 = vector.extract_strided_slice %3 {offsets = [1, 0, 0], sizes = [1, 32, 128], strides = [1, 1, 1]} : vector<2x32x128xf32> to vector<1x32x128xf32>
    %363 = vector.shape_cast %362 : vector<1x32x128xf32> to vector<32x128xf32>
    %364 = vector.extract_strided_slice %4 {offsets = [1, 0, 0], sizes = [1, 29, 32], strides = [1, 1, 1]} : vector<2x29x32xf32> to vector<1x29x32xf32>
    %365 = vector.shape_cast %364 : vector<1x29x32xf32> to vector<29x32xf32>
    %366 = vector.extract_strided_slice %363 {offsets = [0, 0], sizes = [32, 64], strides = [1, 1]} : vector<32x128xf32> to vector<32x64xf32>
    %367 = vector.extract_strided_slice %363 {offsets = [0, 64], sizes = [32, 32], strides = [1, 1]} : vector<32x128xf32> to vector<32x32xf32>
    %368 = vector.extract_strided_slice %363 {offsets = [0, 96], sizes = [32, 32], strides = [1, 1]} : vector<32x128xf32> to vector<32x32xf32>
    %369 = vector.extract_strided_slice %365 {offsets = [0, 0], sizes = [3, 32], strides = [1, 1]} : vector<29x32xf32> to vector<3x32xf32>
    %370 = vector.extract_strided_slice %365 {offsets = [3, 0], sizes = [1, 32], strides = [1, 1]} : vector<29x32xf32> to vector<1x32xf32>
    %371 = vector.extract_strided_slice %365 {offsets = [4, 0], sizes = [1, 32], strides = [1, 1]} : vector<29x32xf32> to vector<1x32xf32>
    %372 = vector.extract_strided_slice %365 {offsets = [5, 0], sizes = [8, 32], strides = [1, 1]} : vector<29x32xf32> to vector<8x32xf32>
    %373 = vector.extract_strided_slice %365 {offsets = [13, 0], sizes = [16, 32], strides = [1, 1]} : vector<29x32xf32> to vector<16x32xf32>
    %cst_56 = arith.constant dense<0.000000e+00> : vector<16x64xf32>
    %374 = tpu.matmul %361, %366, %cst_56 {dimension_numbers = #tpu.dot_dimension_numbers<[1], [0], [0], [1], [0, 0, 1, 1], [], []>} : vector<16x32xf32>, vector<32x64xf32>, vector<16x64xf32> -> vector<16x64xf32>
    %375 = vector.extract_strided_slice %374 {offsets = [0, 0], sizes = [16, 32], strides = [1, 1]} : vector<16x64xf32> to vector<16x32xf32>
    %376 = vector.extract_strided_slice %374 {offsets = [0, 32], sizes = [16, 32], strides = [1, 1]} : vector<16x64xf32> to vector<16x32xf32>
    %cst_57 = arith.constant 0.000000e+00 : f32
    %377 = vector.broadcast %cst_57 : f32 to vector<16x32xf32>
    %378 = arith.subf %377, %376 : vector<16x32xf32>
    %379 = math.exp %378 : vector<16x32xf32>
    %cst_58 = arith.constant 1.000000e+00 : f32
    %380 = vector.broadcast %cst_58 : f32 to vector<16x32xf32>
    %381 = arith.addf %380, %379 : vector<16x32xf32>
    %382 = arith.divf %376, %381 : vector<16x32xf32>
    %383 = vector.extract_strided_slice %375 {offsets = [0, 0], sizes = [8, 32], strides = [1, 1]} : vector<16x32xf32> to vector<8x32xf32>
    %cst_59 = arith.constant 0.000000e+00 : f32
    %384 = vector.broadcast %cst_59 : f32 to vector<2x32xf32>
    %385 = tpu.concatenate %384, %383 in 0 : vector<2x32xf32>, vector<8x32xf32> -> vector<10x32xf32>
    %cst_60 = arith.constant 0.000000e+00 : f32
    %386 = vector.broadcast %cst_60 : f32 to vector<8x32xf32>
    %387 = vector.broadcast %370 : vector<1x32xf32> to vector<8x32xf32>
    %388 = arith.addf %386, %387 : vector<8x32xf32>
    %389 = vector.extract_strided_slice %385 {offsets = [0, 0], sizes = [8, 32], strides = [1, 1]} : vector<10x32xf32> to vector<8x32xf32>
    %390 = vector.extract_strided_slice %369 {offsets = [0, 0], sizes = [1, 32], strides = [1, 1]} : vector<3x32xf32> to vector<1x32xf32>
    %391 = vector.broadcast %390 : vector<1x32xf32> to vector<8x32xf32>
    %392 = arith.mulf %389, %391 : vector<8x32xf32>
    %393 = arith.addf %388, %392 : vector<8x32xf32>
    %394 = vector.extract_strided_slice %385 {offsets = [1, 0], sizes = [8, 32], strides = [1, 1]} : vector<10x32xf32> to vector<8x32xf32>
    %395 = vector.extract_strided_slice %369 {offsets = [1, 0], sizes = [1, 32], strides = [1, 1]} : vector<3x32xf32> to vector<1x32xf32>
    %396 = vector.broadcast %395 : vector<1x32xf32> to vector<8x32xf32>
    %397 = arith.mulf %394, %396 : vector<8x32xf32>
    %398 = arith.addf %393, %397 : vector<8x32xf32>
    %399 = vector.extract_strided_slice %385 {offsets = [2, 0], sizes = [8, 32], strides = [1, 1]} : vector<10x32xf32> to vector<8x32xf32>
    %400 = vector.extract_strided_slice %369 {offsets = [2, 0], sizes = [1, 32], strides = [1, 1]} : vector<3x32xf32> to vector<1x32xf32>
    %401 = vector.broadcast %400 : vector<1x32xf32> to vector<8x32xf32>
    %402 = arith.mulf %399, %401 : vector<8x32xf32>
    %403 = arith.addf %398, %402 : vector<8x32xf32>
    %404 = vector.extract_strided_slice %375 {offsets = [8, 0], sizes = [8, 32], strides = [1, 1]} : vector<16x32xf32> to vector<8x32xf32>
    %cst_61 = arith.constant 0.000000e+00 : f32
    %405 = vector.broadcast %cst_61 : f32 to vector<2x32xf32>
    %406 = tpu.concatenate %405, %404 in 0 : vector<2x32xf32>, vector<8x32xf32> -> vector<10x32xf32>
    %cst_62 = arith.constant 0.000000e+00 : f32
    %407 = vector.broadcast %cst_62 : f32 to vector<8x32xf32>
    %408 = vector.broadcast %370 : vector<1x32xf32> to vector<8x32xf32>
    %409 = arith.addf %407, %408 : vector<8x32xf32>
    %410 = vector.extract_strided_slice %406 {offsets = [0, 0], sizes = [8, 32], strides = [1, 1]} : vector<10x32xf32> to vector<8x32xf32>
    %411 = vector.extract_strided_slice %369 {offsets = [0, 0], sizes = [1, 32], strides = [1, 1]} : vector<3x32xf32> to vector<1x32xf32>
    %412 = vector.broadcast %411 : vector<1x32xf32> to vector<8x32xf32>
    %413 = arith.mulf %410, %412 : vector<8x32xf32>
    %414 = arith.addf %409, %413 : vector<8x32xf32>
    %415 = vector.extract_strided_slice %406 {offsets = [1, 0], sizes = [8, 32], strides = [1, 1]} : vector<10x32xf32> to vector<8x32xf32>
    %416 = vector.extract_strided_slice %369 {offsets = [1, 0], sizes = [1, 32], strides = [1, 1]} : vector<3x32xf32> to vector<1x32xf32>
    %417 = vector.broadcast %416 : vector<1x32xf32> to vector<8x32xf32>
    %418 = arith.mulf %415, %417 : vector<8x32xf32>
    %419 = arith.addf %414, %418 : vector<8x32xf32>
    %420 = vector.extract_strided_slice %406 {offsets = [2, 0], sizes = [8, 32], strides = [1, 1]} : vector<10x32xf32> to vector<8x32xf32>
    %421 = vector.extract_strided_slice %369 {offsets = [2, 0], sizes = [1, 32], strides = [1, 1]} : vector<3x32xf32> to vector<1x32xf32>
    %422 = vector.broadcast %421 : vector<1x32xf32> to vector<8x32xf32>
    %423 = arith.mulf %420, %422 : vector<8x32xf32>
    %424 = arith.addf %419, %423 : vector<8x32xf32>
    %425 = tpu.concatenate %403, %424 in 0 : vector<8x32xf32>, vector<8x32xf32> -> vector<16x32xf32>
    %cst_63 = arith.constant 0.000000e+00 : f32
    %426 = vector.broadcast %cst_63 : f32 to vector<16x32xf32>
    %427 = arith.subf %426, %425 : vector<16x32xf32>
    %428 = math.exp %427 : vector<16x32xf32>
    %cst_64 = arith.constant 1.000000e+00 : f32
    %429 = vector.broadcast %cst_64 : f32 to vector<16x32xf32>
    %430 = arith.addf %429, %428 : vector<16x32xf32>
    %431 = arith.divf %425, %430 : vector<16x32xf32>
    %cst_65 = arith.constant dense<0.000000e+00> : vector<16x32xf32>
    %432 = tpu.matmul %431, %368, %cst_65 {dimension_numbers = #tpu.dot_dimension_numbers<[1], [0], [0], [1], [0, 0, 1, 1], [], []>} : vector<16x32xf32>, vector<32x32xf32>, vector<16x32xf32> -> vector<16x32xf32>
    %433 = vector.broadcast %371 : vector<1x32xf32> to vector<16x32xf32>
    %434 = arith.addf %432, %433 : vector<16x32xf32>
    %cst_66 = arith.constant 0.000000e+00 : f32
    %435 = vector.broadcast %cst_66 : f32 to vector<16x32xf32>
    %436 = arith.maximumf %434, %435 : vector<16x32xf32>
    %437 = math.absf %434 : vector<16x32xf32>
    %cst_67 = arith.constant 0.000000e+00 : f32
    %438 = vector.broadcast %cst_67 : f32 to vector<16x32xf32>
    %439 = arith.subf %438, %437 : vector<16x32xf32>
    %440 = math.exp %439 : vector<16x32xf32>
    %cst_68 = arith.constant 1.000000e+00 : f32
    %441 = vector.broadcast %cst_68 : f32 to vector<16x32xf32>
    %442 = arith.addf %441, %440 : vector<16x32xf32>
    %443 = math.log %442 : vector<16x32xf32>
    %444 = arith.addf %436, %443 : vector<16x32xf32>
    %cst_69 = arith.constant dense<0.000000e+00> : vector<16x16xf32>
    %445 = tpu.matmul %373, %431, %cst_69 {dimension_numbers = #tpu.dot_dimension_numbers<[1], [1], [0], [0], [0, 0, 1, 0], [], []>} : vector<16x32xf32>, vector<16x32xf32>, vector<16x16xf32> -> vector<16x16xf32>
    %446 = vector.extract_strided_slice %445 {offsets = [0, 0], sizes = [8, 16], strides = [1, 1]} : vector<16x16xf32> to vector<8x16xf32>
    %447 = vector.extract_strided_slice %445 {offsets = [8, 0], sizes = [8, 16], strides = [1, 1]} : vector<16x16xf32> to vector<8x16xf32>
    %448 = vector.shape_cast %444 : vector<16x32xf32> to vector<16x1x32xf32>
    %449 = vector.shape_cast %372 : vector<8x32xf32> to vector<1x8x32xf32>
    %450 = vector.broadcast %448 : vector<16x1x32xf32> to vector<16x8x32xf32>
    %451 = vector.broadcast %449 : vector<1x8x32xf32> to vector<16x8x32xf32>
    %452 = arith.mulf %450, %451 : vector<16x8x32xf32>
    %cst_70 = arith.constant 0.000000e+00 : f32
    %453 = vector.broadcast %cst_70 : f32 to vector<16x8x32xf32>
    %454 = arith.subf %453, %452 : vector<16x8x32xf32>
    %455 = math.exp %454 : vector<16x8x32xf32>
    %456 = arith.mulf %444, %431 : vector<16x32xf32>
    %cst_71 = arith.constant 0.000000e+00 : f32
    %457 = vector.broadcast %cst_71 : f32 to vector<8x32xf32>
    %458 = vector.extract_strided_slice %455 {offsets = [0, 0, 0], sizes = [1, 8, 32], strides = [1, 1, 1]} : vector<16x8x32xf32> to vector<1x8x32xf32>
    %459 = vector.shape_cast %458 : vector<1x8x32xf32> to vector<8x32xf32>
    %460 = arith.mulf %459, %457 : vector<8x32xf32>
    %461 = vector.extract_strided_slice %446 {offsets = [0, 0], sizes = [8, 1], strides = [1, 1]} : vector<8x16xf32> to vector<8x1xf32>
    %462 = vector.extract_strided_slice %456 {offsets = [0, 0], sizes = [1, 32], strides = [1, 1]} : vector<16x32xf32> to vector<1x32xf32>
    %463 = vector.broadcast %461 : vector<8x1xf32> to vector<8x32xf32>
    %464 = vector.broadcast %462 : vector<1x32xf32> to vector<8x32xf32>
    %465 = arith.mulf %463, %464 : vector<8x32xf32>
    %466 = arith.addf %460, %465 : vector<8x32xf32>
    %467 = vector.extract_strided_slice %447 {offsets = [0, 0], sizes = [8, 1], strides = [1, 1]} : vector<8x16xf32> to vector<8x1xf32>
    %468 = vector.broadcast %467 : vector<8x1xf32> to vector<8x32xf32>
    %469 = arith.mulf %466, %468 : vector<8x32xf32>
    %cst_72 = arith.constant dense<0.000000e+00> : vector<32xf32>
    %470 = vector.multi_reduction <add>, %469, %cst_72 [0] : vector<8x32xf32> to vector<32xf32>
    %471 = vector.shape_cast %470 : vector<32xf32> to vector<1x32xf32>
    %472 = vector.extract_strided_slice %455 {offsets = [1, 0, 0], sizes = [1, 8, 32], strides = [1, 1, 1]} : vector<16x8x32xf32> to vector<1x8x32xf32>
    %473 = vector.shape_cast %472 : vector<1x8x32xf32> to vector<8x32xf32>
    %474 = arith.mulf %473, %466 : vector<8x32xf32>
    %475 = vector.extract_strided_slice %446 {offsets = [0, 1], sizes = [8, 1], strides = [1, 1]} : vector<8x16xf32> to vector<8x1xf32>
    %476 = vector.extract_strided_slice %456 {offsets = [1, 0], sizes = [1, 32], strides = [1, 1]} : vector<16x32xf32> to vector<1x32xf32>
    %477 = vector.broadcast %475 : vector<8x1xf32> to vector<8x32xf32>
    %478 = vector.broadcast %476 : vector<1x32xf32> to vector<8x32xf32>
    %479 = arith.mulf %477, %478 : vector<8x32xf32>
    %480 = arith.addf %474, %479 : vector<8x32xf32>
    %481 = vector.extract_strided_slice %447 {offsets = [0, 1], sizes = [8, 1], strides = [1, 1]} : vector<8x16xf32> to vector<8x1xf32>
    %482 = vector.broadcast %481 : vector<8x1xf32> to vector<8x32xf32>
    %483 = arith.mulf %480, %482 : vector<8x32xf32>
    %cst_73 = arith.constant dense<0.000000e+00> : vector<32xf32>
    %484 = vector.multi_reduction <add>, %483, %cst_73 [0] : vector<8x32xf32> to vector<32xf32>
    %485 = vector.shape_cast %484 : vector<32xf32> to vector<1x32xf32>
    %486 = vector.extract_strided_slice %455 {offsets = [2, 0, 0], sizes = [1, 8, 32], strides = [1, 1, 1]} : vector<16x8x32xf32> to vector<1x8x32xf32>
    %487 = vector.shape_cast %486 : vector<1x8x32xf32> to vector<8x32xf32>
    %488 = arith.mulf %487, %480 : vector<8x32xf32>
    %489 = vector.extract_strided_slice %446 {offsets = [0, 2], sizes = [8, 1], strides = [1, 1]} : vector<8x16xf32> to vector<8x1xf32>
    %490 = vector.extract_strided_slice %456 {offsets = [2, 0], sizes = [1, 32], strides = [1, 1]} : vector<16x32xf32> to vector<1x32xf32>
    %491 = vector.broadcast %489 : vector<8x1xf32> to vector<8x32xf32>
    %492 = vector.broadcast %490 : vector<1x32xf32> to vector<8x32xf32>
    %493 = arith.mulf %491, %492 : vector<8x32xf32>
    %494 = arith.addf %488, %493 : vector<8x32xf32>
    %495 = vector.extract_strided_slice %447 {offsets = [0, 2], sizes = [8, 1], strides = [1, 1]} : vector<8x16xf32> to vector<8x1xf32>
    %496 = vector.broadcast %495 : vector<8x1xf32> to vector<8x32xf32>
    %497 = arith.mulf %494, %496 : vector<8x32xf32>
    %cst_74 = arith.constant dense<0.000000e+00> : vector<32xf32>
    %498 = vector.multi_reduction <add>, %497, %cst_74 [0] : vector<8x32xf32> to vector<32xf32>
    %499 = vector.shape_cast %498 : vector<32xf32> to vector<1x32xf32>
    %500 = vector.extract_strided_slice %455 {offsets = [3, 0, 0], sizes = [1, 8, 32], strides = [1, 1, 1]} : vector<16x8x32xf32> to vector<1x8x32xf32>
    %501 = vector.shape_cast %500 : vector<1x8x32xf32> to vector<8x32xf32>
    %502 = arith.mulf %501, %494 : vector<8x32xf32>
    %503 = vector.extract_strided_slice %446 {offsets = [0, 3], sizes = [8, 1], strides = [1, 1]} : vector<8x16xf32> to vector<8x1xf32>
    %504 = vector.extract_strided_slice %456 {offsets = [3, 0], sizes = [1, 32], strides = [1, 1]} : vector<16x32xf32> to vector<1x32xf32>
    %505 = vector.broadcast %503 : vector<8x1xf32> to vector<8x32xf32>
    %506 = vector.broadcast %504 : vector<1x32xf32> to vector<8x32xf32>
    %507 = arith.mulf %505, %506 : vector<8x32xf32>
    %508 = arith.addf %502, %507 : vector<8x32xf32>
    %509 = vector.extract_strided_slice %447 {offsets = [0, 3], sizes = [8, 1], strides = [1, 1]} : vector<8x16xf32> to vector<8x1xf32>
    %510 = vector.broadcast %509 : vector<8x1xf32> to vector<8x32xf32>
    %511 = arith.mulf %508, %510 : vector<8x32xf32>
    %cst_75 = arith.constant dense<0.000000e+00> : vector<32xf32>
    %512 = vector.multi_reduction <add>, %511, %cst_75 [0] : vector<8x32xf32> to vector<32xf32>
    %513 = vector.shape_cast %512 : vector<32xf32> to vector<1x32xf32>
    %514 = vector.extract_strided_slice %455 {offsets = [4, 0, 0], sizes = [1, 8, 32], strides = [1, 1, 1]} : vector<16x8x32xf32> to vector<1x8x32xf32>
    %515 = vector.shape_cast %514 : vector<1x8x32xf32> to vector<8x32xf32>
    %516 = arith.mulf %515, %508 : vector<8x32xf32>
    %517 = vector.extract_strided_slice %446 {offsets = [0, 4], sizes = [8, 1], strides = [1, 1]} : vector<8x16xf32> to vector<8x1xf32>
    %518 = vector.extract_strided_slice %456 {offsets = [4, 0], sizes = [1, 32], strides = [1, 1]} : vector<16x32xf32> to vector<1x32xf32>
    %519 = vector.broadcast %517 : vector<8x1xf32> to vector<8x32xf32>
    %520 = vector.broadcast %518 : vector<1x32xf32> to vector<8x32xf32>
    %521 = arith.mulf %519, %520 : vector<8x32xf32>
    %522 = arith.addf %516, %521 : vector<8x32xf32>
    %523 = vector.extract_strided_slice %447 {offsets = [0, 4], sizes = [8, 1], strides = [1, 1]} : vector<8x16xf32> to vector<8x1xf32>
    %524 = vector.broadcast %523 : vector<8x1xf32> to vector<8x32xf32>
    %525 = arith.mulf %522, %524 : vector<8x32xf32>
    %cst_76 = arith.constant dense<0.000000e+00> : vector<32xf32>
    %526 = vector.multi_reduction <add>, %525, %cst_76 [0] : vector<8x32xf32> to vector<32xf32>
    %527 = vector.shape_cast %526 : vector<32xf32> to vector<1x32xf32>
    %528 = vector.extract_strided_slice %455 {offsets = [5, 0, 0], sizes = [1, 8, 32], strides = [1, 1, 1]} : vector<16x8x32xf32> to vector<1x8x32xf32>
    %529 = vector.shape_cast %528 : vector<1x8x32xf32> to vector<8x32xf32>
    %530 = arith.mulf %529, %522 : vector<8x32xf32>
    %531 = vector.extract_strided_slice %446 {offsets = [0, 5], sizes = [8, 1], strides = [1, 1]} : vector<8x16xf32> to vector<8x1xf32>
    %532 = vector.extract_strided_slice %456 {offsets = [5, 0], sizes = [1, 32], strides = [1, 1]} : vector<16x32xf32> to vector<1x32xf32>
    %533 = vector.broadcast %531 : vector<8x1xf32> to vector<8x32xf32>
    %534 = vector.broadcast %532 : vector<1x32xf32> to vector<8x32xf32>
    %535 = arith.mulf %533, %534 : vector<8x32xf32>
    %536 = arith.addf %530, %535 : vector<8x32xf32>
    %537 = vector.extract_strided_slice %447 {offsets = [0, 5], sizes = [8, 1], strides = [1, 1]} : vector<8x16xf32> to vector<8x1xf32>
    %538 = vector.broadcast %537 : vector<8x1xf32> to vector<8x32xf32>
    %539 = arith.mulf %536, %538 : vector<8x32xf32>
    %cst_77 = arith.constant dense<0.000000e+00> : vector<32xf32>
    %540 = vector.multi_reduction <add>, %539, %cst_77 [0] : vector<8x32xf32> to vector<32xf32>
    %541 = vector.shape_cast %540 : vector<32xf32> to vector<1x32xf32>
    %542 = vector.extract_strided_slice %455 {offsets = [6, 0, 0], sizes = [1, 8, 32], strides = [1, 1, 1]} : vector<16x8x32xf32> to vector<1x8x32xf32>
    %543 = vector.shape_cast %542 : vector<1x8x32xf32> to vector<8x32xf32>
    %544 = arith.mulf %543, %536 : vector<8x32xf32>
    %545 = vector.extract_strided_slice %446 {offsets = [0, 6], sizes = [8, 1], strides = [1, 1]} : vector<8x16xf32> to vector<8x1xf32>
    %546 = vector.extract_strided_slice %456 {offsets = [6, 0], sizes = [1, 32], strides = [1, 1]} : vector<16x32xf32> to vector<1x32xf32>
    %547 = vector.broadcast %545 : vector<8x1xf32> to vector<8x32xf32>
    %548 = vector.broadcast %546 : vector<1x32xf32> to vector<8x32xf32>
    %549 = arith.mulf %547, %548 : vector<8x32xf32>
    %550 = arith.addf %544, %549 : vector<8x32xf32>
    %551 = vector.extract_strided_slice %447 {offsets = [0, 6], sizes = [8, 1], strides = [1, 1]} : vector<8x16xf32> to vector<8x1xf32>
    %552 = vector.broadcast %551 : vector<8x1xf32> to vector<8x32xf32>
    %553 = arith.mulf %550, %552 : vector<8x32xf32>
    %cst_78 = arith.constant dense<0.000000e+00> : vector<32xf32>
    %554 = vector.multi_reduction <add>, %553, %cst_78 [0] : vector<8x32xf32> to vector<32xf32>
    %555 = vector.shape_cast %554 : vector<32xf32> to vector<1x32xf32>
    %556 = vector.extract_strided_slice %455 {offsets = [7, 0, 0], sizes = [1, 8, 32], strides = [1, 1, 1]} : vector<16x8x32xf32> to vector<1x8x32xf32>
    %557 = vector.shape_cast %556 : vector<1x8x32xf32> to vector<8x32xf32>
    %558 = arith.mulf %557, %550 : vector<8x32xf32>
    %559 = vector.extract_strided_slice %446 {offsets = [0, 7], sizes = [8, 1], strides = [1, 1]} : vector<8x16xf32> to vector<8x1xf32>
    %560 = vector.extract_strided_slice %456 {offsets = [7, 0], sizes = [1, 32], strides = [1, 1]} : vector<16x32xf32> to vector<1x32xf32>
    %561 = vector.broadcast %559 : vector<8x1xf32> to vector<8x32xf32>
    %562 = vector.broadcast %560 : vector<1x32xf32> to vector<8x32xf32>
    %563 = arith.mulf %561, %562 : vector<8x32xf32>
    %564 = arith.addf %558, %563 : vector<8x32xf32>
    %565 = vector.extract_strided_slice %447 {offsets = [0, 7], sizes = [8, 1], strides = [1, 1]} : vector<8x16xf32> to vector<8x1xf32>
    %566 = vector.broadcast %565 : vector<8x1xf32> to vector<8x32xf32>
    %567 = arith.mulf %564, %566 : vector<8x32xf32>
    %cst_79 = arith.constant dense<0.000000e+00> : vector<32xf32>
    %568 = vector.multi_reduction <add>, %567, %cst_79 [0] : vector<8x32xf32> to vector<32xf32>
    %569 = vector.shape_cast %568 : vector<32xf32> to vector<1x32xf32>
    %cst_80 = arith.constant 0.000000e+00 : f32
    %570 = vector.broadcast %cst_80 : f32 to vector<8x32xf32>
    %571 = vector.extract_strided_slice %455 {offsets = [8, 0, 0], sizes = [1, 8, 32], strides = [1, 1, 1]} : vector<16x8x32xf32> to vector<1x8x32xf32>
    %572 = vector.shape_cast %571 : vector<1x8x32xf32> to vector<8x32xf32>
    %573 = arith.mulf %572, %570 : vector<8x32xf32>
    %574 = vector.extract_strided_slice %446 {offsets = [0, 8], sizes = [8, 1], strides = [1, 1]} : vector<8x16xf32> to vector<8x1xf32>
    %575 = vector.extract_strided_slice %456 {offsets = [8, 0], sizes = [1, 32], strides = [1, 1]} : vector<16x32xf32> to vector<1x32xf32>
    %576 = vector.broadcast %574 : vector<8x1xf32> to vector<8x32xf32>
    %577 = vector.broadcast %575 : vector<1x32xf32> to vector<8x32xf32>
    %578 = arith.mulf %576, %577 : vector<8x32xf32>
    %579 = arith.addf %573, %578 : vector<8x32xf32>
    %580 = vector.extract_strided_slice %447 {offsets = [0, 8], sizes = [8, 1], strides = [1, 1]} : vector<8x16xf32> to vector<8x1xf32>
    %581 = vector.broadcast %580 : vector<8x1xf32> to vector<8x32xf32>
    %582 = arith.mulf %579, %581 : vector<8x32xf32>
    %cst_81 = arith.constant dense<0.000000e+00> : vector<32xf32>
    %583 = vector.multi_reduction <add>, %582, %cst_81 [0] : vector<8x32xf32> to vector<32xf32>
    %584 = vector.shape_cast %583 : vector<32xf32> to vector<1x32xf32>
    %585 = vector.extract_strided_slice %455 {offsets = [9, 0, 0], sizes = [1, 8, 32], strides = [1, 1, 1]} : vector<16x8x32xf32> to vector<1x8x32xf32>
    %586 = vector.shape_cast %585 : vector<1x8x32xf32> to vector<8x32xf32>
    %587 = arith.mulf %586, %579 : vector<8x32xf32>
    %588 = vector.extract_strided_slice %446 {offsets = [0, 9], sizes = [8, 1], strides = [1, 1]} : vector<8x16xf32> to vector<8x1xf32>
    %589 = vector.extract_strided_slice %456 {offsets = [9, 0], sizes = [1, 32], strides = [1, 1]} : vector<16x32xf32> to vector<1x32xf32>
    %590 = vector.broadcast %588 : vector<8x1xf32> to vector<8x32xf32>
    %591 = vector.broadcast %589 : vector<1x32xf32> to vector<8x32xf32>
    %592 = arith.mulf %590, %591 : vector<8x32xf32>
    %593 = arith.addf %587, %592 : vector<8x32xf32>
    %594 = vector.extract_strided_slice %447 {offsets = [0, 9], sizes = [8, 1], strides = [1, 1]} : vector<8x16xf32> to vector<8x1xf32>
    %595 = vector.broadcast %594 : vector<8x1xf32> to vector<8x32xf32>
    %596 = arith.mulf %593, %595 : vector<8x32xf32>
    %cst_82 = arith.constant dense<0.000000e+00> : vector<32xf32>
    %597 = vector.multi_reduction <add>, %596, %cst_82 [0] : vector<8x32xf32> to vector<32xf32>
    %598 = vector.shape_cast %597 : vector<32xf32> to vector<1x32xf32>
    %599 = vector.extract_strided_slice %455 {offsets = [10, 0, 0], sizes = [1, 8, 32], strides = [1, 1, 1]} : vector<16x8x32xf32> to vector<1x8x32xf32>
    %600 = vector.shape_cast %599 : vector<1x8x32xf32> to vector<8x32xf32>
    %601 = arith.mulf %600, %593 : vector<8x32xf32>
    %602 = vector.extract_strided_slice %446 {offsets = [0, 10], sizes = [8, 1], strides = [1, 1]} : vector<8x16xf32> to vector<8x1xf32>
    %603 = vector.extract_strided_slice %456 {offsets = [10, 0], sizes = [1, 32], strides = [1, 1]} : vector<16x32xf32> to vector<1x32xf32>
    %604 = vector.broadcast %602 : vector<8x1xf32> to vector<8x32xf32>
    %605 = vector.broadcast %603 : vector<1x32xf32> to vector<8x32xf32>
    %606 = arith.mulf %604, %605 : vector<8x32xf32>
    %607 = arith.addf %601, %606 : vector<8x32xf32>
    %608 = vector.extract_strided_slice %447 {offsets = [0, 10], sizes = [8, 1], strides = [1, 1]} : vector<8x16xf32> to vector<8x1xf32>
    %609 = vector.broadcast %608 : vector<8x1xf32> to vector<8x32xf32>
    %610 = arith.mulf %607, %609 : vector<8x32xf32>
    %cst_83 = arith.constant dense<0.000000e+00> : vector<32xf32>
    %611 = vector.multi_reduction <add>, %610, %cst_83 [0] : vector<8x32xf32> to vector<32xf32>
    %612 = vector.shape_cast %611 : vector<32xf32> to vector<1x32xf32>
    %613 = vector.extract_strided_slice %455 {offsets = [11, 0, 0], sizes = [1, 8, 32], strides = [1, 1, 1]} : vector<16x8x32xf32> to vector<1x8x32xf32>
    %614 = vector.shape_cast %613 : vector<1x8x32xf32> to vector<8x32xf32>
    %615 = arith.mulf %614, %607 : vector<8x32xf32>
    %616 = vector.extract_strided_slice %446 {offsets = [0, 11], sizes = [8, 1], strides = [1, 1]} : vector<8x16xf32> to vector<8x1xf32>
    %617 = vector.extract_strided_slice %456 {offsets = [11, 0], sizes = [1, 32], strides = [1, 1]} : vector<16x32xf32> to vector<1x32xf32>
    %618 = vector.broadcast %616 : vector<8x1xf32> to vector<8x32xf32>
    %619 = vector.broadcast %617 : vector<1x32xf32> to vector<8x32xf32>
    %620 = arith.mulf %618, %619 : vector<8x32xf32>
    %621 = arith.addf %615, %620 : vector<8x32xf32>
    %622 = vector.extract_strided_slice %447 {offsets = [0, 11], sizes = [8, 1], strides = [1, 1]} : vector<8x16xf32> to vector<8x1xf32>
    %623 = vector.broadcast %622 : vector<8x1xf32> to vector<8x32xf32>
    %624 = arith.mulf %621, %623 : vector<8x32xf32>
    %cst_84 = arith.constant dense<0.000000e+00> : vector<32xf32>
    %625 = vector.multi_reduction <add>, %624, %cst_84 [0] : vector<8x32xf32> to vector<32xf32>
    %626 = vector.shape_cast %625 : vector<32xf32> to vector<1x32xf32>
    %627 = vector.extract_strided_slice %455 {offsets = [12, 0, 0], sizes = [1, 8, 32], strides = [1, 1, 1]} : vector<16x8x32xf32> to vector<1x8x32xf32>
    %628 = vector.shape_cast %627 : vector<1x8x32xf32> to vector<8x32xf32>
    %629 = arith.mulf %628, %621 : vector<8x32xf32>
    %630 = vector.extract_strided_slice %446 {offsets = [0, 12], sizes = [8, 1], strides = [1, 1]} : vector<8x16xf32> to vector<8x1xf32>
    %631 = vector.extract_strided_slice %456 {offsets = [12, 0], sizes = [1, 32], strides = [1, 1]} : vector<16x32xf32> to vector<1x32xf32>
    %632 = vector.broadcast %630 : vector<8x1xf32> to vector<8x32xf32>
    %633 = vector.broadcast %631 : vector<1x32xf32> to vector<8x32xf32>
    %634 = arith.mulf %632, %633 : vector<8x32xf32>
    %635 = arith.addf %629, %634 : vector<8x32xf32>
    %636 = vector.extract_strided_slice %447 {offsets = [0, 12], sizes = [8, 1], strides = [1, 1]} : vector<8x16xf32> to vector<8x1xf32>
    %637 = vector.broadcast %636 : vector<8x1xf32> to vector<8x32xf32>
    %638 = arith.mulf %635, %637 : vector<8x32xf32>
    %cst_85 = arith.constant dense<0.000000e+00> : vector<32xf32>
    %639 = vector.multi_reduction <add>, %638, %cst_85 [0] : vector<8x32xf32> to vector<32xf32>
    %640 = vector.shape_cast %639 : vector<32xf32> to vector<1x32xf32>
    %641 = vector.extract_strided_slice %455 {offsets = [13, 0, 0], sizes = [1, 8, 32], strides = [1, 1, 1]} : vector<16x8x32xf32> to vector<1x8x32xf32>
    %642 = vector.shape_cast %641 : vector<1x8x32xf32> to vector<8x32xf32>
    %643 = arith.mulf %642, %635 : vector<8x32xf32>
    %644 = vector.extract_strided_slice %446 {offsets = [0, 13], sizes = [8, 1], strides = [1, 1]} : vector<8x16xf32> to vector<8x1xf32>
    %645 = vector.extract_strided_slice %456 {offsets = [13, 0], sizes = [1, 32], strides = [1, 1]} : vector<16x32xf32> to vector<1x32xf32>
    %646 = vector.broadcast %644 : vector<8x1xf32> to vector<8x32xf32>
    %647 = vector.broadcast %645 : vector<1x32xf32> to vector<8x32xf32>
    %648 = arith.mulf %646, %647 : vector<8x32xf32>
    %649 = arith.addf %643, %648 : vector<8x32xf32>
    %650 = vector.extract_strided_slice %447 {offsets = [0, 13], sizes = [8, 1], strides = [1, 1]} : vector<8x16xf32> to vector<8x1xf32>
    %651 = vector.broadcast %650 : vector<8x1xf32> to vector<8x32xf32>
    %652 = arith.mulf %649, %651 : vector<8x32xf32>
    %cst_86 = arith.constant dense<0.000000e+00> : vector<32xf32>
    %653 = vector.multi_reduction <add>, %652, %cst_86 [0] : vector<8x32xf32> to vector<32xf32>
    %654 = vector.shape_cast %653 : vector<32xf32> to vector<1x32xf32>
    %655 = vector.extract_strided_slice %455 {offsets = [14, 0, 0], sizes = [1, 8, 32], strides = [1, 1, 1]} : vector<16x8x32xf32> to vector<1x8x32xf32>
    %656 = vector.shape_cast %655 : vector<1x8x32xf32> to vector<8x32xf32>
    %657 = arith.mulf %656, %649 : vector<8x32xf32>
    %658 = vector.extract_strided_slice %446 {offsets = [0, 14], sizes = [8, 1], strides = [1, 1]} : vector<8x16xf32> to vector<8x1xf32>
    %659 = vector.extract_strided_slice %456 {offsets = [14, 0], sizes = [1, 32], strides = [1, 1]} : vector<16x32xf32> to vector<1x32xf32>
    %660 = vector.broadcast %658 : vector<8x1xf32> to vector<8x32xf32>
    %661 = vector.broadcast %659 : vector<1x32xf32> to vector<8x32xf32>
    %662 = arith.mulf %660, %661 : vector<8x32xf32>
    %663 = arith.addf %657, %662 : vector<8x32xf32>
    %664 = vector.extract_strided_slice %447 {offsets = [0, 14], sizes = [8, 1], strides = [1, 1]} : vector<8x16xf32> to vector<8x1xf32>
    %665 = vector.broadcast %664 : vector<8x1xf32> to vector<8x32xf32>
    %666 = arith.mulf %663, %665 : vector<8x32xf32>
    %cst_87 = arith.constant dense<0.000000e+00> : vector<32xf32>
    %667 = vector.multi_reduction <add>, %666, %cst_87 [0] : vector<8x32xf32> to vector<32xf32>
    %668 = vector.shape_cast %667 : vector<32xf32> to vector<1x32xf32>
    %669 = vector.extract_strided_slice %455 {offsets = [15, 0, 0], sizes = [1, 8, 32], strides = [1, 1, 1]} : vector<16x8x32xf32> to vector<1x8x32xf32>
    %670 = vector.shape_cast %669 : vector<1x8x32xf32> to vector<8x32xf32>
    %671 = arith.mulf %670, %663 : vector<8x32xf32>
    %672 = vector.extract_strided_slice %446 {offsets = [0, 15], sizes = [8, 1], strides = [1, 1]} : vector<8x16xf32> to vector<8x1xf32>
    %673 = vector.extract_strided_slice %456 {offsets = [15, 0], sizes = [1, 32], strides = [1, 1]} : vector<16x32xf32> to vector<1x32xf32>
    %674 = vector.broadcast %672 : vector<8x1xf32> to vector<8x32xf32>
    %675 = vector.broadcast %673 : vector<1x32xf32> to vector<8x32xf32>
    %676 = arith.mulf %674, %675 : vector<8x32xf32>
    %677 = arith.addf %671, %676 : vector<8x32xf32>
    %678 = vector.extract_strided_slice %447 {offsets = [0, 15], sizes = [8, 1], strides = [1, 1]} : vector<8x16xf32> to vector<8x1xf32>
    %679 = vector.broadcast %678 : vector<8x1xf32> to vector<8x32xf32>
    %680 = arith.mulf %677, %679 : vector<8x32xf32>
    %cst_88 = arith.constant dense<0.000000e+00> : vector<32xf32>
    %681 = vector.multi_reduction <add>, %680, %cst_88 [0] : vector<8x32xf32> to vector<32xf32>
    %682 = vector.shape_cast %681 : vector<32xf32> to vector<1x32xf32>
    %683 = tpu.concatenate %471, %485, %499, %513, %527, %541, %555, %569, %584, %598, %612, %626, %640, %654, %668, %682 in 0 : vector<1x32xf32>, vector<1x32xf32>, vector<1x32xf32>, vector<1x32xf32>, vector<1x32xf32>, vector<1x32xf32>, vector<1x32xf32>, vector<1x32xf32>, vector<1x32xf32>, vector<1x32xf32>, vector<1x32xf32>, vector<1x32xf32>, vector<1x32xf32>, vector<1x32xf32>, vector<1x32xf32>, vector<1x32xf32> -> vector<16x32xf32>
    %684 = vector.broadcast %371 : vector<1x32xf32> to vector<16x32xf32>
    %685 = arith.mulf %684, %431 : vector<16x32xf32>
    %686 = arith.addf %683, %685 : vector<16x32xf32>
    %687 = arith.mulf %686, %382 : vector<16x32xf32>
    %cst_89 = arith.constant dense<0.000000e+00> : vector<16x32xf32>
    %688 = tpu.matmul %687, %367, %cst_89 {dimension_numbers = #tpu.dot_dimension_numbers<[1], [0], [0], [1], [0, 0, 1, 1], [], []>} : vector<16x32xf32>, vector<32x32xf32>, vector<16x32xf32> -> vector<16x32xf32>
    %689 = arith.addf %361, %688 : vector<16x32xf32>
    %690 = vector.shape_cast %689 : vector<16x32xf32> to vector<2x8x32xf32>
    %cst_90 = arith.constant dense<0.000000e+00> : vector<2x32xf32>
    %691 = vector.multi_reduction <add>, %690, %cst_90 [1] : vector<2x8x32xf32> to vector<2x32xf32>
    %cst_91 = arith.constant 8.000000e+00 : f32
    %692 = vector.broadcast %cst_91 : f32 to vector<2x32xf32>
    %693 = arith.divf %691, %692 : vector<2x32xf32>
    %cst_92 = arith.constant dense<0.000000e+00> : vector<2x32xf32>
    %694 = tpu.matmul %693, %5, %cst_92 {dimension_numbers = #tpu.dot_dimension_numbers<[1], [0], [0], [1], [0, 0, 1, 1], [], []>} : vector<2x32xf32>, vector<32x32xf32>, vector<2x32xf32> -> vector<2x32xf32>
    %695 = vector.extract_strided_slice %6 {offsets = [0, 0], sizes = [1, 32], strides = [1, 1]} : vector<3x32xf32> to vector<1x32xf32>
    %696 = vector.broadcast %695 : vector<1x32xf32> to vector<2x32xf32>
    %697 = arith.addf %694, %696 : vector<2x32xf32>
    %698 = vector.extract_strided_slice %6 {offsets = [1, 0], sizes = [1, 32], strides = [1, 1]} : vector<3x32xf32> to vector<1x32xf32>
    %699 = vector.extract_strided_slice %6 {offsets = [2, 0], sizes = [1, 32], strides = [1, 1]} : vector<3x32xf32> to vector<1x32xf32>
    %cst_93 = arith.constant dense<0.000000e+00> : vector<2xf32>
    %700 = vector.multi_reduction <add>, %697, %cst_93 [1] : vector<2x32xf32> to vector<2xf32>
    %701 = vector.shape_cast %700 : vector<2xf32> to vector<2x1xf32>
    %cst_94 = arith.constant 3.200000e+01 : f32
    %702 = vector.broadcast %cst_94 : f32 to vector<2x1xf32>
    %703 = arith.divf %701, %702 : vector<2x1xf32>
    %704 = vector.broadcast %703 : vector<2x1xf32> to vector<2x32xf32>
    %705 = arith.subf %697, %704 : vector<2x32xf32>
    %706 = arith.mulf %705, %705 : vector<2x32xf32>
    %cst_95 = arith.constant dense<0.000000e+00> : vector<2xf32>
    %707 = vector.multi_reduction <add>, %706, %cst_95 [1] : vector<2x32xf32> to vector<2xf32>
    %708 = vector.shape_cast %707 : vector<2xf32> to vector<2x1xf32>
    %cst_96 = arith.constant 3.200000e+01 : f32
    %709 = vector.broadcast %cst_96 : f32 to vector<2x1xf32>
    %710 = arith.divf %708, %709 : vector<2x1xf32>
    %cst_97 = arith.constant 9.99999974E-6 : f32
    %711 = vector.broadcast %cst_97 : f32 to vector<2x1xf32>
    %712 = arith.addf %710, %711 : vector<2x1xf32>
    %713 = math.rsqrt %712 : vector<2x1xf32>
    %714 = vector.broadcast %713 : vector<2x1xf32> to vector<2x32xf32>
    %715 = arith.mulf %705, %714 : vector<2x32xf32>
    %716 = vector.broadcast %698 : vector<1x32xf32> to vector<2x32xf32>
    %717 = arith.mulf %715, %716 : vector<2x32xf32>
    %718 = vector.broadcast %699 : vector<1x32xf32> to vector<2x32xf32>
    %719 = arith.addf %717, %718 : vector<2x32xf32>
    %cst_98 = arith.constant 5.000000e-01 : f32
    %720 = vector.broadcast %cst_98 : f32 to vector<2x32xf32>
    %721 = arith.mulf %720, %719 : vector<2x32xf32>
    %cst_99 = arith.constant 4.471500e-02 : f32
    %722 = vector.broadcast %cst_99 : f32 to vector<2x32xf32>
    %723 = arith.mulf %722, %719 : vector<2x32xf32>
    %724 = arith.mulf %723, %719 : vector<2x32xf32>
    %725 = arith.mulf %724, %719 : vector<2x32xf32>
    %726 = arith.addf %719, %725 : vector<2x32xf32>
    %cst_100 = arith.constant 0.797884583 : f32
    %727 = vector.broadcast %cst_100 : f32 to vector<2x32xf32>
    %728 = arith.mulf %727, %726 : vector<2x32xf32>
    %729 = math.tanh %728 : vector<2x32xf32>
    %cst_101 = arith.constant 1.000000e+00 : f32
    %730 = vector.broadcast %cst_101 : f32 to vector<2x32xf32>
    %731 = arith.addf %730, %729 : vector<2x32xf32>
    %732 = arith.mulf %721, %731 : vector<2x32xf32>
    %733 = vector.extract_strided_slice %7 {offsets = [0, 0], sizes = [32, 128], strides = [1, 1]} : vector<33x128xf32> to vector<32x128xf32>
    %cst_102 = arith.constant dense<0.000000e+00> : vector<2x128xf32>
    %734 = tpu.matmul %732, %733, %cst_102 {dimension_numbers = #tpu.dot_dimension_numbers<[1], [0], [0], [1], [0, 0, 1, 1], [], []>} : vector<2x32xf32>, vector<32x128xf32>, vector<2x128xf32> -> vector<2x128xf32>
    %735 = vector.extract_strided_slice %7 {offsets = [32, 0], sizes = [1, 128], strides = [1, 1]} : vector<33x128xf32> to vector<1x128xf32>
    %736 = vector.broadcast %735 : vector<1x128xf32> to vector<2x128xf32>
    %737 = arith.addf %734, %736 : vector<2x128xf32>
    %c0_103 = arith.constant 0 : index
    %c0_104 = arith.constant 0 : index
    %738 = vector.load %arg8[%c0_103, %c0_104] : memref<2x128xf32, #tpu.memory_space<vmem>>, vector<2x128xf32>
    tpu.vector_store %arg8[%c0_103, %c0_104], %737 {strides = array<i32>} : memref<2x128xf32, #tpu.memory_space<vmem>>, vector<2x128xf32>,
    return
  }
}

</mosaic_0001>

<llo_original>
// kernel: video_mamba_forward.1
$region0: #{video_mamba_forward.1}
  #allocation0 [shape = 'u32[]', space=smem, size = 0x4, offset = 0x4, fixed_abs, tag = 'smem constant byte address 0x4 - core index']
  #allocation1 [shape = 'u32[72,128]{1,0:T(1,128)}', space=vmem, size = 0x9000, scoped, tag = 'internal scratch']
  %s0 = inlined_call_operand.vmem [shape: f32[16,32], index: 0, kind: input, shape index: {}]
  %s1 = inlined_call_operand.hbm [shape: f32[32,32], index: 1, kind: input, shape index: {}]
  %s2 = inlined_call_operand.vmem [shape: f32[3,32], index: 2, kind: input, shape index: {}]
  %s3 = inlined_call_operand.vmem [shape: f32[2,32,128], index: 3, kind: input, shape index: {}]
  %s4 = inlined_call_operand.vmem [shape: f32[2,29,32], index: 4, kind: input, shape index: {}]
  %s5 = inlined_call_operand.hbm [shape: f32[32,32], index: 5, kind: input, shape index: {}]
  %s6 = inlined_call_operand.hbm [shape: f32[3,32], index: 6, kind: input, shape index: {}]
  %s7 = inlined_call_operand.vmem [shape: f32[33,128], index: 7, kind: input, shape index: {}]
  %s8 = inlined_call_operand.hbm [shape: f32[2,128], index: 8, kind: output, shape index: {}]
  %s9 = sld [smem:[#allocation0]]
  $region54: #{video_mamba_forward.1} parent=0
    _
  %s11 = ssub.s32 1, %s9
  %s12 = scalar_select 0, %s11, %s9
  $region1: #{video_mamba_forward.1} parent=0
    #allocation2 [shape = 'u8[16384]{0}', space=vmem, size = 0x4000, scoped, tag = 'input window, operand 1, single buffered']
    #allocation3 [shape = 's32[1]{0}', space=sflag, size = 0x4, scoped, tag = 'scoped memory for video_mamba_forward.1']
    #allocation4 [shape = 's32[1]{0}', space=sflag, size = 0x4, scoped, tag = 'scoped memory for video_mamba_forward.1']
    #allocation5 [shape = 'u8[16384]{0}', space=vmem, size = 0x4000, scoped, tag = 'input window, operand 5, single buffered']
    #allocation6 [shape = 's32[1]{0}', space=sflag, size = 0x4, scoped, tag = 'scoped memory for video_mamba_forward.1']
    #allocation7 [shape = 'u8[2048]{0}', space=vmem, size = 0x800, scoped, tag = 'input window, operand 6, single buffered']
    #allocation8 [shape = 'u8[1024]{0}', space=vmem, size = 0x400, scoped, tag = 'output window, operand 0, single buffered']
    %13 = vsyncpa [#allocation3], 0
    %14 = vsyncpa [#allocation6], 0
    %15 = vsyncpa [#allocation4], 0
    // Predicated region
    $region2: #{video_mamba_forward.1} parent=1 // pred_check
      _
    $region3: #{video_mamba_forward.1} parent=1 // pred_check_branch
      %17 = sbr.rel (0) target = $region5
    $region4: #{video_mamba_forward.1} parent=1 // pred_region
      _
    $region5: #{video_mamba_forward.1} parent=1 // pred_fallthru
      _
    // Predicated region
    $region6: #{video_mamba_forward.1} parent=1 // pred_check
      _
    $region7: #{video_mamba_forward.1} parent=1 // pred_check_branch
      %19 = sbr.rel (0) target = $region9
    $region8: #{video_mamba_forward.1} parent=1 // pred_region
      %21 = vsyncadd [#allocation3], 0
      %s22 = sshll.u32 %s1, 4
      %s23 = int_to_ptr.hbm [resolvable:$true] %s22
      %s24 = sshll.u32 [#allocation2], 4
      %s25 = int_to_ptr.vmem [resolvable:$true] %s24
      %30 = dma.hbm_to_vmem [thread:$0]  %s23, 512, %s25, [#allocation3], 128, 128, 8
    $region9: #{video_mamba_forward.1} parent=1 // pred_fallthru
      _
    // Predicated region
    $region10: #{video_mamba_forward.1} parent=1 // pred_check
      _
    $region11: #{video_mamba_forward.1} parent=1 // pred_check_branch
      %32 = sbr.rel (0) target = $region13
    $region12: #{video_mamba_forward.1} parent=1 // pred_region
      _
    $region13: #{video_mamba_forward.1} parent=1 // pred_fallthru
      _
    // Predicated region
    $region14: #{video_mamba_forward.1} parent=1 // pred_check
      _
    $region15: #{video_mamba_forward.1} parent=1 // pred_check_branch
      %34 = sbr.rel (0) target = $region17
    $region16: #{video_mamba_forward.1} parent=1 // pred_region
      _
    $region17: #{video_mamba_forward.1} parent=1 // pred_fallthru
      _
    // Predicated region
    $region18: #{video_mamba_forward.1} parent=1 // pred_check
      _
    $region19: #{video_mamba_forward.1} parent=1 // pred_check_branch
      %36 = sbr.rel (0) target = $region21
    $region20: #{video_mamba_forward.1} parent=1 // pred_region
      _
    $region21: #{video_mamba_forward.1} parent=1 // pred_fallthru
      _
    // Predicated region
    $region22: #{video_mamba_forward.1} parent=1 // pred_check
      _
    $region23: #{video_mamba_forward.1} parent=1 // pred_check_branch
      %38 = sbr.rel (0) target = $region25
    $region24: #{video_mamba_forward.1} parent=1 // pred_region
      %40 = vsyncadd [#allocation6], 0
      %s41 = sshll.u32 %s5, 4
      %s42 = int_to_ptr.hbm [resolvable:$true] %s41
      %s43 = sshll.u32 [#allocation5], 4
      %s44 = int_to_ptr.vmem [resolvable:$true] %s43
      %49 = dma.hbm_to_vmem [thread:$0]  %s42, 512, %s44, [#allocation6], 128, 128, 8
    $region25: #{video_mamba_forward.1} parent=1 // pred_fallthru
      _
    // Predicated region
    $region26: #{video_mamba_forward.1} parent=1 // pred_check
      _
    $region27: #{video_mamba_forward.1} parent=1 // pred_check_branch
      %51 = sbr.rel (0) target = $region29
    $region28: #{video_mamba_forward.1} parent=1 // pred_region
      %53 = vsyncadd [#allocation6], 0
      %s55 = sshll.u32 %s6, 4
      %s56 = int_to_ptr.hbm [resolvable:$true] %s55
      %s57 = sshll.u32 [#allocation7], 4
      %s58 = int_to_ptr.vmem [resolvable:$true] %s57
      %60 = dma.hbm_to_vmem [thread:$0]  %s56, 64, %s58, [#allocation6]
    $region29: #{video_mamba_forward.1} parent=1 // pred_fallthru
      _
    // Predicated region
    $region30: #{video_mamba_forward.1} parent=1 // pred_check
      _
    $region31: #{video_mamba_forward.1} parent=1 // pred_check_branch
      %62 = sbr.rel (0) target = $region33
    $region32: #{video_mamba_forward.1} parent=1 // pred_region
      _
    $region33: #{video_mamba_forward.1} parent=1 // pred_fallthru
      _
    // Predicated region
    $region34: #{video_mamba_forward.1} parent=1 // pred_check
      _
    $region35: #{video_mamba_forward.1} parent=1 // pred_check_branch
      %64 = sbr.rel (0) target = $region37
    $region36: #{video_mamba_forward.1} parent=1 // pred_region
      %66 = dma.done [#allocation3], 512
    $region37: #{video_mamba_forward.1} parent=1 // pred_fallthru
      _
    // Predicated region
    $region38: #{video_mamba_forward.1} parent=1 // pred_check
      _
    $region39: #{video_mamba_forward.1} parent=1 // pred_check_branch
      %68 = sbr.rel (0) target = $region41
    $region40: #{video_mamba_forward.1} parent=1 // pred_region
      %70 = dma.done [#allocation6], 512
    $region41: #{video_mamba_forward.1} parent=1 // pred_fallthru
      _
    // Predicated region
    $region42: #{video_mamba_forward.1} parent=1 // pred_check
      _
    $region43: #{video_mamba_forward.1} parent=1 // pred_check_branch
      %72 = sbr.rel (0) target = $region45
    $region44: #{video_mamba_forward.1} parent=1 // pred_region
      %74 = dma.done [#allocation6], 64
    $region45: #{video_mamba_forward.1} parent=1 // pred_fallthru
      _
    %v75 = vld [vmem:[%s0] sm:$0xff]
    %v76 = vld [vmem:[%s0 + $0x8] sm:$0xff]
    %v77 = vld [vmem:[#allocation2] sm:$0xff]
    %v78 = vld [vmem:[#allocation2 + $0x8] sm:$0xff]
    %v79 = vld [vmem:[#allocation2 + $0x10] sm:$0xff]
    %v80 = vld [vmem:[#allocation2 + $0x18] sm:$0xff]
    %v81 = vld [vmem:[%s2] sm:$0x7]
    %v82 = vld [vmem:[%s3] sm:$0xff]
    %v83 = vld [vmem:[%s3 + $0x8] sm:$0xff]
    %v84 = vld [vmem:[%s3 + $0x10] sm:$0xff]
    %v85 = vld [vmem:[%s3 + $0x18] sm:$0xff]
    %v86 = vld [vmem:[%s3 + $0x20] sm:$0xff]
    %v87 = vld [vmem:[%s3 + $0x28] sm:$0xff]
    %v88 = vld [vmem:[%s3 + $0x30] sm:$0xff]
    %v89 = vld [vmem:[%s3 + $0x38] sm:$0xff]
    %v90 = vld [vmem:[%s4] sm:$0xff]
    %v91 = vld [vmem:[%s4 + $0x8] sm:$0xff]
    %v92 = vld [vmem:[%s4 + $0x10] sm:$0xff]
    %v93 = vld [vmem:[%s4 + $0x18] sm:$0x1f]
    %v94 = vld [vmem:[%s4 + $0x20] sm:$0xff]
    %v95 = vld [vmem:[%s4 + $0x28] sm:$0xff]
    %v96 = vld [vmem:[%s4 + $0x30] sm:$0xff]
    %v97 = vld [vmem:[%s4 + $0x38] sm:$0x1f]
    %v98 = vld [vmem:[#allocation5] sm:$0xff]
    %v99 = vld [vmem:[#allocation5 + $0x8] sm:$0xff]
    %v100 = vld [vmem:[#allocation5 + $0x10] sm:$0xff]
    %v101 = vld [vmem:[#allocation5 + $0x18] sm:$0xff]
    %v102 = vld [vmem:[#allocation7] sm:$0x7]
    %v103 = vld [vmem:[%s7] sm:$0xff]
    %v104 = vld [vmem:[%s7 + $0x8] sm:$0xff]
    %v105 = vld [vmem:[%s7 + $0x10] sm:$0xff]
    %v106 = vld [vmem:[%s7 + $0x18] sm:$0xff]
    %v107 = vld [vmem:[%s7 + $0x20] sm:$0x1]
    %v108 = vperm.slane %v81, 0
    %vm109 = vcmask 261120
    %v111 = vsel %vm109, %v75, 0
    %v114 = vsel %vm109, %v76, 0
    %116 = vmatpush.msra.mxu0 0.0
    %117 = vmatpush.msra.mxu0 0.0
    %118 = vmatpush.msra.mxu0 0.0
    %119 = vmatpush.msra.mxu0 0.0
    %120 = vmatpush.msra.mxu0 0.0
    %121 = vmatpush.msra.mxu0 0.0
    %122 = vmatpush.msra.mxu0 0.0
    %123 = vmatpush.msra.mxu0 0.0
    %124 = vmatpush.msra.mxu0 0.0
    %125 = vmatpush.msra.mxu0 0.0
    %126 = vmatpush.msra.mxu0 0.0
    %127 = vmatpush.msra.mxu0 0.0
    %128 = vmatpush.msra.mxu0 %v80
    %129 = vmatpush.msra.mxu0 %v79
    %130 = vmatpush.msra.mxu0 %v78
    %131 = vmatpush.msra.mxu0 %v77
    %132 = vmatmul.f32.gmra.mxu0 %v111
    %v133 = vpop.f32.mrf.mxu0
    %v134 = vadd.f32 %v108, %v133
    %135 = vmatmul.f32.gmra.mxu0 %v114
    %v136 = vpop.f32.mrf.mxu0
    %v137 = vadd.f32 %v108, %v136
    %138 = vdwg.mxu0
    %v139 = vsel %vm109, %v134, 0.0
    %140 = vadd.xlane.f32.xlu0 %v139
    %v141 = vpop.xlane.xlu0 %140
    %v142 = vsel %vm109, %v137, 0.0
    %143 = vadd.xlane.f32.xlu0 %v142
    %v144 = vpop.xlane.xlu0 %143
    %v145 = vrcp.pop 32.0
    %v146 = vmul.f32 32.0, %v145
    %v147 = vsub.f32 1.0, %v146
    %v148 = vmul.f32 %v145, %v147
    %v149 = vadd.f32 %v145, %v148
    %vm150 = vweird.f32 %v145
    %v151 = vsel %vm150, %v145, %v149
    %v152 = vmul.f32 %v141, %v151
    %v153 = vmul.f32 %v144, %v151
    %v154 = vsub.f32 %v134, %v152
    %v155 = vsub.f32 %v137, %v153
    %v156 = vmul.f32 %v154, %v154
    %v157 = vmul.f32 %v155, %v155
    %v158 = vsel %vm109, %v156, 0.0
    %159 = vadd.xlane.f32.xlu0 %v158
    %v160 = vpop.xlane.xlu0 %159
    %v161 = vsel %vm109, %v157, 0.0
    %162 = vadd.xlane.f32.xlu0 %v161
    %v163 = vpop.xlane.xlu0 %162
    %v164 = vmul.f32 %v160, %v151
    %v165 = vmul.f32 %v163, %v151
    %v166 = vadd.f32 %v164, 1e-05
    %v167 = vadd.f32 %v165, 1e-05
    %v168 = vrsqrt.pop %v166
    %v169 = vmul.f32 %v168, %v166
    %v170 = vmul.f32 %v169, %v168
    %v171 = vmul.f32 0.5, %v170
    %v172 = vsub.f32 1.5, %v171
    %v173 = vmul.f32 %v168, %v172
    %vm174 = vweird.f32 %v166
    %vm175 = vweird.f32 %v168
    %vm176 = vmor %vm174, %vm175
    %v177 = vsel %vm176, %v168, %v173
    %v178 = vrsqrt.pop %v167
    %v179 = vmul.f32 %v178, %v167
    %v180 = vmul.f32 %v179, %v178
    %v181 = vmul.f32 0.5, %v180
    %v182 = vsub.f32 1.5, %v181
    %v183 = vmul.f32 %v178, %v182
    %vm184 = vweird.f32 %v167
    %vm185 = vweird.f32 %v178
    %vm186 = vmor %vm184, %vm185
    %v187 = vsel %vm186, %v178, %v183
    %v188 = vmul.f32 %v154, %v177
    %v189 = vmul.f32 %v155, %v187
    %v190 = vperm.slane %v81, 1
    %v191 = vmul.f32 %v188, %v190
    %v192 = vmul.f32 %v189, %v190
    %v193 = vperm.slane %v81, 2
    %v194 = vadd.f32 %v191, %v193
    %v195 = vadd.f32 %v192, %v193
    %v197 = vsel %vm109, %v194, 0
    %v200 = vsel %vm109, %v195, 0
    %202 = vmatpush.msra.mxu0 0.0
    %203 = vmatpush.msra.mxu0 0.0
    %204 = vmatpush.msra.mxu0 0.0
    %205 = vmatpush.msra.mxu0 0.0
    %206 = vmatpush.msra.mxu0 0.0
    %207 = vmatpush.msra.mxu0 0.0
    %208 = vmatpush.msra.mxu0 0.0
    %209 = vmatpush.msra.mxu0 0.0
    %210 = vmatpush.msra.mxu0 0.0
    %211 = vmatpush.msra.mxu0 0.0
    %212 = vmatpush.msra.mxu0 0.0
    %213 = vmatpush.msra.mxu0 0.0
    %214 = vmatpush.msra.mxu0 %v85
    %215 = vmatpush.msra.mxu0 %v84
    %216 = vmatpush.msra.mxu0 %v83
    %217 = vmatpush.msra.mxu0 %v82
    %218 = vmatmul.f32.gmra.mxu0 %v197
    %v219 = vpop.f32.mrf.mxu0
    %v220 = vadd.f32 0.0, %v219
    %221 = vmatmul.f32.gmra.mxu0 %v200
    %v222 = vpop.f32.mrf.mxu0
    %v223 = vadd.f32 0.0, %v222
    %224 = vdwg.mxu0
    %v225 = vsub.f32 0.0, %v220
    %v226 = vsub.f32 0.0, %v223
    %v227 = vmul.f32 %v225, 1.442695
    %v228 = vpow.pop %v227
    %v229 = vmul.f32 %v226, 1.442695
    %v230 = vpow.pop %v229
    %v231 = vadd.f32 %v228, 1.0
    %v232 = vadd.f32 %v230, 1.0
    %v233 = vrcp.pop %v231
    %v234 = vmul.f32 %v231, %v233
    %v235 = vsub.f32 1.0, %v234
    %v236 = vmul.f32 %v233, %v235
    %v237 = vadd.f32 %v233, %v236
    %vm238 = vweird.f32 %v231
    %vm239 = vweird.f32 %v233
    %vm240 = vmor %vm238, %vm239
    %v241 = vsel %vm240, %v233, %v237
    %v242 = vand.u32 2147483647, %v231
    %vm243 = vcmp.eq.f32.partialorder %v242, 8.507059e+37
    %v244 = vand.u32 %v231, 2147483648
    %v245 = vor.u32 1.1754944e-38, %v244
    %v246 = vsel %vm243, %v245, %v241
    %v247 = vmul.f32 %v220, %v246
    %v248 = vrcp.pop %v232
    %v249 = vmul.f32 %v232, %v248
    %v250 = vsub.f32 1.0, %v249
    %v251 = vmul.f32 %v248, %v250
    %v252 = vadd.f32 %v248, %v251
    %vm253 = vweird.f32 %v232
    %vm254 = vweird.f32 %v248
    %vm255 = vmor %vm253, %vm254
    %v256 = vsel %vm255, %v248, %v252
    %v257 = vand.u32 2147483647, %v232
    %vm258 = vcmp.eq.f32.partialorder %v257, 8.507059e+37
    %v259 = vand.u32 %v232, 2147483648
    %v260 = vor.u32 1.1754944e-38, %v259
    %v261 = vsel %vm258, %v260, %v256
    %v262 = vmul.f32 %v223, %v261
    %v264 = vrot.slane %v220, 6
    %vm266 = vcmask 1041408
    %v267 = vsel %vm266, 0.0, %v264
    %v268 = vperm.slane %v90, 3
    %v269 = vadd.f32 %v268, 0.0
    %v270 = vperm.slane %v90, 0
    %v271 = vmul.f32 %v267, %v270
    %v272 = vadd.f32 %v269, %v271
    %v273 = vperm.slane %v90, 1
    %v274 = vmul.f32 %v267, %v273
    %v275 = vmul.f32 %v264, %v273
    %vm278 = vcmask 1046528
    %v279 = vrot.slane %v274, 1
    %v280 = vrot.slane %v275, 1
    %v281 = vsel %vm278, %v279, %v280
    %v283 = vadd.f32 %v272, %v281
    %v284 = vperm.slane %v90, 2
    %v285 = vmul.f32 %v267, %v284
    %v286 = vmul.f32 %v264, %v284
    %vm289 = vcmask 1045504
    %v290 = vrot.slane %v285, 2
    %v291 = vrot.slane %v286, 2
    %v292 = vsel %vm289, %v290, %v291
    %v294 = vadd.f32 %v283, %v292
    %v296 = vrot.slane %v223, 6
    %v298 = vsel %vm266, 0.0, %v296
    %v299 = vmul.f32 %v298, %v270
    %v300 = vadd.f32 %v269, %v299
    %v301 = vmul.f32 %v298, %v273
    %v302 = vmul.f32 %v296, %v273
    %v305 = vrot.slane %v301, 1
    %v306 = vrot.slane %v302, 1
    %v307 = vsel %vm278, %v305, %v306
    %v309 = vadd.f32 %v300, %v307
    %v310 = vmul.f32 %v298, %v284
    %v311 = vmul.f32 %v296, %v284
    %v314 = vrot.slane %v310, 2
    %v315 = vrot.slane %v311, 2
    %v316 = vsel %vm289, %v314, %v315
    %v318 = vadd.f32 %v309, %v316
    %v319 = vsub.f32 0.0, %v294
    %v320 = vsub.f32 0.0, %v318
    %v321 = vmul.f32 %v319, 1.442695
    %v322 = vpow.pop %v321
    %v323 = vmul.f32 %v320, 1.442695
    %v324 = vpow.pop %v323
    %v325 = vadd.f32 %v322, 1.0
    %v326 = vadd.f32 %v324, 1.0
    %v327 = vrcp.pop %v325
    %v328 = vmul.f32 %v325, %v327
    %v329 = vsub.f32 1.0, %v328
    %v330 = vmul.f32 %v327, %v329
    %v331 = vadd.f32 %v327, %v330
    %vm332 = vweird.f32 %v325
    %vm333 = vweird.f32 %v327
    %vm334 = vmor %vm332, %vm333
    %v335 = vsel %vm334, %v327, %v331
    %v336 = vand.u32 2147483647, %v325
    %vm337 = vcmp.eq.f32.partialorder %v336, 8.507059e+37
    %v338 = vand.u32 %v325, 2147483648
    %v339 = vor.u32 1.1754944e-38, %v338
    %v340 = vsel %vm337, %v339, %v335
    %v341 = vmul.f32 %v294, %v340
    %v342 = vrcp.pop %v326
    %v343 = vmul.f32 %v326, %v342
    %v344 = vsub.f32 1.0, %v343
    %v345 = vmul.f32 %v342, %v344
    %v346 = vadd.f32 %v342, %v345
    %vm347 = vweird.f32 %v326
    %vm348 = vweird.f32 %v342
    %vm349 = vmor %vm347, %vm348
    %v350 = vsel %vm349, %v342, %v346
    %v351 = vand.u32 2147483647, %v326
    %vm352 = vcmp.eq.f32.partialorder %v351, 8.507059e+37
    %v353 = vand.u32 %v326, 2147483648
    %v354 = vor.u32 1.1754944e-38, %v353
    %v355 = vsel %vm352, %v354, %v350
    %v356 = vmul.f32 %v318, %v355
    %v357 = vperm.slane %v90, 4
    %362 = vrot.lane.b32.xlu0 %v82, 32
    %v363 = vpop.permute.xlu0 %362
    %364 = vrot.lane.b32.xlu0 %v83, 32
    %v365 = vpop.permute.xlu0 %364
    %366 = vrot.lane.b32.xlu0 %v84, 32
    %v367 = vpop.permute.xlu0 %366
    %368 = vrot.lane.b32.xlu0 %v85, 32
    %v369 = vpop.permute.xlu0 %368
    %v375 = vsel %vm109, %v341, 0
    %v378 = vsel %vm109, %v356, 0
    %380 = vmatpush.msra.mxu0 0.0
    %381 = vmatpush.msra.mxu0 0.0
    %382 = vmatpush.msra.mxu0 0.0
    %383 = vmatpush.msra.mxu0 0.0
    %384 = vmatpush.msra.mxu0 0.0
    %385 = vmatpush.msra.mxu0 0.0
    %386 = vmatpush.msra.mxu0 0.0
    %387 = vmatpush.msra.mxu0 0.0
    %388 = vmatpush.msra.mxu0 0.0
    %389 = vmatpush.msra.mxu0 0.0
    %390 = vmatpush.msra.mxu0 0.0
    %391 = vmatpush.msra.mxu0 0.0
    %392 = vmatpush.msra.mxu0 %v369
    %393 = vmatpush.msra.mxu0 %v367
    %394 = vmatpush.msra.mxu0 %v365
    %395 = vmatpush.msra.mxu0 %v363
    %396 = vmatmul.f32.gmra.mxu0 %v375
    %v397 = vpop.f32.mrf.mxu0
    %v398 = vadd.f32 %v357, %v397
    %399 = vmatmul.f32.gmra.mxu0 %v378
    %v400 = vpop.f32.mrf.mxu0
    %v401 = vadd.f32 %v357, %v400
    %402 = vdwg.mxu0
    %v403 = vmax.f32 %v398, 0.0
    %v404 = vmax.f32 %v401, 0.0
    %v405 = vand.u32 2147483647, %v398
    %v406 = vand.u32 2147483647, %v401
    %v407 = vsub.f32 0.0, %v405
    %v408 = vsub.f32 0.0, %v406
    %v409 = vmul.f32 %v407, 1.442695
    %v410 = vpow.pop %v409
    %v411 = vmul.f32 %v408, 1.442695
    %v412 = vpow.pop %v411
    %v413 = vadd.f32 %v410, 1.0
    %v414 = vadd.f32 %v412, 1.0
    %v415 = vlog2.pop %v413
    %v416 = vmul.f32 %v415, 0.6931472
    %v417 = vlog2.pop %v414
    %v418 = vmul.f32 %v417, 0.6931472
    %v419 = vadd.f32 %v403, %v416
    %v420 = vadd.f32 %v404, %v418
    %vm424 = vcmask 1042432
    %v425 = vrot.slane %v91, 5
    %v426 = vrot.slane %v92, 5
    %v427 = vsel %vm424, %v425, %v426
    %v428 = vrot.slane %v93, 5
    %v429 = vsel %vm424, %v426, %v428
    %v430 = vsel %vm109, %v427, 0
    %v432 = vsel %vm109, %v429, 0
    %434 = vmatpush.xpose.msra.mxu0 0.0
    %435 = vmatpush.xpose.msra.mxu0 0.0
    %436 = vmatpush.xpose.msra.mxu0 0.0
    %437 = vmatpush.xpose.msra.mxu0 0.0
    %438 = vmatpush.xpose.msra.mxu0 0.0
    %439 = vmatpush.xpose.msra.mxu0 0.0
    %440 = vmatpush.xpose.msra.mxu0 0.0
    %441 = vmatpush.xpose.msra.mxu0 0.0
    %442 = vmatpush.xpose.msra.mxu0 0.0
    %443 = vmatpush.xpose.msra.mxu0 0.0
    %444 = vmatpush.xpose.msra.mxu0 0.0
    %445 = vmatpush.xpose.msra.mxu0 0.0
    %446 = vmatpush.xpose.msra.mxu0 0.0
    %447 = vmatpush.xpose.msra.mxu0 0.0
    %448 = vmatpush.xpose.msra.mxu0 %v378
    %449 = vmatpush.xpose.msra.mxu0 %v375
    %450 = vmatmul.f32.gmra.mxu0 %v430
    %v451 = vpop.f32.mrf.mxu0
    %v452 = vadd.f32 0.0, %v451
    %453 = vmatmul.f32.gmra.mxu0 %v432
    %v454 = vpop.f32.mrf.mxu0
    %v455 = vadd.f32 0.0, %v454
    %456 = vdwg.mxu0
    %v459 = vrot.slane %v419, 1
    %v460 = vrot.slane %v419, 2
    %v461 = vrot.slane %v419, 3
    %v462 = vrot.slane %v419, 4
    %v463 = vrot.slane %v419, 5
    %v464 = vrot.slane %v419, 6
    %v465 = vrot.slane %v419, 7
    %v466 = vrot.slane %v420, 1
    %v467 = vrot.slane %v420, 2
    %v468 = vrot.slane %v420, 3
    %v469 = vrot.slane %v420, 4
    %v470 = vrot.slane %v420, 5
    %v471 = vrot.slane %v420, 6
    %v472 = vrot.slane %v420, 7
    %v473 = vperm.slane %v419, 0
    %v474 = vperm.slane %v459, 0
    %v475 = vperm.slane %v460, 0
    %v476 = vperm.slane %v461, 0
    %v477 = vperm.slane %v462, 0
    %v478 = vperm.slane %v463, 0
    %v479 = vperm.slane %v464, 0
    %v480 = vperm.slane %v465, 0
    %v481 = vperm.slane %v420, 0
    %v482 = vperm.slane %v466, 0
    %v483 = vperm.slane %v467, 0
    %v484 = vperm.slane %v468, 0
    %v485 = vperm.slane %v469, 0
    %v486 = vperm.slane %v470, 0
    %v487 = vperm.slane %v471, 0
    %v488 = vperm.slane %v472, 0
    %v505 = vmul.f32 %v473, %v90
    %v506 = vmul.f32 %v473, %v91
    %v507 = vmul.f32 %v474, %v90
    %v508 = vmul.f32 %v474, %v91
    %v509 = vmul.f32 %v475, %v90
    %v510 = vmul.f32 %v475, %v91
    %v511 = vmul.f32 %v476, %v90
    %v512 = vmul.f32 %v476, %v91
    %v513 = vmul.f32 %v477, %v90
    %v514 = vmul.f32 %v477, %v91
    %v515 = vmul.f32 %v478, %v90
    %v516 = vmul.f32 %v478, %v91
    %v517 = vmul.f32 %v479, %v90
    %v518 = vmul.f32 %v479, %v91
    %v519 = vmul.f32 %v480, %v90
    %v520 = vmul.f32 %v480, %v91
    %v521 = vmul.f32 %v481, %v90
    %v522 = vmul.f32 %v481, %v91
    %v523 = vmul.f32 %v482, %v90
    %v524 = vmul.f32 %v482, %v91
    %v525 = vmul.f32 %v483, %v90
    %v526 = vmul.f32 %v483, %v91
    %v527 = vmul.f32 %v484, %v90
    %v528 = vmul.f32 %v484, %v91
    %v529 = vmul.f32 %v485, %v90
    %v530 = vmul.f32 %v485, %v91
    %v531 = vmul.f32 %v486, %v90
    %v532 = vmul.f32 %v486, %v91
    %v533 = vmul.f32 %v487, %v90
    %v534 = vmul.f32 %v487, %v91
    %v535 = vmul.f32 %v488, %v90
    %v536 = vmul.f32 %v488, %v91
    %v537 = vsub.f32 0.0, %v505
    %v538 = vsub.f32 0.0, %v506
    %v539 = vsub.f32 0.0, %v507
    %v540 = vsub.f32 0.0, %v508
    %v541 = vsub.f32 0.0, %v509
    %v542 = vsub.f32 0.0, %v510
    %v543 = vsub.f32 0.0, %v511
    %v544 = vsub.f32 0.0, %v512
    %v545 = vsub.f32 0.0, %v513
    %v546 = vsub.f32 0.0, %v514
    %v547 = vsub.f32 0.0, %v515
    %v548 = vsub.f32 0.0, %v516
    %v549 = vsub.f32 0.0, %v517
    %v550 = vsub.f32 0.0, %v518
    %v551 = vsub.f32 0.0, %v519
    %v552 = vsub.f32 0.0, %v520
    %v553 = vsub.f32 0.0, %v521
    %v554 = vsub.f32 0.0, %v522
    %v555 = vsub.f32 0.0, %v523
    %v556 = vsub.f32 0.0, %v524
    %v557 = vsub.f32 0.0, %v525
    %v558 = vsub.f32 0.0, %v526
    %v559 = vsub.f32 0.0, %v527
    %v560 = vsub.f32 0.0, %v528
    %v561 = vsub.f32 0.0, %v529
    %v562 = vsub.f32 0.0, %v530
    %v563 = vsub.f32 0.0, %v531
    %v564 = vsub.f32 0.0, %v532
    %v565 = vsub.f32 0.0, %v533
    %v566 = vsub.f32 0.0, %v534
    %v567 = vsub.f32 0.0, %v535
    %v568 = vsub.f32 0.0, %v536
    %v569 = vmul.f32 %v537, 1.442695
    %v570 = vpow.pop %v569
    %v571 = vmul.f32 %v538, 1.442695
    %v572 = vpow.pop %v571
    %v573 = vmul.f32 %v539, 1.442695
    %v574 = vpow.pop %v573
    %v575 = vmul.f32 %v540, 1.442695
    %v576 = vpow.pop %v575
    %v577 = vmul.f32 %v541, 1.442695
    %v578 = vpow.pop %v577
    %v579 = vmul.f32 %v542, 1.442695
    %v580 = vpow.pop %v579
    %v581 = vmul.f32 %v543, 1.442695
    %v582 = vpow.pop %v581
    %v583 = vmul.f32 %v544, 1.442695
    %v584 = vpow.pop %v583
    %v585 = vmul.f32 %v545, 1.442695
    %v586 = vpow.pop %v585
    %v587 = vmul.f32 %v546, 1.442695
    %v588 = vpow.pop %v587
    %v589 = vmul.f32 %v547, 1.442695
    %v590 = vpow.pop %v589
    %v591 = vmul.f32 %v548, 1.442695
    %v592 = vpow.pop %v591
    %v593 = vmul.f32 %v549, 1.442695
    %v594 = vpow.pop %v593
    %v595 = vmul.f32 %v550, 1.442695
    %v596 = vpow.pop %v595
    %v597 = vmul.f32 %v551, 1.442695
    %v598 = vpow.pop %v597
    %v599 = vmul.f32 %v552, 1.442695
    %v600 = vpow.pop %v599
    %v601 = vmul.f32 %v553, 1.442695
    %v602 = vpow.pop %v601
    %v603 = vmul.f32 %v554, 1.442695
    %v604 = vpow.pop %v603
    %v605 = vmul.f32 %v555, 1.442695
    %v606 = vpow.pop %v605
    %v607 = vmul.f32 %v556, 1.442695
    %v608 = vpow.pop %v607
    %v609 = vmul.f32 %v557, 1.442695
    %v610 = vpow.pop %v609
    %v611 = vmul.f32 %v558, 1.442695
    %v612 = vpow.pop %v611
    %v613 = vmul.f32 %v559, 1.442695
    %v614 = vpow.pop %v613
    %v615 = vmul.f32 %v560, 1.442695
    %v616 = vpow.pop %v615
    %v617 = vmul.f32 %v561, 1.442695
    %v618 = vpow.pop %v617
    %v619 = vmul.f32 %v562, 1.442695
    %v620 = vpow.pop %v619
    %v621 = vmul.f32 %v563, 1.442695
    %v622 = vpow.pop %v621
    %v623 = vmul.f32 %v564, 1.442695
    %v624 = vpow.pop %v623
    %v625 = vmul.f32 %v565, 1.442695
    %v626 = vpow.pop %v625
    %v627 = vmul.f32 %v566, 1.442695
    %v628 = vpow.pop %v627
    %v629 = vmul.f32 %v567, 1.442695
    %v630 = vpow.pop %v629
    %v631 = vmul.f32 %v568, 1.442695
    %v632 = vpow.pop %v631
    %v633 = vmul.f32 %v419, %v341
    %v634 = vmul.f32 %v420, %v356
    %v635 = vmul.f32 %v570, 0.0
    %v636 = vmul.f32 %v572, 0.0
    %638 = vset.pattern.permute.xlu0 0
    %639 = vperm.xlu0 %638, %v452
    %v640 = vpop.permute.xlu0 %639
    %v642 = vperm.slane %v633, 0
    %v643 = vmul.f32 %v640, %v642
    %v645 = vrot.slane %v643, 3
    %v647 = vadd.f32 %v635, %v645
    %v648 = vadd.f32 %v636, %v645
    %650 = vset.pattern.permute.xlu0 0
    %651 = vperm.xlu0 %650, %v455
    %v652 = vpop.permute.xlu0 %651
    %v653 = vrot.slane %v652, 3
    %v655 = vmul.f32 %v647, %v653
    %v656 = vmul.f32 %v648, %v653
    %v659 = vrot.slane %v655, 5
    %v660 = vrot.slane %v656, 5
    %v661 = vsel %vm424, %v659, %v660
    %v663 = vsel %vm109, %v661, 0.0
    %v664 = vrot.slane %v663, 4
    %v665 = vadd.f32 %v663, %v664
    %v666 = vrot.slane %v665, 2
    %v667 = vadd.f32 %v665, %v666
    %v668 = vrot.slane %v667, 1
    %v669 = vadd.f32 %v667, %v668
    %v670 = vmul.f32 %v574, %v647
    %v671 = vmul.f32 %v576, %v648
    %672 = vset.pattern.permute.xlu0 1
    %673 = vperm.xlu0 %672, %v452
    %v674 = vpop.permute.xlu0 %673
    %v676 = vperm.slane %v633, 1
    %v677 = vmul.f32 %v674, %v676
    %v679 = vrot.slane %v677, 3
    %v681 = vadd.f32 %v670, %v679
    %v682 = vadd.f32 %v671, %v679
    %683 = vset.pattern.permute.xlu0 1
    %684 = vperm.xlu0 %683, %v455
    %v685 = vpop.permute.xlu0 %684
    %v686 = vrot.slane %v685, 3
    %v688 = vmul.f32 %v681, %v686
    %v689 = vmul.f32 %v682, %v686
    %v692 = vrot.slane %v688, 5
    %v693 = vrot.slane %v689, 5
    %v694 = vsel %vm424, %v692, %v693
    %v696 = vsel %vm109, %v694, 0.0
    %v697 = vrot.slane %v696, 4
    %v698 = vadd.f32 %v696, %v697
    %v699 = vrot.slane %v698, 2
    %v700 = vadd.f32 %v698, %v699
    %v701 = vrot.slane %v700, 1
    %v702 = vadd.f32 %v700, %v701
    %v703 = vmul.f32 %v578, %v681
    %v704 = vmul.f32 %v580, %v682
    %705 = vset.pattern.permute.xlu0 2
    %706 = vperm.xlu0 %705, %v452
    %v707 = vpop.permute.xlu0 %706
    %v709 = vperm.slane %v633, 2
    %v710 = vmul.f32 %v707, %v709
    %v712 = vrot.slane %v710, 3
    %v714 = vadd.f32 %v703, %v712
    %v715 = vadd.f32 %v704, %v712
    %716 = vset.pattern.permute.xlu0 2
    %717 = vperm.xlu0 %716, %v455
    %v718 = vpop.permute.xlu0 %717
    %v719 = vrot.slane %v718, 3
    %v721 = vmul.f32 %v714, %v719
    %v722 = vmul.f32 %v715, %v719
    %v725 = vrot.slane %v721, 5
    %v726 = vrot.slane %v722, 5
    %v727 = vsel %vm424, %v725, %v726
    %v729 = vsel %vm109, %v727, 0.0
    %v730 = vrot.slane %v729, 4
    %v731 = vadd.f32 %v729, %v730
    %v732 = vrot.slane %v731, 2
    %v733 = vadd.f32 %v731, %v732
    %v734 = vrot.slane %v733, 1
    %v735 = vadd.f32 %v733, %v734
    %v736 = vmul.f32 %v582, %v714
    %v737 = vmul.f32 %v584, %v715
    %738 = vset.pattern.permute.xlu0 3
    %739 = vperm.xlu0 %738, %v452
    %v740 = vpop.permute.xlu0 %739
    %v742 = vperm.slane %v633, 3
    %v743 = vmul.f32 %v740, %v742
    %v745 = vrot.slane %v743, 3
    %v747 = vadd.f32 %v736, %v745
    %v748 = vadd.f32 %v737, %v745
    %749 = vset.pattern.permute.xlu0 3
    %750 = vperm.xlu0 %749, %v455
    %v751 = vpop.permute.xlu0 %750
    %v752 = vrot.slane %v751, 3
    %v754 = vmul.f32 %v747, %v752
    %v755 = vmul.f32 %v748, %v752
    %v758 = vrot.slane %v754, 5
    %v759 = vrot.slane %v755, 5
    %v760 = vsel %vm424, %v758, %v759
    %v762 = vsel %vm109, %v760, 0.0
    %v763 = vrot.slane %v762, 4
    %v764 = vadd.f32 %v762, %v763
    %v765 = vrot.slane %v764, 2
    %v766 = vadd.f32 %v764, %v765
    %v767 = vrot.slane %v766, 1
    %v768 = vadd.f32 %v766, %v767
    %v769 = vmul.f32 %v586, %v747
    %v770 = vmul.f32 %v588, %v748
    %771 = vset.pattern.permute.xlu0 4
    %772 = vperm.xlu0 %771, %v452
    %v773 = vpop.permute.xlu0 %772
    %v775 = vperm.slane %v633, 4
    %v776 = vmul.f32 %v773, %v775
    %v778 = vrot.slane %v776, 3
    %v780 = vadd.f32 %v769, %v778
    %v781 = vadd.f32 %v770, %v778
    %782 = vset.pattern.permute.xlu0 4
    %783 = vperm.xlu0 %782, %v455
    %v784 = vpop.permute.xlu0 %783
    %v785 = vrot.slane %v784, 3
    %v787 = vmul.f32 %v780, %v785
    %v788 = vmul.f32 %v781, %v785
    %v791 = vrot.slane %v787, 5
    %v792 = vrot.slane %v788, 5
    %v793 = vsel %vm424, %v791, %v792
    %v795 = vsel %vm109, %v793, 0.0
    %v796 = vrot.slane %v795, 4
    %v797 = vadd.f32 %v795, %v796
    %v798 = vrot.slane %v797, 2
    %v799 = vadd.f32 %v797, %v798
    %v800 = vrot.slane %v799, 1
    %v801 = vadd.f32 %v799, %v800
    %v802 = vmul.f32 %v590, %v780
    %v803 = vmul.f32 %v592, %v781
    %804 = vset.pattern.permute.xlu0 5
    %805 = vperm.xlu0 %804, %v452
    %v806 = vpop.permute.xlu0 %805
    %v808 = vperm.slane %v633, 5
    %v809 = vmul.f32 %v806, %v808
    %v811 = vrot.slane %v809, 3
    %v813 = vadd.f32 %v802, %v811
    %v814 = vadd.f32 %v803, %v811
    %815 = vset.pattern.permute.xlu0 5
    %816 = vperm.xlu0 %815, %v455
    %v817 = vpop.permute.xlu0 %816
    %v818 = vrot.slane %v817, 3
    %v820 = vmul.f32 %v813, %v818
    %v821 = vmul.f32 %v814, %v818
    %v824 = vrot.slane %v820, 5
    %v825 = vrot.slane %v821, 5
    %v826 = vsel %vm424, %v824, %v825
    %v828 = vsel %vm109, %v826, 0.0
    %v829 = vrot.slane %v828, 4
    %v830 = vadd.f32 %v828, %v829
    %v831 = vrot.slane %v830, 2
    %v832 = vadd.f32 %v830, %v831
    %v833 = vrot.slane %v832, 1
    %v834 = vadd.f32 %v832, %v833
    %v835 = vmul.f32 %v594, %v813
    %v836 = vmul.f32 %v596, %v814
    %837 = vset.pattern.permute.xlu0 6
    %838 = vperm.xlu0 %837, %v452
    %v839 = vpop.permute.xlu0 %838
    %v841 = vperm.slane %v633, 6
    %v842 = vmul.f32 %v839, %v841
    %v844 = vrot.slane %v842, 3
    %v846 = vadd.f32 %v835, %v844
    %v847 = vadd.f32 %v836, %v844
    %848 = vset.pattern.permute.xlu0 6
    %849 = vperm.xlu0 %848, %v455
    %v850 = vpop.permute.xlu0 %849
    %v851 = vrot.slane %v850, 3
    %v853 = vmul.f32 %v846, %v851
    %v854 = vmul.f32 %v847, %v851
    %v857 = vrot.slane %v853, 5
    %v858 = vrot.slane %v854, 5
    %v859 = vsel %vm424, %v857, %v858
    %v861 = vsel %vm109, %v859, 0.0
    %v862 = vrot.slane %v861, 4
    %v863 = vadd.f32 %v861, %v862
    %v864 = vrot.slane %v863, 2
    %v865 = vadd.f32 %v863, %v864
    %v866 = vrot.slane %v865, 1
    %v867 = vadd.f32 %v865, %v866
    %v868 = vmul.f32 %v598, %v846
    %v869 = vmul.f32 %v600, %v847
    %870 = vset.pattern.permute.xlu0 7
    %871 = vperm.xlu0 %870, %v452
    %v872 = vpop.permute.xlu0 %871
    %v874 = vperm.slane %v633, 7
    %v875 = vmul.f32 %v872, %v874
    %v877 = vrot.slane %v875, 3
    %v879 = vadd.f32 %v868, %v877
    %v880 = vadd.f32 %v869, %v877
    %881 = vset.pattern.permute.xlu0 7
    %882 = vperm.xlu0 %881, %v455
    %v883 = vpop.permute.xlu0 %882
    %v884 = vrot.slane %v883, 3
    %v886 = vmul.f32 %v879, %v884
    %v887 = vmul.f32 %v880, %v884
    %v890 = vrot.slane %v886, 5
    %v891 = vrot.slane %v887, 5
    %v892 = vsel %vm424, %v890, %v891
    %v894 = vsel %vm109, %v892, 0.0
    %v895 = vrot.slane %v894, 4
    %v896 = vadd.f32 %v894, %v895
    %v897 = vrot.slane %v896, 2
    %v898 = vadd.f32 %v896, %v897
    %v899 = vrot.slane %v898, 1
    %v900 = vadd.f32 %v898, %v899
    %v901 = vmul.f32 %v602, 0.0
    %v902 = vmul.f32 %v604, 0.0
    %903 = vset.pattern.permute.xlu0 8
    %904 = vperm.xlu0 %903, %v452
    %v905 = vpop.permute.xlu0 %904
    %v907 = vperm.slane %v634, 0
    %v908 = vmul.f32 %v905, %v907
    %v910 = vrot.slane %v908, 3
    %v912 = vadd.f32 %v901, %v910
    %v913 = vadd.f32 %v902, %v910
    %914 = vset.pattern.permute.xlu0 8
    %915 = vperm.xlu0 %914, %v455
    %v916 = vpop.permute.xlu0 %915
    %v917 = vrot.slane %v916, 3
    %v919 = vmul.f32 %v912, %v917
    %v920 = vmul.f32 %v913, %v917
    %v923 = vrot.slane %v919, 5
    %v924 = vrot.slane %v920, 5
    %v925 = vsel %vm424, %v923, %v924
    %v927 = vsel %vm109, %v925, 0.0
    %v928 = vrot.slane %v927, 4
    %v929 = vadd.f32 %v927, %v928
    %v930 = vrot.slane %v929, 2
    %v931 = vadd.f32 %v929, %v930
    %v932 = vrot.slane %v931, 1
    %v933 = vadd.f32 %v931, %v932
    %v934 = vmul.f32 %v606, %v912
    %v935 = vmul.f32 %v608, %v913
    %936 = vset.pattern.permute.xlu0 9
    %937 = vperm.xlu0 %936, %v452
    %v938 = vpop.permute.xlu0 %937
    %v940 = vperm.slane %v634, 1
    %v941 = vmul.f32 %v938, %v940
    %v943 = vrot.slane %v941, 3
    %v945 = vadd.f32 %v934, %v943
    %v946 = vadd.f32 %v935, %v943
    %947 = vset.pattern.permute.xlu0 9
    %948 = vperm.xlu0 %947, %v455
    %v949 = vpop.permute.xlu0 %948
    %v950 = vrot.slane %v949, 3
    %v952 = vmul.f32 %v945, %v950
    %v953 = vmul.f32 %v946, %v950
    %v956 = vrot.slane %v952, 5
    %v957 = vrot.slane %v953, 5
    %v958 = vsel %vm424, %v956, %v957
    %v960 = vsel %vm109, %v958, 0.0
    %v961 = vrot.slane %v960, 4
    %v962 = vadd.f32 %v960, %v961
    %v963 = vrot.slane %v962, 2
    %v964 = vadd.f32 %v962, %v963
    %v965 = vrot.slane %v964, 1
    %v966 = vadd.f32 %v964, %v965
    %v967 = vmul.f32 %v610, %v945
    %v968 = vmul.f32 %v612, %v946
    %969 = vset.pattern.permute.xlu0 10
    %970 = vperm.xlu0 %969, %v452
    %v971 = vpop.permute.xlu0 %970
    %v973 = vperm.slane %v634, 2
    %v974 = vmul.f32 %v971, %v973
    %v976 = vrot.slane %v974, 3
    %v978 = vadd.f32 %v967, %v976
    %v979 = vadd.f32 %v968, %v976
    %980 = vset.pattern.permute.xlu0 10
    %981 = vperm.xlu0 %980, %v455
    %v982 = vpop.permute.xlu0 %981
    %v983 = vrot.slane %v982, 3
    %v985 = vmul.f32 %v978, %v983
    %v986 = vmul.f32 %v979, %v983
    %v989 = vrot.slane %v985, 5
    %v990 = vrot.slane %v986, 5
    %v991 = vsel %vm424, %v989, %v990
    %v993 = vsel %vm109, %v991, 0.0
    %v994 = vrot.slane %v993, 4
    %v995 = vadd.f32 %v993, %v994
    %v996 = vrot.slane %v995, 2
    %v997 = vadd.f32 %v995, %v996
    %v998 = vrot.slane %v997, 1
    %v999 = vadd.f32 %v997, %v998
    %v1000 = vmul.f32 %v614, %v978
    %v1001 = vmul.f32 %v616, %v979
    %1002 = vset.pattern.permute.xlu0 11
    %1003 = vperm.xlu0 %1002, %v452
    %v1004 = vpop.permute.xlu0 %1003
    %v1006 = vperm.slane %v634, 3
    %v1007 = vmul.f32 %v1004, %v1006
    %v1009 = vrot.slane %v1007, 3
    %v1011 = vadd.f32 %v1000, %v1009
    %v1012 = vadd.f32 %v1001, %v1009
    %1013 = vset.pattern.permute.xlu0 11
    %1014 = vperm.xlu0 %1013, %v455
    %v1015 = vpop.permute.xlu0 %1014
    %v1016 = vrot.slane %v1015, 3
    %v1018 = vmul.f32 %v1011, %v1016
    %v1019 = vmul.f32 %v1012, %v1016
    %v1022 = vrot.slane %v1018, 5
    %v1023 = vrot.slane %v1019, 5
    %v1024 = vsel %vm424, %v1022, %v1023
    %v1026 = vsel %vm109, %v1024, 0.0
    %v1027 = vrot.slane %v1026, 4
    %v1028 = vadd.f32 %v1026, %v1027
    %v1029 = vrot.slane %v1028, 2
    %v1030 = vadd.f32 %v1028, %v1029
    %v1031 = vrot.slane %v1030, 1
    %v1032 = vadd.f32 %v1030, %v1031
    %v1033 = vmul.f32 %v618, %v1011
    %v1034 = vmul.f32 %v620, %v1012
    %1035 = vset.pattern.permute.xlu0 12
    %1036 = vperm.xlu0 %1035, %v452
    %v1037 = vpop.permute.xlu0 %1036
    %v1039 = vperm.slane %v634, 4
    %v1040 = vmul.f32 %v1037, %v1039
    %v1042 = vrot.slane %v1040, 3
    %v1044 = vadd.f32 %v1033, %v1042
    %v1045 = vadd.f32 %v1034, %v1042
    %1046 = vset.pattern.permute.xlu0 12
    %1047 = vperm.xlu0 %1046, %v455
    %v1048 = vpop.permute.xlu0 %1047
    %v1049 = vrot.slane %v1048, 3
    %v1051 = vmul.f32 %v1044, %v1049
    %v1052 = vmul.f32 %v1045, %v1049
    %v1055 = vrot.slane %v1051, 5
    %v1056 = vrot.slane %v1052, 5
    %v1057 = vsel %vm424, %v1055, %v1056
    %v1059 = vsel %vm109, %v1057, 0.0
    %v1060 = vrot.slane %v1059, 4
    %v1061 = vadd.f32 %v1059, %v1060
    %v1062 = vrot.slane %v1061, 2
    %v1063 = vadd.f32 %v1061, %v1062
    %v1064 = vrot.slane %v1063, 1
    %v1065 = vadd.f32 %v1063, %v1064
    %v1066 = vmul.f32 %v622, %v1044
    %v1067 = vmul.f32 %v624, %v1045
    %1068 = vset.pattern.permute.xlu0 13
    %1069 = vperm.xlu0 %1068, %v452
    %v1070 = vpop.permute.xlu0 %1069
    %v1072 = vperm.slane %v634, 5
    %v1073 = vmul.f32 %v1070, %v1072
    %v1075 = vrot.slane %v1073, 3
    %v1077 = vadd.f32 %v1066, %v1075
    %v1078 = vadd.f32 %v1067, %v1075
    %1079 = vset.pattern.permute.xlu0 13
    %1080 = vperm.xlu0 %1079, %v455
    %v1081 = vpop.permute.xlu0 %1080
    %v1082 = vrot.slane %v1081, 3
    %v1084 = vmul.f32 %v1077, %v1082
    %v1085 = vmul.f32 %v1078, %v1082
    %v1088 = vrot.slane %v1084, 5
    %v1089 = vrot.slane %v1085, 5
    %v1090 = vsel %vm424, %v1088, %v1089
    %v1092 = vsel %vm109, %v1090, 0.0
    %v1093 = vrot.slane %v1092, 4
    %v1094 = vadd.f32 %v1092, %v1093
    %v1095 = vrot.slane %v1094, 2
    %v1096 = vadd.f32 %v1094, %v1095
    %v1097 = vrot.slane %v1096, 1
    %v1098 = vadd.f32 %v1096, %v1097
    %v1099 = vmul.f32 %v626, %v1077
    %v1100 = vmul.f32 %v628, %v1078
    %1101 = vset.pattern.permute.xlu0 14
    %1102 = vperm.xlu0 %1101, %v452
    %v1103 = vpop.permute.xlu0 %1102
    %v1105 = vperm.slane %v634, 6
    %v1106 = vmul.f32 %v1103, %v1105
    %v1108 = vrot.slane %v1106, 3
    %v1110 = vadd.f32 %v1099, %v1108
    %v1111 = vadd.f32 %v1100, %v1108
    %1112 = vset.pattern.permute.xlu0 14
    %1113 = vperm.xlu0 %1112, %v455
    %v1114 = vpop.permute.xlu0 %1113
    %v1115 = vrot.slane %v1114, 3
    %v1117 = vmul.f32 %v1110, %v1115
    %v1118 = vmul.f32 %v1111, %v1115
    %v1121 = vrot.slane %v1117, 5
    %v1122 = vrot.slane %v1118, 5
    %v1123 = vsel %vm424, %v1121, %v1122
    %v1125 = vsel %vm109, %v1123, 0.0
    %v1126 = vrot.slane %v1125, 4
    %v1127 = vadd.f32 %v1125, %v1126
    %v1128 = vrot.slane %v1127, 2
    %v1129 = vadd.f32 %v1127, %v1128
    %v1130 = vrot.slane %v1129, 1
    %v1131 = vadd.f32 %v1129, %v1130
    %v1132 = vmul.f32 %v630, %v1110
    %v1133 = vmul.f32 %v632, %v1111
    %1134 = vset.pattern.permute.xlu0 15
    %1135 = vperm.xlu0 %1134, %v452
    %v1136 = vpop.permute.xlu0 %1135
    %v1138 = vperm.slane %v634, 7
    %v1139 = vmul.f32 %v1136, %v1138
    %v1141 = vrot.slane %v1139, 3
    %v1143 = vadd.f32 %v1132, %v1141
    %v1144 = vadd.f32 %v1133, %v1141
    %1145 = vset.pattern.permute.xlu0 15
    %1146 = vperm.xlu0 %1145, %v455
    %v1147 = vpop.permute.xlu0 %1146
    %v1148 = vrot.slane %v1147, 3
    %v1150 = vmul.f32 %v1143, %v1148
    %v1151 = vmul.f32 %v1144, %v1148
    %v1154 = vrot.slane %v1150, 5
    %v1155 = vrot.slane %v1151, 5
    %v1156 = vsel %vm424, %v1154, %v1155
    %v1158 = vsel %vm109, %v1156, 0.0
    %v1159 = vrot.slane %v1158, 4
    %v1160 = vadd.f32 %v1158, %v1159
    %v1161 = vrot.slane %v1160, 2
    %v1162 = vadd.f32 %v1160, %v1161
    %v1163 = vrot.slane %v1162, 1
    %v1164 = vadd.f32 %v1162, %v1163
    %vm1165 = vcmask 1040384
    %v1166 = vsel %vm1165, %v669, %v702
    %v1167 = vsel %vm266, %v1166, %v735
    %v1168 = vsel %vm424, %v1167, %v768
    %vm1169 = vcmask 1043456
    %v1170 = vsel %vm1169, %v1168, %v801
    %vm1171 = vcmask 1044480
    %v1172 = vsel %vm1171, %v1170, %v834
    %v1173 = vsel %vm289, %v1172, %v867
    %v1174 = vsel %vm278, %v1173, %v900
    %v1175 = vsel %vm1165, %v933, %v966
    %v1176 = vsel %vm266, %v1175, %v999
    %v1177 = vsel %vm424, %v1176, %v1032
    %v1178 = vsel %vm1169, %v1177, %v1065
    %v1179 = vsel %vm1171, %v1178, %v1098
    %v1180 = vsel %vm289, %v1179, %v1131
    %v1181 = vsel %vm278, %v1180, %v1164
    %v1182 = vmul.f32 %v357, %v341
    %v1183 = vmul.f32 %v357, %v356
    %v1184 = vadd.f32 %v1174, %v1182
    %v1185 = vadd.f32 %v1181, %v1183
    %1188 = vrot.lane.b32.xlu0 %v247, 96
    %v1189 = vpop.permute.xlu0 %1188
    %1190 = vrot.lane.b32.xlu0 %v262, 96
    %v1191 = vpop.permute.xlu0 %1190
    %v1194 = vmul.f32 %v1184, %v1189
    %v1195 = vmul.f32 %v1185, %v1191
    %1196 = vrot.lane.b32.xlu0 %v82, 64
    %v1197 = vpop.permute.xlu0 %1196
    %1198 = vrot.lane.b32.xlu0 %v83, 64
    %v1199 = vpop.permute.xlu0 %1198
    %1200 = vrot.lane.b32.xlu0 %v84, 64
    %v1201 = vpop.permute.xlu0 %1200
    %1202 = vrot.lane.b32.xlu0 %v85, 64
    %v1203 = vpop.permute.xlu0 %1202
    %v1209 = vsel %vm109, %v1194, 0
    %v1212 = vsel %vm109, %v1195, 0
    %1214 = vmatpush.msra.mxu0 0.0
    %1215 = vmatpush.msra.mxu0 0.0
    %1216 = vmatpush.msra.mxu0 0.0
    %1217 = vmatpush.msra.mxu0 0.0
    %1218 = vmatpush.msra.mxu0 0.0
    %1219 = vmatpush.msra.mxu0 0.0
    %1220 = vmatpush.msra.mxu0 0.0
    %1221 = vmatpush.msra.mxu0 0.0
    %1222 = vmatpush.msra.mxu0 0.0
    %1223 = vmatpush.msra.mxu0 0.0
    %1224 = vmatpush.msra.mxu0 0.0
    %1225 = vmatpush.msra.mxu0 0.0
    %1226 = vmatpush.msra.mxu0 %v1203
    %1227 = vmatpush.msra.mxu0 %v1201
    %1228 = vmatpush.msra.mxu0 %v1199
    %1229 = vmatpush.msra.mxu0 %v1197
    %1230 = vmatmul.f32.gmra.mxu0 %v1209
    %v1231 = vpop.f32.mrf.mxu0
    %v1232 = vadd.f32 0.0, %v1231
    %1233 = vmatmul.f32.gmra.mxu0 %v1212
    %v1234 = vpop.f32.mrf.mxu0
    %v1235 = vadd.f32 0.0, %v1234
    %1236 = vdwg.mxu0
    %v1237 = vadd.f32 %v194, %v1232
    %v1238 = vadd.f32 %v195, %v1235
    %v1240 = vsel %vm109, %v1237, 0
    %v1243 = vsel %vm109, %v1238, 0
    %1245 = vmatpush.msra.mxu0 0.0
    %1246 = vmatpush.msra.mxu0 0.0
    %1247 = vmatpush.msra.mxu0 0.0
    %1248 = vmatpush.msra.mxu0 0.0
    %1249 = vmatpush.msra.mxu0 0.0
    %1250 = vmatpush.msra.mxu0 0.0
    %1251 = vmatpush.msra.mxu0 0.0
    %1252 = vmatpush.msra.mxu0 0.0
    %1253 = vmatpush.msra.mxu0 0.0
    %1254 = vmatpush.msra.mxu0 0.0
    %1255 = vmatpush.msra.mxu0 0.0
    %1256 = vmatpush.msra.mxu0 0.0
    %1257 = vmatpush.msra.mxu0 %v89
    %1258 = vmatpush.msra.mxu0 %v88
    %1259 = vmatpush.msra.mxu0 %v87
    %1260 = vmatpush.msra.mxu0 %v86
    %1261 = vmatmul.f32.gmra.mxu0 %v1240
    %v1262 = vpop.f32.mrf.mxu0
    %v1263 = vadd.f32 0.0, %v1262
    %1264 = vmatmul.f32.gmra.mxu0 %v1243
    %v1265 = vpop.f32.mrf.mxu0
    %v1266 = vadd.f32 0.0, %v1265
    %1267 = vdwg.mxu0
    %v1268 = vsub.f32 0.0, %v1263
    %v1269 = vsub.f32 0.0, %v1266
    %v1270 = vmul.f32 %v1268, 1.442695
    %v1271 = vpow.pop %v1270
    %v1272 = vmul.f32 %v1269, 1.442695
    %v1273 = vpow.pop %v1272
    %v1274 = vadd.f32 %v1271, 1.0
    %v1275 = vadd.f32 %v1273, 1.0
    %v1276 = vrcp.pop %v1274
    %v1277 = vmul.f32 %v1274, %v1276
    %v1278 = vsub.f32 1.0, %v1277
    %v1279 = vmul.f32 %v1276, %v1278
    %v1280 = vadd.f32 %v1276, %v1279
    %vm1281 = vweird.f32 %v1274
    %vm1282 = vweird.f32 %v1276
    %vm1283 = vmor %vm1281, %vm1282
    %v1284 = vsel %vm1283, %v1276, %v1280
    %v1285 = vand.u32 2147483647, %v1274
    %vm1286 = vcmp.eq.f32.partialorder %v1285, 8.507059e+37
    %v1287 = vand.u32 %v1274, 2147483648
    %v1288 = vor.u32 1.1754944e-38, %v1287
    %v1289 = vsel %vm1286, %v1288, %v1284
    %v1290 = vmul.f32 %v1263, %v1289
    %v1291 = vrcp.pop %v1275
    %v1292 = vmul.f32 %v1275, %v1291
    %v1293 = vsub.f32 1.0, %v1292
    %v1294 = vmul.f32 %v1291, %v1293
    %v1295 = vadd.f32 %v1291, %v1294
    %vm1296 = vweird.f32 %v1275
    %vm1297 = vweird.f32 %v1291
    %vm1298 = vmor %vm1296, %vm1297
    %v1299 = vsel %vm1298, %v1291, %v1295
    %v1300 = vand.u32 2147483647, %v1275
    %vm1301 = vcmp.eq.f32.partialorder %v1300, 8.507059e+37
    %v1302 = vand.u32 %v1275, 2147483648
    %v1303 = vor.u32 1.1754944e-38, %v1302
    %v1304 = vsel %vm1301, %v1303, %v1299
    %v1305 = vmul.f32 %v1266, %v1304
    %v1307 = vrot.slane %v1263, 6
    %v1309 = vsel %vm266, 0.0, %v1307
    %v1310 = vperm.slane %v94, 3
    %v1311 = vadd.f32 %v1310, 0.0
    %v1312 = vperm.slane %v94, 0
    %v1313 = vmul.f32 %v1309, %v1312
    %v1314 = vadd.f32 %v1311, %v1313
    %v1315 = vperm.slane %v94, 1
    %v1316 = vmul.f32 %v1309, %v1315
    %v1317 = vmul.f32 %v1307, %v1315
    %v1320 = vrot.slane %v1316, 1
    %v1321 = vrot.slane %v1317, 1
    %v1322 = vsel %vm278, %v1320, %v1321
    %v1324 = vadd.f32 %v1314, %v1322
    %v1325 = vperm.slane %v94, 2
    %v1326 = vmul.f32 %v1309, %v1325
    %v1327 = vmul.f32 %v1307, %v1325
    %v1330 = vrot.slane %v1326, 2
    %v1331 = vrot.slane %v1327, 2
    %v1332 = vsel %vm289, %v1330, %v1331
    %v1334 = vadd.f32 %v1324, %v1332
    %v1336 = vrot.slane %v1266, 6
    %v1338 = vsel %vm266, 0.0, %v1336
    %v1339 = vmul.f32 %v1338, %v1312
    %v1340 = vadd.f32 %v1311, %v1339
    %v1341 = vmul.f32 %v1338, %v1315
    %v1342 = vmul.f32 %v1336, %v1315
    %v1345 = vrot.slane %v1341, 1
    %v1346 = vrot.slane %v1342, 1
    %v1347 = vsel %vm278, %v1345, %v1346
    %v1349 = vadd.f32 %v1340, %v1347
    %v1350 = vmul.f32 %v1338, %v1325
    %v1351 = vmul.f32 %v1336, %v1325
    %v1354 = vrot.slane %v1350, 2
    %v1355 = vrot.slane %v1351, 2
    %v1356 = vsel %vm289, %v1354, %v1355
    %v1358 = vadd.f32 %v1349, %v1356
    %v1359 = vsub.f32 0.0, %v1334
    %v1360 = vsub.f32 0.0, %v1358
    %v1361 = vmul.f32 %v1359, 1.442695
    %v1362 = vpow.pop %v1361
    %v1363 = vmul.f32 %v1360, 1.442695
    %v1364 = vpow.pop %v1363
    %v1365 = vadd.f32 %v1362, 1.0
    %v1366 = vadd.f32 %v1364, 1.0
    %v1367 = vrcp.pop %v1365
    %v1368 = vmul.f32 %v1365, %v1367
    %v1369 = vsub.f32 1.0, %v1368
    %v1370 = vmul.f32 %v1367, %v1369
    %v1371 = vadd.f32 %v1367, %v1370
    %vm1372 = vweird.f32 %v1365
    %vm1373 = vweird.f32 %v1367
    %vm1374 = vmor %vm1372, %vm1373
    %v1375 = vsel %vm1374, %v1367, %v1371
    %v1376 = vand.u32 2147483647, %v1365
    %vm1377 = vcmp.eq.f32.partialorder %v1376, 8.507059e+37
    %v1378 = vand.u32 %v1365, 2147483648
    %v1379 = vor.u32 1.1754944e-38, %v1378
    %v1380 = vsel %vm1377, %v1379, %v1375
    %v1381 = vmul.f32 %v1334, %v1380
    %v1382 = vrcp.pop %v1366
    %v1383 = vmul.f32 %v1366, %v1382
    %v1384 = vsub.f32 1.0, %v1383
    %v1385 = vmul.f32 %v1382, %v1384
    %v1386 = vadd.f32 %v1382, %v1385
    %vm1387 = vweird.f32 %v1366
    %vm1388 = vweird.f32 %v1382
    %vm1389 = vmor %vm1387, %vm1388
    %v1390 = vsel %vm1389, %v1382, %v1386
    %v1391 = vand.u32 2147483647, %v1366
    %vm1392 = vcmp.eq.f32.partialorder %v1391, 8.507059e+37
    %v1393 = vand.u32 %v1366, 2147483648
    %v1394 = vor.u32 1.1754944e-38, %v1393
    %v1395 = vsel %vm1392, %v1394, %v1390
    %v1396 = vmul.f32 %v1358, %v1395
    %v1397 = vperm.slane %v94, 4
    %1402 = vrot.lane.b32.xlu0 %v86, 32
    %v1403 = vpop.permute.xlu0 %1402
    %1404 = vrot.lane.b32.xlu0 %v87, 32
    %v1405 = vpop.permute.xlu0 %1404
    %1406 = vrot.lane.b32.xlu0 %v88, 32
    %v1407 = vpop.permute.xlu0 %1406
    %1408 = vrot.lane.b32.xlu0 %v89, 32
    %v1409 = vpop.permute.xlu0 %1408
    %v1415 = vsel %vm109, %v1381, 0
    %v1418 = vsel %vm109, %v1396, 0
    %1420 = vmatpush.msra.mxu0 0.0
    %1421 = vmatpush.msra.mxu0 0.0
    %1422 = vmatpush.msra.mxu0 0.0
    %1423 = vmatpush.msra.mxu0 0.0
    %1424 = vmatpush.msra.mxu0 0.0
    %1425 = vmatpush.msra.mxu0 0.0
    %1426 = vmatpush.msra.mxu0 0.0
    %1427 = vmatpush.msra.mxu0 0.0
    %1428 = vmatpush.msra.mxu0 0.0
    %1429 = vmatpush.msra.mxu0 0.0
    %1430 = vmatpush.msra.mxu0 0.0
    %1431 = vmatpush.msra.mxu0 0.0
    %1432 = vmatpush.msra.mxu0 %v1409
    %1433 = vmatpush.msra.mxu0 %v1407
    %1434 = vmatpush.msra.mxu0 %v1405
    %1435 = vmatpush.msra.mxu0 %v1403
    %1436 = vmatmul.f32.gmra.mxu0 %v1415
    %v1437 = vpop.f32.mrf.mxu0
    %v1438 = vadd.f32 %v1397, %v1437
    %1439 = vmatmul.f32.gmra.mxu0 %v1418
    %v1440 = vpop.f32.mrf.mxu0
    %v1441 = vadd.f32 %v1397, %v1440
    %1442 = vdwg.mxu0
    %v1443 = vmax.f32 %v1438, 0.0
    %v1444 = vmax.f32 %v1441, 0.0
    %v1445 = vand.u32 2147483647, %v1438
    %v1446 = vand.u32 2147483647, %v1441
    %v1447 = vsub.f32 0.0, %v1445
    %v1448 = vsub.f32 0.0, %v1446
    %v1449 = vmul.f32 %v1447, 1.442695
    %v1450 = vpow.pop %v1449
    %v1451 = vmul.f32 %v1448, 1.442695
    %v1452 = vpow.pop %v1451
    %v1453 = vadd.f32 %v1450, 1.0
    %v1454 = vadd.f32 %v1452, 1.0
    %v1455 = vlog2.pop %v1453
    %v1456 = vmul.f32 %v1455, 0.6931472
    %v1457 = vlog2.pop %v1454
    %v1458 = vmul.f32 %v1457, 0.6931472
    %v1459 = vadd.f32 %v1443, %v1456
    %v1460 = vadd.f32 %v1444, %v1458
    %v1464 = vrot.slane %v95, 5
    %v1465 = vrot.slane %v96, 5
    %v1466 = vsel %vm424, %v1464, %v1465
    %v1467 = vrot.slane %v97, 5
    %v1468 = vsel %vm424, %v1465, %v1467
    %v1469 = vsel %vm109, %v1466, 0
    %v1471 = vsel %vm109, %v1468, 0
    %1473 = vmatpush.xpose.msra.mxu0 0.0
    %1474 = vmatpush.xpose.msra.mxu0 0.0
    %1475 = vmatpush.xpose.msra.mxu0 0.0
    %1476 = vmatpush.xpose.msra.mxu0 0.0
    %1477 = vmatpush.xpose.msra.mxu0 0.0
    %1478 = vmatpush.xpose.msra.mxu0 0.0
    %1479 = vmatpush.xpose.msra.mxu0 0.0
    %1480 = vmatpush.xpose.msra.mxu0 0.0
    %1481 = vmatpush.xpose.msra.mxu0 0.0
    %1482 = vmatpush.xpose.msra.mxu0 0.0
    %1483 = vmatpush.xpose.msra.mxu0 0.0
    %1484 = vmatpush.xpose.msra.mxu0 0.0
    %1485 = vmatpush.xpose.msra.mxu0 0.0
    %1486 = vmatpush.xpose.msra.mxu0 0.0
    %1487 = vmatpush.xpose.msra.mxu0 %v1418
    %1488 = vmatpush.xpose.msra.mxu0 %v1415
    %1489 = vmatmul.f32.gmra.mxu0 %v1469
    %v1490 = vpop.f32.mrf.mxu0
    %v1491 = vadd.f32 0.0, %v1490
    %1492 = vmatmul.f32.gmra.mxu0 %v1471
    %v1493 = vpop.f32.mrf.mxu0
    %v1494 = vadd.f32 0.0, %v1493
    %1495 = vdwg.mxu0
    %v1498 = vrot.slane %v1459, 1
    %v1499 = vrot.slane %v1459, 2
    %v1500 = vrot.slane %v1459, 3
    %v1501 = vrot.slane %v1459, 4
    %v1502 = vrot.slane %v1459, 5
    %v1503 = vrot.slane %v1459, 6
    %v1504 = vrot.slane %v1459, 7
    %v1505 = vrot.slane %v1460, 1
    %v1506 = vrot.slane %v1460, 2
    %v1507 = vrot.slane %v1460, 3
    %v1508 = vrot.slane %v1460, 4
    %v1509 = vrot.slane %v1460, 5
    %v1510 = vrot.slane %v1460, 6
    %v1511 = vrot.slane %v1460, 7
    %v1512 = vperm.slane %v1459, 0
    %v1513 = vperm.slane %v1498, 0
    %v1514 = vperm.slane %v1499, 0
    %v1515 = vperm.slane %v1500, 0
    %v1516 = vperm.slane %v1501, 0
    %v1517 = vperm.slane %v1502, 0
    %v1518 = vperm.slane %v1503, 0
    %v1519 = vperm.slane %v1504, 0
    %v1520 = vperm.slane %v1460, 0
    %v1521 = vperm.slane %v1505, 0
    %v1522 = vperm.slane %v1506, 0
    %v1523 = vperm.slane %v1507, 0
    %v1524 = vperm.slane %v1508, 0
    %v1525 = vperm.slane %v1509, 0
    %v1526 = vperm.slane %v1510, 0
    %v1527 = vperm.slane %v1511, 0
    %v1544 = vmul.f32 %v1512, %v94
    %v1545 = vmul.f32 %v1512, %v95
    %v1546 = vmul.f32 %v1513, %v94
    %v1547 = vmul.f32 %v1513, %v95
    %v1548 = vmul.f32 %v1514, %v94
    %v1549 = vmul.f32 %v1514, %v95
    %v1550 = vmul.f32 %v1515, %v94
    %v1551 = vmul.f32 %v1515, %v95
    %v1552 = vmul.f32 %v1516, %v94
    %v1553 = vmul.f32 %v1516, %v95
    %v1554 = vmul.f32 %v1517, %v94
    %v1555 = vmul.f32 %v1517, %v95
    %v1556 = vmul.f32 %v1518, %v94
    %v1557 = vmul.f32 %v1518, %v95
    %v1558 = vmul.f32 %v1519, %v94
    %v1559 = vmul.f32 %v1519, %v95
    %v1560 = vmul.f32 %v1520, %v94
    %v1561 = vmul.f32 %v1520, %v95
    %v1562 = vmul.f32 %v1521, %v94
    %v1563 = vmul.f32 %v1521, %v95
    %v1564 = vmul.f32 %v1522, %v94
    %v1565 = vmul.f32 %v1522, %v95
    %v1566 = vmul.f32 %v1523, %v94
    %v1567 = vmul.f32 %v1523, %v95
    %v1568 = vmul.f32 %v1524, %v94
    %v1569 = vmul.f32 %v1524, %v95
    %v1570 = vmul.f32 %v1525, %v94
    %v1571 = vmul.f32 %v1525, %v95
    %v1572 = vmul.f32 %v1526, %v94
    %v1573 = vmul.f32 %v1526, %v95
    %v1574 = vmul.f32 %v1527, %v94
    %v1575 = vmul.f32 %v1527, %v95
    %v1576 = vsub.f32 0.0, %v1544
    %v1577 = vsub.f32 0.0, %v1545
    %v1578 = vsub.f32 0.0, %v1546
    %v1579 = vsub.f32 0.0, %v1547
    %v1580 = vsub.f32 0.0, %v1548
    %v1581 = vsub.f32 0.0, %v1549
    %v1582 = vsub.f32 0.0, %v1550
    %v1583 = vsub.f32 0.0, %v1551
    %v1584 = vsub.f32 0.0, %v1552
    %v1585 = vsub.f32 0.0, %v1553
    %v1586 = vsub.f32 0.0, %v1554
    %v1587 = vsub.f32 0.0, %v1555
    %v1588 = vsub.f32 0.0, %v1556
    %v1589 = vsub.f32 0.0, %v1557
    %v1590 = vsub.f32 0.0, %v1558
    %v1591 = vsub.f32 0.0, %v1559
    %v1592 = vsub.f32 0.0, %v1560
    %v1593 = vsub.f32 0.0, %v1561
    %v1594 = vsub.f32 0.0, %v1562
    %v1595 = vsub.f32 0.0, %v1563
    %v1596 = vsub.f32 0.0, %v1564
    %v1597 = vsub.f32 0.0, %v1565
    %v1598 = vsub.f32 0.0, %v1566
    %v1599 = vsub.f32 0.0, %v1567
    %v1600 = vsub.f32 0.0, %v1568
    %v1601 = vsub.f32 0.0, %v1569
    %v1602 = vsub.f32 0.0, %v1570
    %v1603 = vsub.f32 0.0, %v1571
    %v1604 = vsub.f32 0.0, %v1572
    %v1605 = vsub.f32 0.0, %v1573
    %v1606 = vsub.f32 0.0, %v1574
    %v1607 = vsub.f32 0.0, %v1575
    %v1608 = vmul.f32 %v1576, 1.442695
    %v1609 = vpow.pop %v1608
    %v1610 = vmul.f32 %v1577, 1.442695
    %v1611 = vpow.pop %v1610
    %v1612 = vmul.f32 %v1578, 1.442695
    %v1613 = vpow.pop %v1612
    %v1614 = vmul.f32 %v1579, 1.442695
    %v1615 = vpow.pop %v1614
    %v1616 = vmul.f32 %v1580, 1.442695
    %v1617 = vpow.pop %v1616
    %v1618 = vmul.f32 %v1581, 1.442695
    %v1619 = vpow.pop %v1618
    %v1620 = vmul.f32 %v1582, 1.442695
    %v1621 = vpow.pop %v1620
    %v1622 = vmul.f32 %v1583, 1.442695
    %v1623 = vpow.pop %v1622
    %v1624 = vmul.f32 %v1584, 1.442695
    %v1625 = vpow.pop %v1624
    %v1626 = vmul.f32 %v1585, 1.442695
    %v1627 = vpow.pop %v1626
    %v1628 = vmul.f32 %v1586, 1.442695
    %v1629 = vpow.pop %v1628
    %v1630 = vmul.f32 %v1587, 1.442695
    %v1631 = vpow.pop %v1630
    %v1632 = vmul.f32 %v1588, 1.442695
    %v1633 = vpow.pop %v1632
    %v1634 = vmul.f32 %v1589, 1.442695
    %v1635 = vpow.pop %v1634
    %v1636 = vmul.f32 %v1590, 1.442695
    %v1637 = vpow.pop %v1636
    %v1638 = vmul.f32 %v1591, 1.442695
    %v1639 = vpow.pop %v1638
    %v1640 = vmul.f32 %v1592, 1.442695
    %v1641 = vpow.pop %v1640
    %v1642 = vmul.f32 %v1593, 1.442695
    %v1643 = vpow.pop %v1642
    %v1644 = vmul.f32 %v1594, 1.442695
    %v1645 = vpow.pop %v1644
    %v1646 = vmul.f32 %v1595, 1.442695
    %v1647 = vpow.pop %v1646
    %v1648 = vmul.f32 %v1596, 1.442695
    %v1649 = vpow.pop %v1648
    %v1650 = vmul.f32 %v1597, 1.442695
    %v1651 = vpow.pop %v1650
    %v1652 = vmul.f32 %v1598, 1.442695
    %v1653 = vpow.pop %v1652
    %v1654 = vmul.f32 %v1599, 1.442695
    %v1655 = vpow.pop %v1654
    %v1656 = vmul.f32 %v1600, 1.442695
    %v1657 = vpow.pop %v1656
    %v1658 = vmul.f32 %v1601, 1.442695
    %v1659 = vpow.pop %v1658
    %v1660 = vmul.f32 %v1602, 1.442695
    %v1661 = vpow.pop %v1660
    %v1662 = vmul.f32 %v1603, 1.442695
    %v1663 = vpow.pop %v1662
    %v1664 = vmul.f32 %v1604, 1.442695
    %v1665 = vpow.pop %v1664
    %v1666 = vmul.f32 %v1605, 1.442695
    %v1667 = vpow.pop %v1666
    %v1668 = vmul.f32 %v1606, 1.442695
    %v1669 = vpow.pop %v1668
    %v1670 = vmul.f32 %v1607, 1.442695
    %v1671 = vpow.pop %v1670
    %v1672 = vmul.f32 %v1459, %v1381
    %v1673 = vmul.f32 %v1460, %v1396
    %v1674 = vmul.f32 %v1609, 0.0
    %v1675 = vmul.f32 %v1611, 0.0
    %1677 = vset.pattern.permute.xlu0 0
    %1678 = vperm.xlu0 %1677, %v1491
    %v1679 = vpop.permute.xlu0 %1678
    %v1681 = vperm.slane %v1672, 0
    %v1682 = vmul.f32 %v1679, %v1681
    %v1684 = vrot.slane %v1682, 3
    %v1686 = vadd.f32 %v1674, %v1684
    %v1687 = vadd.f32 %v1675, %v1684
    %1689 = vset.pattern.permute.xlu0 0
    %1690 = vperm.xlu0 %1689, %v1494
    %v1691 = vpop.permute.xlu0 %1690
    %v1692 = vrot.slane %v1691, 3
    %v1694 = vmul.f32 %v1686, %v1692
    %v1695 = vmul.f32 %v1687, %v1692
    %v1698 = vrot.slane %v1694, 5
    %v1699 = vrot.slane %v1695, 5
    %v1700 = vsel %vm424, %v1698, %v1699
    %v1702 = vsel %vm109, %v1700, 0.0
    %v1703 = vrot.slane %v1702, 4
    %v1704 = vadd.f32 %v1702, %v1703
    %v1705 = vrot.slane %v1704, 2
    %v1706 = vadd.f32 %v1704, %v1705
    %v1707 = vrot.slane %v1706, 1
    %v1708 = vadd.f32 %v1706, %v1707
    %v1709 = vmul.f32 %v1613, %v1686
    %v1710 = vmul.f32 %v1615, %v1687
    %1711 = vset.pattern.permute.xlu0 1
    %1712 = vperm.xlu0 %1711, %v1491
    %v1713 = vpop.permute.xlu0 %1712
    %v1715 = vperm.slane %v1672, 1
    %v1716 = vmul.f32 %v1713, %v1715
    %v1718 = vrot.slane %v1716, 3
    %v1720 = vadd.f32 %v1709, %v1718
    %v1721 = vadd.f32 %v1710, %v1718
    %1722 = vset.pattern.permute.xlu0 1
    %1723 = vperm.xlu0 %1722, %v1494
    %v1724 = vpop.permute.xlu0 %1723
    %v1725 = vrot.slane %v1724, 3
    %v1727 = vmul.f32 %v1720, %v1725
    %v1728 = vmul.f32 %v1721, %v1725
    %v1731 = vrot.slane %v1727, 5
    %v1732 = vrot.slane %v1728, 5
    %v1733 = vsel %vm424, %v1731, %v1732
    %v1735 = vsel %vm109, %v1733, 0.0
    %v1736 = vrot.slane %v1735, 4
    %v1737 = vadd.f32 %v1735, %v1736
    %v1738 = vrot.slane %v1737, 2
    %v1739 = vadd.f32 %v1737, %v1738
    %v1740 = vrot.slane %v1739, 1
    %v1741 = vadd.f32 %v1739, %v1740
    %v1742 = vmul.f32 %v1617, %v1720
    %v1743 = vmul.f32 %v1619, %v1721
    %1744 = vset.pattern.permute.xlu0 2
    %1745 = vperm.xlu0 %1744, %v1491
    %v1746 = vpop.permute.xlu0 %1745
    %v1748 = vperm.slane %v1672, 2
    %v1749 = vmul.f32 %v1746, %v1748
    %v1751 = vrot.slane %v1749, 3
    %v1753 = vadd.f32 %v1742, %v1751
    %v1754 = vadd.f32 %v1743, %v1751
    %1755 = vset.pattern.permute.xlu0 2
    %1756 = vperm.xlu0 %1755, %v1494
    %v1757 = vpop.permute.xlu0 %1756
    %v1758 = vrot.slane %v1757, 3
    %v1760 = vmul.f32 %v1753, %v1758
    %v1761 = vmul.f32 %v1754, %v1758
    %v1764 = vrot.slane %v1760, 5
    %v1765 = vrot.slane %v1761, 5
    %v1766 = vsel %vm424, %v1764, %v1765
    %v1768 = vsel %vm109, %v1766, 0.0
    %v1769 = vrot.slane %v1768, 4
    %v1770 = vadd.f32 %v1768, %v1769
    %v1771 = vrot.slane %v1770, 2
    %v1772 = vadd.f32 %v1770, %v1771
    %v1773 = vrot.slane %v1772, 1
    %v1774 = vadd.f32 %v1772, %v1773
    %v1775 = vmul.f32 %v1621, %v1753
    %v1776 = vmul.f32 %v1623, %v1754
    %1777 = vset.pattern.permute.xlu0 3
    %1778 = vperm.xlu0 %1777, %v1491
    %v1779 = vpop.permute.xlu0 %1778
    %v1781 = vperm.slane %v1672, 3
    %v1782 = vmul.f32 %v1779, %v1781
    %v1784 = vrot.slane %v1782, 3
    %v1786 = vadd.f32 %v1775, %v1784
    %v1787 = vadd.f32 %v1776, %v1784
    %1788 = vset.pattern.permute.xlu0 3
    %1789 = vperm.xlu0 %1788, %v1494
    %v1790 = vpop.permute.xlu0 %1789
    %v1791 = vrot.slane %v1790, 3
    %v1793 = vmul.f32 %v1786, %v1791
    %v1794 = vmul.f32 %v1787, %v1791
    %v1797 = vrot.slane %v1793, 5
    %v1798 = vrot.slane %v1794, 5
    %v1799 = vsel %vm424, %v1797, %v1798
    %v1801 = vsel %vm109, %v1799, 0.0
    %v1802 = vrot.slane %v1801, 4
    %v1803 = vadd.f32 %v1801, %v1802
    %v1804 = vrot.slane %v1803, 2
    %v1805 = vadd.f32 %v1803, %v1804
    %v1806 = vrot.slane %v1805, 1
    %v1807 = vadd.f32 %v1805, %v1806
    %v1808 = vmul.f32 %v1625, %v1786
    %v1809 = vmul.f32 %v1627, %v1787
    %1810 = vset.pattern.permute.xlu0 4
    %1811 = vperm.xlu0 %1810, %v1491
    %v1812 = vpop.permute.xlu0 %1811
    %v1814 = vperm.slane %v1672, 4
    %v1815 = vmul.f32 %v1812, %v1814
    %v1817 = vrot.slane %v1815, 3
    %v1819 = vadd.f32 %v1808, %v1817
    %v1820 = vadd.f32 %v1809, %v1817
    %1821 = vset.pattern.permute.xlu0 4
    %1822 = vperm.xlu0 %1821, %v1494
    %v1823 = vpop.permute.xlu0 %1822
    %v1824 = vrot.slane %v1823, 3
    %v1826 = vmul.f32 %v1819, %v1824
    %v1827 = vmul.f32 %v1820, %v1824
    %v1830 = vrot.slane %v1826, 5
    %v1831 = vrot.slane %v1827, 5
    %v1832 = vsel %vm424, %v1830, %v1831
    %v1834 = vsel %vm109, %v1832, 0.0
    %v1835 = vrot.slane %v1834, 4
    %v1836 = vadd.f32 %v1834, %v1835
    %v1837 = vrot.slane %v1836, 2
    %v1838 = vadd.f32 %v1836, %v1837
    %v1839 = vrot.slane %v1838, 1
    %v1840 = vadd.f32 %v1838, %v1839
    %v1841 = vmul.f32 %v1629, %v1819
    %v1842 = vmul.f32 %v1631, %v1820
    %1843 = vset.pattern.permute.xlu0 5
    %1844 = vperm.xlu0 %1843, %v1491
    %v1845 = vpop.permute.xlu0 %1844
    %v1847 = vperm.slane %v1672, 5
    %v1848 = vmul.f32 %v1845, %v1847
    %v1850 = vrot.slane %v1848, 3
    %v1852 = vadd.f32 %v1841, %v1850
    %v1853 = vadd.f32 %v1842, %v1850
    %1854 = vset.pattern.permute.xlu0 5
    %1855 = vperm.xlu0 %1854, %v1494
    %v1856 = vpop.permute.xlu0 %1855
    %v1857 = vrot.slane %v1856, 3
    %v1859 = vmul.f32 %v1852, %v1857
    %v1860 = vmul.f32 %v1853, %v1857
    %v1863 = vrot.slane %v1859, 5
    %v1864 = vrot.slane %v1860, 5
    %v1865 = vsel %vm424, %v1863, %v1864
    %v1867 = vsel %vm109, %v1865, 0.0
    %v1868 = vrot.slane %v1867, 4
    %v1869 = vadd.f32 %v1867, %v1868
    %v1870 = vrot.slane %v1869, 2
    %v1871 = vadd.f32 %v1869, %v1870
    %v1872 = vrot.slane %v1871, 1
    %v1873 = vadd.f32 %v1871, %v1872
    %v1874 = vmul.f32 %v1633, %v1852
    %v1875 = vmul.f32 %v1635, %v1853
    %1876 = vset.pattern.permute.xlu0 6
    %1877 = vperm.xlu0 %1876, %v1491
    %v1878 = vpop.permute.xlu0 %1877
    %v1880 = vperm.slane %v1672, 6
    %v1881 = vmul.f32 %v1878, %v1880
    %v1883 = vrot.slane %v1881, 3
    %v1885 = vadd.f32 %v1874, %v1883
    %v1886 = vadd.f32 %v1875, %v1883
    %1887 = vset.pattern.permute.xlu0 6
    %1888 = vperm.xlu0 %1887, %v1494
    %v1889 = vpop.permute.xlu0 %1888
    %v1890 = vrot.slane %v1889, 3
    %v1892 = vmul.f32 %v1885, %v1890
    %v1893 = vmul.f32 %v1886, %v1890
    %v1896 = vrot.slane %v1892, 5
    %v1897 = vrot.slane %v1893, 5
    %v1898 = vsel %vm424, %v1896, %v1897
    %v1900 = vsel %vm109, %v1898, 0.0
    %v1901 = vrot.slane %v1900, 4
    %v1902 = vadd.f32 %v1900, %v1901
    %v1903 = vrot.slane %v1902, 2
    %v1904 = vadd.f32 %v1902, %v1903
    %v1905 = vrot.slane %v1904, 1
    %v1906 = vadd.f32 %v1904, %v1905
    %v1907 = vmul.f32 %v1637, %v1885
    %v1908 = vmul.f32 %v1639, %v1886
    %1909 = vset.pattern.permute.xlu0 7
    %1910 = vperm.xlu0 %1909, %v1491
    %v1911 = vpop.permute.xlu0 %1910
    %v1913 = vperm.slane %v1672, 7
    %v1914 = vmul.f32 %v1911, %v1913
    %v1916 = vrot.slane %v1914, 3
    %v1918 = vadd.f32 %v1907, %v1916
    %v1919 = vadd.f32 %v1908, %v1916
    %1920 = vset.pattern.permute.xlu0 7
    %1921 = vperm.xlu0 %1920, %v1494
    %v1922 = vpop.permute.xlu0 %1921
    %v1923 = vrot.slane %v1922, 3
    %v1925 = vmul.f32 %v1918, %v1923
    %v1926 = vmul.f32 %v1919, %v1923
    %v1929 = vrot.slane %v1925, 5
    %v1930 = vrot.slane %v1926, 5
    %v1931 = vsel %vm424, %v1929, %v1930
    %v1933 = vsel %vm109, %v1931, 0.0
    %v1934 = vrot.slane %v1933, 4
    %v1935 = vadd.f32 %v1933, %v1934
    %v1936 = vrot.slane %v1935, 2
    %v1937 = vadd.f32 %v1935, %v1936
    %v1938 = vrot.slane %v1937, 1
    %v1939 = vadd.f32 %v1937, %v1938
    %v1940 = vmul.f32 %v1641, 0.0
    %v1941 = vmul.f32 %v1643, 0.0
    %1942 = vset.pattern.permute.xlu0 8
    %1943 = vperm.xlu0 %1942, %v1491
    %v1944 = vpop.permute.xlu0 %1943
    %v1946 = vperm.slane %v1673, 0
    %v1947 = vmul.f32 %v1944, %v1946
    %v1949 = vrot.slane %v1947, 3
    %v1951 = vadd.f32 %v1940, %v1949
    %v1952 = vadd.f32 %v1941, %v1949
    %1953 = vset.pattern.permute.xlu0 8
    %1954 = vperm.xlu0 %1953, %v1494
    %v1955 = vpop.permute.xlu0 %1954
    %v1956 = vrot.slane %v1955, 3
    %v1958 = vmul.f32 %v1951, %v1956
    %v1959 = vmul.f32 %v1952, %v1956
    %v1962 = vrot.slane %v1958, 5
    %v1963 = vrot.slane %v1959, 5
    %v1964 = vsel %vm424, %v1962, %v1963
    %v1966 = vsel %vm109, %v1964, 0.0
    %v1967 = vrot.slane %v1966, 4
    %v1968 = vadd.f32 %v1966, %v1967
    %v1969 = vrot.slane %v1968, 2
    %v1970 = vadd.f32 %v1968, %v1969
    %v1971 = vrot.slane %v1970, 1
    %v1972 = vadd.f32 %v1970, %v1971
    %v1973 = vmul.f32 %v1645, %v1951
    %v1974 = vmul.f32 %v1647, %v1952
    %1975 = vset.pattern.permute.xlu0 9
    %1976 = vperm.xlu0 %1975, %v1491
    %v1977 = vpop.permute.xlu0 %1976
    %v1979 = vperm.slane %v1673, 1
    %v1980 = vmul.f32 %v1977, %v1979
    %v1982 = vrot.slane %v1980, 3
    %v1984 = vadd.f32 %v1973, %v1982
    %v1985 = vadd.f32 %v1974, %v1982
    %1986 = vset.pattern.permute.xlu0 9
    %1987 = vperm.xlu0 %1986, %v1494
    %v1988 = vpop.permute.xlu0 %1987
    %v1989 = vrot.slane %v1988, 3
    %v1991 = vmul.f32 %v1984, %v1989
    %v1992 = vmul.f32 %v1985, %v1989
    %v1995 = vrot.slane %v1991, 5
    %v1996 = vrot.slane %v1992, 5
    %v1997 = vsel %vm424, %v1995, %v1996
    %v1999 = vsel %vm109, %v1997, 0.0
    %v2000 = vrot.slane %v1999, 4
    %v2001 = vadd.f32 %v1999, %v2000
    %v2002 = vrot.slane %v2001, 2
    %v2003 = vadd.f32 %v2001, %v2002
    %v2004 = vrot.slane %v2003, 1
    %v2005 = vadd.f32 %v2003, %v2004
    %v2006 = vmul.f32 %v1649, %v1984
    %v2007 = vmul.f32 %v1651, %v1985
    %2008 = vset.pattern.permute.xlu0 10
    %2009 = vperm.xlu0 %2008, %v1491
    %v2010 = vpop.permute.xlu0 %2009
    %v2012 = vperm.slane %v1673, 2
    %v2013 = vmul.f32 %v2010, %v2012
    %v2015 = vrot.slane %v2013, 3
    %v2017 = vadd.f32 %v2006, %v2015
    %v2018 = vadd.f32 %v2007, %v2015
    %2019 = vset.pattern.permute.xlu0 10
    %2020 = vperm.xlu0 %2019, %v1494
    %v2021 = vpop.permute.xlu0 %2020
    %v2022 = vrot.slane %v2021, 3
    %v2024 = vmul.f32 %v2017, %v2022
    %v2025 = vmul.f32 %v2018, %v2022
    %v2028 = vrot.slane %v2024, 5
    %v2029 = vrot.slane %v2025, 5
    %v2030 = vsel %vm424, %v2028, %v2029
    %v2032 = vsel %vm109, %v2030, 0.0
    %v2033 = vrot.slane %v2032, 4
    %v2034 = vadd.f32 %v2032, %v2033
    %v2035 = vrot.slane %v2034, 2
    %v2036 = vadd.f32 %v2034, %v2035
    %v2037 = vrot.slane %v2036, 1
    %v2038 = vadd.f32 %v2036, %v2037
    %v2039 = vmul.f32 %v1653, %v2017
    %v2040 = vmul.f32 %v1655, %v2018
    %2041 = vset.pattern.permute.xlu0 11
    %2042 = vperm.xlu0 %2041, %v1491
    %v2043 = vpop.permute.xlu0 %2042
    %v2045 = vperm.slane %v1673, 3
    %v2046 = vmul.f32 %v2043, %v2045
    %v2048 = vrot.slane %v2046, 3
    %v2050 = vadd.f32 %v2039, %v2048
    %v2051 = vadd.f32 %v2040, %v2048
    %2052 = vset.pattern.permute.xlu0 11
    %2053 = vperm.xlu0 %2052, %v1494
    %v2054 = vpop.permute.xlu0 %2053
    %v2055 = vrot.slane %v2054, 3
    %v2057 = vmul.f32 %v2050, %v2055
    %v2058 = vmul.f32 %v2051, %v2055
    %v2061 = vrot.slane %v2057, 5
    %v2062 = vrot.slane %v2058, 5
    %v2063 = vsel %vm424, %v2061, %v2062
    %v2065 = vsel %vm109, %v2063, 0.0
    %v2066 = vrot.slane %v2065, 4
    %v2067 = vadd.f32 %v2065, %v2066
    %v2068 = vrot.slane %v2067, 2
    %v2069 = vadd.f32 %v2067, %v2068
    %v2070 = vrot.slane %v2069, 1
    %v2071 = vadd.f32 %v2069, %v2070
    %v2072 = vmul.f32 %v1657, %v2050
    %v2073 = vmul.f32 %v1659, %v2051
    %2074 = vset.pattern.permute.xlu0 12
    %2075 = vperm.xlu0 %2074, %v1491
    %v2076 = vpop.permute.xlu0 %2075
    %v2078 = vperm.slane %v1673, 4
    %v2079 = vmul.f32 %v2076, %v2078
    %v2081 = vrot.slane %v2079, 3
    %v2083 = vadd.f32 %v2072, %v2081
    %v2084 = vadd.f32 %v2073, %v2081
    %2085 = vset.pattern.permute.xlu0 12
    %2086 = vperm.xlu0 %2085, %v1494
    %v2087 = vpop.permute.xlu0 %2086
    %v2088 = vrot.slane %v2087, 3
    %v2090 = vmul.f32 %v2083, %v2088
    %v2091 = vmul.f32 %v2084, %v2088
    %v2094 = vrot.slane %v2090, 5
    %v2095 = vrot.slane %v2091, 5
    %v2096 = vsel %vm424, %v2094, %v2095
    %v2098 = vsel %vm109, %v2096, 0.0
    %v2099 = vrot.slane %v2098, 4
    %v2100 = vadd.f32 %v2098, %v2099
    %v2101 = vrot.slane %v2100, 2
    %v2102 = vadd.f32 %v2100, %v2101
    %v2103 = vrot.slane %v2102, 1
    %v2104 = vadd.f32 %v2102, %v2103
    %v2105 = vmul.f32 %v1661, %v2083
    %v2106 = vmul.f32 %v1663, %v2084
    %2107 = vset.pattern.permute.xlu0 13
    %2108 = vperm.xlu0 %2107, %v1491
    %v2109 = vpop.permute.xlu0 %2108
    %v2111 = vperm.slane %v1673, 5
    %v2112 = vmul.f32 %v2109, %v2111
    %v2114 = vrot.slane %v2112, 3
    %v2116 = vadd.f32 %v2105, %v2114
    %v2117 = vadd.f32 %v2106, %v2114
    %2118 = vset.pattern.permute.xlu0 13
    %2119 = vperm.xlu0 %2118, %v1494
    %v2120 = vpop.permute.xlu0 %2119
    %v2121 = vrot.slane %v2120, 3
    %v2123 = vmul.f32 %v2116, %v2121
    %v2124 = vmul.f32 %v2117, %v2121
    %v2127 = vrot.slane %v2123, 5
    %v2128 = vrot.slane %v2124, 5
    %v2129 = vsel %vm424, %v2127, %v2128
    %v2131 = vsel %vm109, %v2129, 0.0
    %v2132 = vrot.slane %v2131, 4
    %v2133 = vadd.f32 %v2131, %v2132
    %v2134 = vrot.slane %v2133, 2
    %v2135 = vadd.f32 %v2133, %v2134
    %v2136 = vrot.slane %v2135, 1
    %v2137 = vadd.f32 %v2135, %v2136
    %v2138 = vmul.f32 %v1665, %v2116
    %v2139 = vmul.f32 %v1667, %v2117
    %2140 = vset.pattern.permute.xlu0 14
    %2141 = vperm.xlu0 %2140, %v1491
    %v2142 = vpop.permute.xlu0 %2141
    %v2144 = vperm.slane %v1673, 6
    %v2145 = vmul.f32 %v2142, %v2144
    %v2147 = vrot.slane %v2145, 3
    %v2149 = vadd.f32 %v2138, %v2147
    %v2150 = vadd.f32 %v2139, %v2147
    %2151 = vset.pattern.permute.xlu0 14
    %2152 = vperm.xlu0 %2151, %v1494
    %v2153 = vpop.permute.xlu0 %2152
    %v2154 = vrot.slane %v2153, 3
    %v2156 = vmul.f32 %v2149, %v2154
    %v2157 = vmul.f32 %v2150, %v2154
    %v2160 = vrot.slane %v2156, 5
    %v2161 = vrot.slane %v2157, 5
    %v2162 = vsel %vm424, %v2160, %v2161
    %v2164 = vsel %vm109, %v2162, 0.0
    %v2165 = vrot.slane %v2164, 4
    %v2166 = vadd.f32 %v2164, %v2165
    %v2167 = vrot.slane %v2166, 2
    %v2168 = vadd.f32 %v2166, %v2167
    %v2169 = vrot.slane %v2168, 1
    %v2170 = vadd.f32 %v2168, %v2169
    %v2171 = vmul.f32 %v1669, %v2149
    %v2172 = vmul.f32 %v1671, %v2150
    %2173 = vset.pattern.permute.xlu0 15
    %2174 = vperm.xlu0 %2173, %v1491
    %v2175 = vpop.permute.xlu0 %2174
    %v2177 = vperm.slane %v1673, 7
    %v2178 = vmul.f32 %v2175, %v2177
    %v2180 = vrot.slane %v2178, 3
    %v2182 = vadd.f32 %v2171, %v2180
    %v2183 = vadd.f32 %v2172, %v2180
    %2184 = vset.pattern.permute.xlu0 15
    %2185 = vperm.xlu0 %2184, %v1494
    %v2186 = vpop.permute.xlu0 %2185
    %v2187 = vrot.slane %v2186, 3
    %v2189 = vmul.f32 %v2182, %v2187
    %v2190 = vmul.f32 %v2183, %v2187
    %v2193 = vrot.slane %v2189, 5
    %v2194 = vrot.slane %v2190, 5
    %v2195 = vsel %vm424, %v2193, %v2194
    %v2197 = vsel %vm109, %v2195, 0.0
    %v2198 = vrot.slane %v2197, 4
    %v2199 = vadd.f32 %v2197, %v2198
    %v2200 = vrot.slane %v2199, 2
    %v2201 = vadd.f32 %v2199, %v2200
    %v2202 = vrot.slane %v2201, 1
    %v2203 = vadd.f32 %v2201, %v2202
    %v2204 = vsel %vm1165, %v1708, %v1741
    %v2205 = vsel %vm266, %v2204, %v1774
    %v2206 = vsel %vm424, %v2205, %v1807
    %v2207 = vsel %vm1169, %v2206, %v1840
    %v2208 = vsel %vm1171, %v2207, %v1873
    %v2209 = vsel %vm289, %v2208, %v1906
    %v2210 = vsel %vm278, %v2209, %v1939
    %v2211 = vsel %vm1165, %v1972, %v2005
    %v2212 = vsel %vm266, %v2211, %v2038
    %v2213 = vsel %vm424, %v2212, %v2071
    %v2214 = vsel %vm1169, %v2213, %v2104
    %v2215 = vsel %vm1171, %v2214, %v2137
    %v2216 = vsel %vm289, %v2215, %v2170
    %v2217 = vsel %vm278, %v2216, %v2203
    %v2218 = vmul.f32 %v1397, %v1381
    %v2219 = vmul.f32 %v1397, %v1396
    %v2220 = vadd.f32 %v2210, %v2218
    %v2221 = vadd.f32 %v2217, %v2219
    %2224 = vrot.lane.b32.xlu0 %v1290, 96
    %v2225 = vpop.permute.xlu0 %2224
    %2226 = vrot.lane.b32.xlu0 %v1305, 96
    %v2227 = vpop.permute.xlu0 %2226
    %v2230 = vmul.f32 %v2220, %v2225
    %v2231 = vmul.f32 %v2221, %v2227
    %2232 = vrot.lane.b32.xlu0 %v86, 64
    %v2233 = vpop.permute.xlu0 %2232
    %2234 = vrot.lane.b32.xlu0 %v87, 64
    %v2235 = vpop.permute.xlu0 %2234
    %2236 = vrot.lane.b32.xlu0 %v88, 64
    %v2237 = vpop.permute.xlu0 %2236
    %2238 = vrot.lane.b32.xlu0 %v89, 64
    %v2239 = vpop.permute.xlu0 %2238
    %v2245 = vsel %vm109, %v2230, 0
    %v2248 = vsel %vm109, %v2231, 0
    %2250 = vmatpush.msra.mxu0 0.0
    %2251 = vmatpush.msra.mxu0 0.0
    %2252 = vmatpush.msra.mxu0 0.0
    %2253 = vmatpush.msra.mxu0 0.0
    %2254 = vmatpush.msra.mxu0 0.0
    %2255 = vmatpush.msra.mxu0 0.0
    %2256 = vmatpush.msra.mxu0 0.0
    %2257 = vmatpush.msra.mxu0 0.0
    %2258 = vmatpush.msra.mxu0 0.0
    %2259 = vmatpush.msra.mxu0 0.0
    %2260 = vmatpush.msra.mxu0 0.0
    %2261 = vmatpush.msra.mxu0 0.0
    %2262 = vmatpush.msra.mxu0 %v2239
    %2263 = vmatpush.msra.mxu0 %v2237
    %2264 = vmatpush.msra.mxu0 %v2235
    %2265 = vmatpush.msra.mxu0 %v2233
    %2266 = vmatmul.f32.gmra.mxu0 %v2245
    %v2267 = vpop.f32.mrf.mxu0
    %v2268 = vadd.f32 0.0, %v2267
    %2269 = vmatmul.f32.gmra.mxu0 %v2248
    %v2270 = vpop.f32.mrf.mxu0
    %v2271 = vadd.f32 0.0, %v2270
    %2272 = vdwg.mxu0
    %v2273 = vadd.f32 %v1237, %v2268
    %v2274 = vadd.f32 %v1238, %v2271
    %v2275 = vsel %vm109, %v2273, 0.0
    %v2276 = vrot.slane %v2275, 4
    %v2277 = vadd.f32 %v2275, %v2276
    %v2278 = vrot.slane %v2277, 2
    %v2279 = vadd.f32 %v2277, %v2278
    %v2280 = vrot.slane %v2279, 1
    %v2281 = vadd.f32 %v2279, %v2280
    %v2282 = vsel %vm109, %v2274, 0.0
    %v2283 = vrot.slane %v2282, 4
    %v2284 = vadd.f32 %v2282, %v2283
    %v2285 = vrot.slane %v2284, 2
    %v2286 = vadd.f32 %v2284, %v2285
    %v2287 = vrot.slane %v2286, 1
    %v2288 = vadd.f32 %v2286, %v2287
    %v2289 = vrcp.pop 8.0
    %v2290 = vmul.f32 8.0, %v2289
    %v2291 = vsub.f32 1.0, %v2290
    %v2292 = vmul.f32 %v2289, %v2291
    %v2293 = vadd.f32 %v2289, %v2292
    %vm2294 = vweird.f32 %v2289
    %v2295 = vsel %vm2294, %v2289, %v2293
    %v2296 = vmul.f32 %v2281, %v2295
    %v2297 = vmul.f32 %v2288, %v2295
    %v2298 = vperm.slane %v102, 0
    %vm2301 = vcmask 1041409
    %v2302 = vsel %vm2301, %v2297, %v2296
    %v2303 = vsel %vm109, %v2302, 0
    %2305 = vmatpush.msra.mxu0 0.0
    %2306 = vmatpush.msra.mxu0 0.0
    %2307 = vmatpush.msra.mxu0 0.0
    %2308 = vmatpush.msra.mxu0 0.0
    %2309 = vmatpush.msra.mxu0 0.0
    %2310 = vmatpush.msra.mxu0 0.0
    %2311 = vmatpush.msra.mxu0 0.0
    %2312 = vmatpush.msra.mxu0 0.0
    %2313 = vmatpush.msra.mxu0 0.0
    %2314 = vmatpush.msra.mxu0 0.0
    %2315 = vmatpush.msra.mxu0 0.0
    %2316 = vmatpush.msra.mxu0 0.0
    %2317 = vmatpush.msra.mxu0 %v101
    %2318 = vmatpush.msra.mxu0 %v100
    %2319 = vmatpush.msra.mxu0 %v99
    %2320 = vmatpush.msra.mxu0 %v98
    %2321 = vmatmul.f32.gmra.mxu0 %v2303
    %v2322 = vpop.f32.mrf.mxu0
    %v2323 = vadd.f32 %v2298, %v2322
    %2324 = vdwg.mxu0
    %vm2325 = vcmask 254976
    %v2326 = vsel %vm2325, %v2323, 0.0
    %2327 = vadd.xlane.f32.xlu0 %v2326
    %v2328 = vpop.xlane.xlu0 %2327
    %v2329 = vmul.f32 %v2328, %v151
    %v2330 = vsub.f32 %v2323, %v2329
    %v2331 = vmul.f32 %v2330, %v2330
    %v2332 = vsel %vm2325, %v2331, 0.0
    %2333 = vadd.xlane.f32.xlu0 %v2332
    %v2334 = vpop.xlane.xlu0 %2333
    %v2335 = vmul.f32 %v2334, %v151
    %v2336 = vadd.f32 %v2335, 1e-05
    %v2337 = vrsqrt.pop %v2336
    %v2338 = vmul.f32 %v2337, %v2336
    %v2339 = vmul.f32 %v2338, %v2337
    %v2340 = vmul.f32 0.5, %v2339
    %v2341 = vsub.f32 1.5, %v2340
    %v2342 = vmul.f32 %v2337, %v2341
    %vm2343 = vweird.f32 %v2336
    %vm2344 = vweird.f32 %v2337
    %vm2345 = vmor %vm2343, %vm2344
    %v2346 = vsel %vm2345, %v2337, %v2342
    %v2347 = vmul.f32 %v2330, %v2346
    %v2348 = vperm.slane %v102, 1
    %v2349 = vmul.f32 %v2347, %v2348
    %v2350 = vperm.slane %v102, 2
    %v2351 = vadd.f32 %v2349, %v2350
    %v2352 = vmul.f32 %v2351, 0.5
    %v2353 = vmul.f32 %v2351, 0.044715
    %v2354 = vmul.f32 %v2353, %v2351
    %v2355 = vmul.f32 %v2354, %v2351
    %v2356 = vadd.f32 %v2351, %v2355
    %v2357 = vmul.f32 %v2356, 0.7978846
    %v2358 = vtanh.pop %v2357
    %v2359 = vadd.f32 %v2358, 1.0
    %v2360 = vmul.f32 %v2352, %v2359
    %v2361 = vperm.slane %v107, 0
    %v2363 = vsel %vm109, %v2360, 0
    %2365 = vmatpush.msra.mxu0 0.0
    %2366 = vmatpush.msra.mxu0 0.0
    %2367 = vmatpush.msra.mxu0 0.0
    %2368 = vmatpush.msra.mxu0 0.0
    %2369 = vmatpush.msra.mxu0 0.0
    %2370 = vmatpush.msra.mxu0 0.0
    %2371 = vmatpush.msra.mxu0 0.0
    %2372 = vmatpush.msra.mxu0 0.0
    %2373 = vmatpush.msra.mxu0 0.0
    %2374 = vmatpush.msra.mxu0 0.0
    %2375 = vmatpush.msra.mxu0 0.0
    %2376 = vmatpush.msra.mxu0 0.0
    %2377 = vmatpush.msra.mxu0 %v106
    %2378 = vmatpush.msra.mxu0 %v105
    %2379 = vmatpush.msra.mxu0 %v104
    %2380 = vmatpush.msra.mxu0 %v103
    %2381 = vmatmul.f32.gmra.mxu0 %v2363
    %v2382 = vpop.f32.mrf.mxu0
    %v2383 = vadd.f32 %v2361, %v2382
    %2384 = vdwg.mxu0
    %2385 = vst [vmem:[#allocation8] sm:$0x3] %v2383
    // Predicated region
    $region46: #{video_mamba_forward.1} parent=1 // pred_check
      _
    $region47: #{video_mamba_forward.1} parent=1 // pred_check_branch
      %2387 = sbr.rel (0) target = $region49
    $region48: #{video_mamba_forward.1} parent=1 // pred_region
      %2389 = vsyncadd [#allocation4], 0
      %s2391 = sshll.u32 [#allocation8], 4
      %s2392 = int_to_ptr.vmem [resolvable:$true] %s2391
      %s2393 = sshll.u32 %s8, 4
      %s2394 = int_to_ptr.hbm [resolvable:$true] %s2393
      %2396 = dma.vmem_to_hbm [thread:$0]  %s2392, 32, %s2394, [#allocation4]
    $region49: #{video_mamba_forward.1} parent=1 // pred_fallthru
      _
    // Predicated region
    $region50: #{video_mamba_forward.1} parent=1 // pred_check
      _
    $region51: #{video_mamba_forward.1} parent=1 // pred_check_branch
      %2398 = sbr.rel (0) target = $region53
    $region52: #{video_mamba_forward.1} parent=1 // pred_region
      %2400 = dma.done [#allocation4], 32
    $region53: #{video_mamba_forward.1} parent=1 // pred_fallthru
      _
    %2401 = vsyncpa [#allocation3], 1
    %2402 = vsyncpa [#allocation6], 1
    %2403 = vsyncpa [#allocation4], 1

</llo_original>
